<compile_context>
chip_gen: v6e
topology: v6e:2x2x1
jax: 0.10.0
libtpu: 0.0.40
codegen_flags: <defaults>
</compile_context>

<pallas_src>
import math

import jax
import jax.numpy as jnp
from jax.experimental import pallas as pl
from jax.experimental.pallas import tpu as pltpu

# ------------------------- model hyper-params (small) -------------------------
BATCH = 2
IN_CH = 3
IMG = 16
PATCH = 4
GRID_SZ = IMG // PATCH              # 4
NUM_PATCHES = GRID_SZ * GRID_SZ     # 16
EMBED = 32
NUM_HEADS = 4
HEAD_DIM = EMBED // NUM_HEADS       # 8
NUM_LAYERS = 2
ENC_MLP_RATIO = 4.0
DEC_MLP_RATIO = 2.0
DEC_BLOCKS = 1
OUT_DIM = PATCH * PATCH * IN_CH     # 48 (pixel predictor target dim)
OUT_PAD = 128                       # lane-dense padded store width
LN_EPS = 1e-5

# bf16 operands + f32 accumulation is MXU-native on all TPU generations.
# Set to jnp.float32 for exact-f32 parity runs.
MM_DTYPE = jnp.bfloat16
# tanh GELU runs on the otherwise-idle EUP; set False for exact erf (nn.GELU()) parity.
GELU_APPROX = True


# ------------------------------ fused Pallas kernel ------------------------------
def _fused_vit_kernel(
    patches_ref, pos_ref, patch_w_ref, patch_b_ref,
    ln1_g_ref, ln1_b_ref, qkv_w_ref, qkv_b_ref,
    proj_w_ref, proj_b_ref, ln2_g_ref, ln2_b_ref,
    fc1_w_ref, fc1_b_ref, fc2_w_ref, fc2_b_ref,
    fln_g_ref, fln_b_ref,
    dfc1_w_ref, dfc1_b_ref, dfc2_w_ref, dfc2_b_ref,
    pred_w_ref, pred_b_ref,
    out_ref,
):
    N = NUM_PATCHES
    scale = HEAD_DIM ** -0.5

    def mm(a_mm, w_mm):
        # bf16 operands, f32 accumulation on the MXU (weights are pre-cast).
        return jnp.dot(a_mm, w_mm, preferred_element_type=jnp.float32)

    def layer_norm(x, g, b):
        mu = jnp.mean(x, axis=-1, keepdims=True)
        var = jnp.mean((x - mu) ** 2, axis=-1, keepdims=True)
        return (x - mu) * jax.lax.rsqrt(var + LN_EPS) * g + b

    def gelu(x):
        return jax.nn.gelu(x, approximate=GELU_APPROX)

    # PatchEmbed (Conv2d(k=p, stride=p) == matmul over flattened patches) + pos embed,
    # on the fused (B*N, ·) slab.
    tok = mm(patches_ref[...], patch_w_ref[...]) + patch_b_ref[...]   # (B*N, D) f32
    x = tok + pos_ref[...]

    # ----------------------------- encoder blocks -----------------------------
    for l in range(NUM_LAYERS):          # static unroll; everything stays in VMEM
        h = layer_norm(x, ln1_g_ref[l], ln1_b_ref[l])
        hb = h.astype(MM_DTYPE)           # cast once for the whole QKV chain
        q = mm(hb, qkv_w_ref[l, 0]) + qkv_b_ref[l, 0]                 # (B*N, D) f32
        k = mm(hb, qkv_w_ref[l, 1]) + qkv_b_ref[l, 1]
        v = mm(hb, qkv_w_ref[l, 2]) + qkv_b_ref[l, 2]

        img_outs = []
        for b in range(BATCH):           # per-image attention; 16-row sublane slices
            rows = slice(b * N, (b + 1) * N)
            qb = q[rows].astype(MM_DTYPE)                              # (N, D) bf16
            kb = k[rows].astype(MM_DTYPE)
            vb = v[rows].astype(MM_DTYPE)
            acc = jnp.zeros((N, EMBED), jnp.float32)
            for hd in range(NUM_HEADS):
                cols = slice(hd * HEAD_DIM, (hd + 1) * HEAD_DIM)
                qh, kh, vh = qb[:, cols], kb[:, cols], vb[:, cols]     # (N, dh) bf16
                # q @ k^T via dot_general contracting the head dim (no explicit .T).
                s = jax.lax.dot_general(
                    qh, kh, (((1,), (1,)), ((), ())),
                    preferred_element_type=jnp.float32) * scale        # (N, N) f32
                s = s - jnp.max(s, axis=-1, keepdims=True)
                p_att = jnp.exp(s)
                p_att = p_att * pl.reciprocal(
                    jnp.sum(p_att, axis=-1, keepdims=True), approx=True)
                pv = mm(p_att.astype(MM_DTYPE), vh)                    # (N, dh) f32
                # Output projection folded in per head: no lane concat of head outs.
                acc = acc + mm(pv.astype(MM_DTYPE), proj_w_ref[l, hd]) # (N, D)
            img_outs.append(acc)
        a = jnp.concatenate(img_outs, axis=0) + proj_b_ref[l]          # (B*N, D)
        x = x + a                                                      # residual 1

        h2 = layer_norm(x, ln2_g_ref[l], ln2_b_ref[l])
        m = mm(h2.astype(MM_DTYPE), fc1_w_ref[l]) + fc1_b_ref[l]
        m = gelu(m)
        m = mm(m.astype(MM_DTYPE), fc2_w_ref[l]) + fc2_b_ref[l]
        x = x + m                                                      # residual 2

    # final encoder LayerNorm
    x = layer_norm(x, fln_g_ref[...], fln_b_ref[...])

    # ------------------------------- AimDecoder -------------------------------
    y = x
    for l in range(DEC_BLOCKS):
        y = mm(y.astype(MM_DTYPE), dfc1_w_ref[l]) + dfc1_b_ref[l]
        y = gelu(y)
        y = mm(y.astype(MM_DTYPE), dfc2_w_ref[l]) + dfc2_b_ref[l]
    # Pixel predictor, lane-padded to 128 columns for an unmasked, lane-dense store.
    y = mm(y.astype(MM_DTYPE), pred_w_ref[...]) + pred_b_ref[...]      # (B*N, OUT_PAD)
    out_ref[...] = y


# ------------------------------ parameter setup ------------------------------
def get_posembed(embed_dim, grid_size, temperature=10000.0):
    scale = 2.0 * math.pi
    num_pos_feats = embed_dim // 2
    y_embed, x_embed = jnp.meshgrid(
        jnp.arange(grid_size, dtype=jnp.float32),
        jnp.arange(grid_size, dtype=jnp.float32),
        indexing="ij",
    )
    y_embed = y_embed / (grid_size + 1e-6) * scale
    x_embed = x_embed / (grid_size + 1e-6) * scale
    dim_t = jnp.arange(num_pos_feats, dtype=jnp.float32)
    dim_t_ = jnp.floor(dim_t / 2.0) / num_pos_feats
    dim_t = temperature ** (2.0 * dim_t_)
    pos_x = x_embed[..., None] / dim_t
    pos_y = y_embed[..., None] / dim_t
    pos_x = jnp.stack(
        (jnp.sin(pos_x[..., 0::2]), jnp.cos(pos_x[..., 1::2])), axis=-1
    ).reshape(grid_size, grid_size, num_pos_feats)
    pos_y = jnp.stack(
        (jnp.sin(pos_y[..., 0::2]), jnp.cos(pos_y[..., 1::2])), axis=-1
    ).reshape(grid_size, grid_size, num_pos_feats)
    pos = jnp.concatenate((pos_y, pos_x), axis=-1).reshape(-1, embed_dim)
    return pos  # (N, D)


def init_params(key):
    enc_hidden = round(EMBED * ENC_MLP_RATIO)   # 128
    dec_hidden = round(EMBED * DEC_MLP_RATIO)   # 64
    keys = jax.random.split(key, 32)
    ki = iter(range(32))

    def xav(shape, fan_in, fan_out):
        bound = math.sqrt(6.0 / (fan_in + fan_out))
        return jax.random.uniform(keys[next(ki)], shape, jnp.float32, -bound, bound)

    p = {}
    # patch embed (Conv2d(k=p, stride=p) == matmul over flattened (C,p,p) patches)
    p["patch_w"] = xav((IN_CH * PATCH * PATCH, EMBED), IN_CH * PATCH * PATCH, EMBED)
    p["patch_b"] = jnp.zeros((1, EMBED), jnp.float32)
    p["pos_embed"] = get_posembed(EMBED, GRID_SZ)                      # (N, D)

    # encoder blocks (stacked along a leading layer axis)
    qkv = jnp.stack([xav((EMBED, 3 * EMBED), EMBED, 3 * EMBED)
                     for _ in range(NUM_LAYERS)])                      # (L, D, 3D)
    # (L, 3, D, D): [l, 0]=Q, [l, 1]=K, [l, 2]=V weight — free leading-axis indexing.
    p["qkv_w"] = qkv.reshape(NUM_LAYERS, EMBED, 3, EMBED).transpose(0, 2, 1, 3)
    p["qkv_b"] = jnp.zeros((NUM_LAYERS, 3, 1, EMBED), jnp.float32)
    proj = jnp.stack([xav((EMBED, EMBED), EMBED, EMBED)
                      for _ in range(NUM_LAYERS)])                     # (L, D, D)
    # (L, H, dh, D): per-head row-block of the proj weight — free leading-axis indexing.
    p["proj_w"] = proj.reshape(NUM_LAYERS, NUM_HEADS, HEAD_DIM, EMBED)
    p["proj_b"] = jnp.zeros((NUM_LAYERS, 1, EMBED), jnp.float32)
    p["ln1_g"] = jnp.ones((NUM_LAYERS, 1, EMBED), jnp.float32)
    p["ln1_b"] = jnp.zeros((NUM_LAYERS, 1, EMBED), jnp.float32)
    p["ln2_g"] = jnp.ones((NUM_LAYERS, 1, EMBED), jnp.float32)
    p["ln2_b"] = jnp.zeros((NUM_LAYERS, 1, EMBED), jnp.float32)
    p["fc1_w"] = jnp.stack([xav((EMBED, enc_hidden), EMBED, enc_hidden)
                            for _ in range(NUM_LAYERS)])
    p["fc1_b"] = jnp.zeros((NUM_LAYERS, 1, enc_hidden), jnp.float32)
    p["fc2_w"] = jnp.stack([xav((enc_hidden, EMBED), enc_hidden, EMBED)
                            for _ in range(NUM_LAYERS)])
    p["fc2_b"] = jnp.zeros((NUM_LAYERS, 1, EMBED), jnp.float32)
    p["final_ln_g"] = jnp.ones((1, EMBED), jnp.float32)
    p["final_ln_b"] = jnp.zeros((1, EMBED), jnp.float32)
    # decoder
    p["dec_fc1_w"] = jnp.stack([xav((EMBED, dec_hidden), EMBED, dec_hidden)
                                for _ in range(DEC_BLOCKS)])
    p["dec_fc1_b"] = jnp.zeros((DEC_BLOCKS, 1, dec_hidden), jnp.float32)
    p["dec_fc2_w"] = jnp.stack([xav((dec_hidden, EMBED), dec_hidden, EMBED)
                                for _ in range(DEC_BLOCKS)])
    p["dec_fc2_b"] = jnp.zeros((DEC_BLOCKS, 1, EMBED), jnp.float32)
    p["pred_w"] = xav((EMBED, OUT_DIM), EMBED, OUT_DIM)
    p["pred_b"] = jnp.zeros((1, OUT_DIM), jnp.float32)
    return p


# --------------------------------- forward -----------------------------------
@jax.jit
def vit_for_autoregression_forward(params, x):
    """x: (B, C, H, W) NCHW, like the PyTorch module.  Returns {'x_pred': (B, N, out_dim)}."""
    B, C, H, W = x.shape
    p = PATCH
    hg, wg = H // p, W // p
    n_tok = hg * wg
    cpp = C * p * p
    # PatchEmbed front-end: conv(k=p, stride=p) == patch extraction (layout glue in
    # plain JAX) + matmul (done inside the fused kernel), on a fused (B*N, ·) slab.
    patches = (
        x.reshape(B, C, hg, p, wg, p)
        .transpose(0, 2, 4, 1, 3, 5)        # (B, h, w, C, p, p)
        .reshape(B * n_tok, cpp)
        .astype(MM_DTYPE)
    )
    pos = jnp.tile(params["pos_embed"], (B, 1))                        # (B*N, D) f32

    def w(name):  # pre-cast matmul weight matrices to bf16 once (outside the kernel)
        return params[name].astype(MM_DTYPE)

    # Lane-dense pixel predictor: pad 48 -> 128 output columns (sliced back below).
    pred_w = jnp.pad(params["pred_w"], ((0, 0), (0, OUT_PAD - OUT_DIM))).astype(MM_DTYPE)
    pred_b = jnp.pad(params["pred_b"], ((0, 0), (0, OUT_PAD - OUT_DIM)))

    args = (
        patches, pos, w("patch_w"), params["patch_b"],
        params["ln1_g"], params["ln1_b"], w("qkv_w"), params["qkv_b"],
        w("proj_w"), params["proj_b"], params["ln2_g"], params["ln2_b"],
        w("fc1_w"), params["fc1_b"], w("fc2_w"), params["fc2_b"],
        params["final_ln_g"], params["final_ln_b"],
        w("dec_fc1_w"), params["dec_fc1_b"], w("dec_fc2_w"), params["dec_fc2_b"],
        pred_w, pred_b,
    )

    y = pl.pallas_call(
        _fused_vit_kernel,
        out_shape=jax.ShapeDtypeStruct((B * n_tok, OUT_PAD), jnp.float32),
        in_specs=[pl.BlockSpec(memory_space=pltpu.MemorySpace.VMEM) for _ in args],
        out_specs=pl.BlockSpec(memory_space=pltpu.MemorySpace.VMEM),
    )(*args)

    return {"x_pred": y[:, :OUT_DIM].reshape(B, n_tok, OUT_DIM)}


# ----------------------------------- main -------------------------------------
if __name__ == "__main__":
    key = jax.random.PRNGKey(0)
    pkey, xkey = jax.random.split(key)
    params = init_params(pkey)
    x = jax.random.normal(xkey, (BATCH, IN_CH, IMG, IMG), jnp.float32)

    out = vit_for_autoregression_forward(params, x)
    x_pred = jax.block_until_ready(out["x_pred"])
    assert x_pred.shape == (BATCH, NUM_PATCHES, OUT_DIM), x_pred.shape
    assert bool(jnp.all(jnp.isfinite(x_pred)))
    print("KERNEL_OK")
</pallas_src>

<mosaic_0001>
module attributes {stable_mosaic.version = 11 : i64} {
  func.func @_fused_vit_kernel(%arg0: memref<32x48xbf16, #tpu.memory_space<vmem>>, %arg1: memref<32x32xf32, #tpu.memory_space<vmem>>, %arg2: memref<48x32xbf16, #tpu.memory_space<vmem>>, %arg3: memref<1x32xf32, #tpu.memory_space<vmem>>, %arg4: memref<2x1x32xf32, #tpu.memory_space<vmem>>, %arg5: memref<2x1x32xf32, #tpu.memory_space<vmem>>, %arg6: memref<2x3x32x32xbf16, #tpu.memory_space<vmem>>, %arg7: memref<2x3x1x32xf32, #tpu.memory_space<vmem>>, %arg8: memref<2x4x8x32xbf16, #tpu.memory_space<vmem>>, %arg9: memref<2x1x32xf32, #tpu.memory_space<vmem>>, %arg10: memref<2x1x32xf32, #tpu.memory_space<vmem>>, %arg11: memref<2x1x32xf32, #tpu.memory_space<vmem>>, %arg12: memref<2x32x128xbf16, #tpu.memory_space<vmem>>, %arg13: memref<2x1x128xf32, #tpu.memory_space<vmem>>, %arg14: memref<2x128x32xbf16, #tpu.memory_space<vmem>>, %arg15: memref<2x1x32xf32, #tpu.memory_space<vmem>>, %arg16: memref<1x32xf32, #tpu.memory_space<vmem>>, %arg17: memref<1x32xf32, #tpu.memory_space<vmem>>, %arg18: memref<1x32x64xbf16, #tpu.memory_space<vmem>>, %arg19: memref<1x1x64xf32, #tpu.memory_space<vmem>>, %arg20: memref<1x64x32xbf16, #tpu.memory_space<vmem>>, %arg21: memref<1x1x32xf32, #tpu.memory_space<vmem>>, %arg22: memref<32x128xbf16, #tpu.memory_space<vmem>>, %arg23: memref<1x128xf32, #tpu.memory_space<vmem>>, %arg24: memref<32x128xf32, #tpu.memory_space<vmem>>) attributes {dimension_semantics = [], scalar_prefetch = 0 : i64, scratch_operands = 0 : i64, tpu.core_type = #tpu.core_type<tc>} {
    %c0 = arith.constant 0 : index
    %c0_0 = arith.constant 0 : index
    %0 = vector.load %arg0[%c0, %c0_0] : memref<32x48xbf16, #tpu.memory_space<vmem>>, vector<32x48xbf16>
    %c0_1 = arith.constant 0 : index
    %c0_2 = arith.constant 0 : index
    %1 = vector.load %arg2[%c0_1, %c0_2] : memref<48x32xbf16, #tpu.memory_space<vmem>>, vector<48x32xbf16>
    %cst = arith.constant dense<0.000000e+00> : vector<32x32xf32>
    %2 = tpu.matmul %0, %1, %cst {dimension_numbers = #tpu.dot_dimension_numbers<[1], [0], [0], [1], [0, 0, 1, 1], [], []>} : vector<32x48xbf16>, vector<48x32xbf16>, vector<32x32xf32> -> vector<32x32xf32>
    %c0_3 = arith.constant 0 : index
    %c0_4 = arith.constant 0 : index
    %3 = vector.load %arg3[%c0_3, %c0_4] : memref<1x32xf32, #tpu.memory_space<vmem>>, vector<1x32xf32>
    %4 = vector.broadcast %3 : vector<1x32xf32> to vector<32x32xf32>
    %5 = arith.addf %2, %4 : vector<32x32xf32>
    %c0_5 = arith.constant 0 : index
    %c0_6 = arith.constant 0 : index
    %6 = vector.load %arg1[%c0_5, %c0_6] : memref<32x32xf32, #tpu.memory_space<vmem>>, vector<32x32xf32>
    %7 = arith.addf %5, %6 : vector<32x32xf32>
    %c0_7 = arith.constant 0 : index
    %c0_8 = arith.constant 0 : index
    %c0_9 = arith.constant 0 : index
    %8 = vector.load %arg4[%c0_7, %c0_8, %c0_9] : memref<2x1x32xf32, #tpu.memory_space<vmem>>, vector<1x1x32xf32>
    %9 = vector.shape_cast %8 : vector<1x1x32xf32> to vector<1x32xf32>
    %c0_10 = arith.constant 0 : index
    %c0_11 = arith.constant 0 : index
    %c0_12 = arith.constant 0 : index
    %10 = vector.load %arg5[%c0_10, %c0_11, %c0_12] : memref<2x1x32xf32, #tpu.memory_space<vmem>>, vector<1x1x32xf32>
    %11 = vector.shape_cast %10 : vector<1x1x32xf32> to vector<1x32xf32>
    %cst_13 = arith.constant dense<0.000000e+00> : vector<32xf32>
    %12 = vector.multi_reduction <add>, %7, %cst_13 [1] : vector<32x32xf32> to vector<32xf32>
    %13 = vector.shape_cast %12 : vector<32xf32> to vector<32x1xf32>
    %cst_14 = arith.constant 3.200000e+01 : f32
    %14 = vector.broadcast %cst_14 : f32 to vector<32x1xf32>
    %15 = arith.divf %13, %14 : vector<32x1xf32>
    %16 = vector.broadcast %15 : vector<32x1xf32> to vector<32x32xf32>
    %17 = arith.subf %7, %16 : vector<32x32xf32>
    %18 = arith.mulf %17, %17 : vector<32x32xf32>
    %cst_15 = arith.constant dense<0.000000e+00> : vector<32xf32>
    %19 = vector.multi_reduction <add>, %18, %cst_15 [1] : vector<32x32xf32> to vector<32xf32>
    %20 = vector.shape_cast %19 : vector<32xf32> to vector<32x1xf32>
    %cst_16 = arith.constant 3.200000e+01 : f32
    %21 = vector.broadcast %cst_16 : f32 to vector<32x1xf32>
    %22 = arith.divf %20, %21 : vector<32x1xf32>
    %23 = vector.broadcast %15 : vector<32x1xf32> to vector<32x32xf32>
    %24 = arith.subf %7, %23 : vector<32x32xf32>
    %cst_17 = arith.constant 9.99999974E-6 : f32
    %25 = vector.broadcast %cst_17 : f32 to vector<32x1xf32>
    %26 = arith.addf %22, %25 : vector<32x1xf32>
    %27 = math.rsqrt %26 : vector<32x1xf32>
    %28 = vector.broadcast %27 : vector<32x1xf32> to vector<32x32xf32>
    %29 = arith.mulf %24, %28 : vector<32x32xf32>
    %30 = vector.broadcast %9 : vector<1x32xf32> to vector<32x32xf32>
    %31 = arith.mulf %29, %30 : vector<32x32xf32>
    %32 = vector.broadcast %11 : vector<1x32xf32> to vector<32x32xf32>
    %33 = arith.addf %31, %32 : vector<32x32xf32>
    %34 = arith.truncf %33 : vector<32x32xf32> to vector<32x32xbf16>
    %c0_18 = arith.constant 0 : index
    %c0_19 = arith.constant 0 : index
    %c0_20 = arith.constant 0 : index
    %c0_21 = arith.constant 0 : index
    %35 = vector.load %arg6[%c0_18, %c0_19, %c0_20, %c0_21] : memref<2x3x32x32xbf16, #tpu.memory_space<vmem>>, vector<1x1x32x32xbf16>
    %36 = vector.shape_cast %35 : vector<1x1x32x32xbf16> to vector<32x32xbf16>
    %cst_22 = arith.constant dense<0.000000e+00> : vector<32x32xf32>
    %37 = tpu.matmul %34, %36, %cst_22 {dimension_numbers = #tpu.dot_dimension_numbers<[1], [0], [0], [1], [0, 0, 1, 1], [], []>} : vector<32x32xbf16>, vector<32x32xbf16>, vector<32x32xf32> -> vector<32x32xf32>
    %c0_23 = arith.constant 0 : index
    %c0_24 = arith.constant 0 : index
    %c0_25 = arith.constant 0 : index
    %c0_26 = arith.constant 0 : index
    %38 = vector.load %arg7[%c0_23, %c0_24, %c0_25, %c0_26] : memref<2x3x1x32xf32, #tpu.memory_space<vmem>>, vector<1x1x1x32xf32>
    %39 = vector.shape_cast %38 : vector<1x1x1x32xf32> to vector<1x32xf32>
    %40 = vector.broadcast %39 : vector<1x32xf32> to vector<32x32xf32>
    %41 = arith.addf %37, %40 : vector<32x32xf32>
    %c0_27 = arith.constant 0 : index
    %c1 = arith.constant 1 : index
    %c0_28 = arith.constant 0 : index
    %c0_29 = arith.constant 0 : index
    %42 = vector.load %arg6[%c0_27, %c1, %c0_28, %c0_29] : memref<2x3x32x32xbf16, #tpu.memory_space<vmem>>, vector<1x1x32x32xbf16>
    %43 = vector.shape_cast %42 : vector<1x1x32x32xbf16> to vector<32x32xbf16>
    %cst_30 = arith.constant dense<0.000000e+00> : vector<32x32xf32>
    %44 = tpu.matmul %34, %43, %cst_30 {dimension_numbers = #tpu.dot_dimension_numbers<[1], [0], [0], [1], [0, 0, 1, 1], [], []>} : vector<32x32xbf16>, vector<32x32xbf16>, vector<32x32xf32> -> vector<32x32xf32>
    %c0_31 = arith.constant 0 : index
    %c1_32 = arith.constant 1 : index
    %c0_33 = arith.constant 0 : index
    %c0_34 = arith.constant 0 : index
    %45 = vector.load %arg7[%c0_31, %c1_32, %c0_33, %c0_34] : memref<2x3x1x32xf32, #tpu.memory_space<vmem>>, vector<1x1x1x32xf32>
    %46 = vector.shape_cast %45 : vector<1x1x1x32xf32> to vector<1x32xf32>
    %47 = vector.broadcast %46 : vector<1x32xf32> to vector<32x32xf32>
    %48 = arith.addf %44, %47 : vector<32x32xf32>
    %c0_35 = arith.constant 0 : index
    %c2 = arith.constant 2 : index
    %c0_36 = arith.constant 0 : index
    %c0_37 = arith.constant 0 : index
    %49 = vector.load %arg6[%c0_35, %c2, %c0_36, %c0_37] : memref<2x3x32x32xbf16, #tpu.memory_space<vmem>>, vector<1x1x32x32xbf16>
    %50 = vector.shape_cast %49 : vector<1x1x32x32xbf16> to vector<32x32xbf16>
    %cst_38 = arith.constant dense<0.000000e+00> : vector<32x32xf32>
    %51 = tpu.matmul %34, %50, %cst_38 {dimension_numbers = #tpu.dot_dimension_numbers<[1], [0], [0], [1], [0, 0, 1, 1], [], []>} : vector<32x32xbf16>, vector<32x32xbf16>, vector<32x32xf32> -> vector<32x32xf32>
    %c0_39 = arith.constant 0 : index
    %c2_40 = arith.constant 2 : index
    %c0_41 = arith.constant 0 : index
    %c0_42 = arith.constant 0 : index
    %52 = vector.load %arg7[%c0_39, %c2_40, %c0_41, %c0_42] : memref<2x3x1x32xf32, #tpu.memory_space<vmem>>, vector<1x1x1x32xf32>
    %53 = vector.shape_cast %52 : vector<1x1x1x32xf32> to vector<1x32xf32>
    %54 = vector.broadcast %53 : vector<1x32xf32> to vector<32x32xf32>
    %55 = arith.addf %51, %54 : vector<32x32xf32>
    %56 = vector.extract_strided_slice %41 {offsets = [0, 0], sizes = [16, 32], strides = [1, 1]} : vector<32x32xf32> to vector<16x32xf32>
    %57 = arith.truncf %56 : vector<16x32xf32> to vector<16x32xbf16>
    %58 = vector.extract_strided_slice %48 {offsets = [0, 0], sizes = [16, 32], strides = [1, 1]} : vector<32x32xf32> to vector<16x32xf32>
    %59 = arith.truncf %58 : vector<16x32xf32> to vector<16x32xbf16>
    %60 = vector.extract_strided_slice %55 {offsets = [0, 0], sizes = [16, 32], strides = [1, 1]} : vector<32x32xf32> to vector<16x32xf32>
    %61 = arith.truncf %60 : vector<16x32xf32> to vector<16x32xbf16>
    %cst_43 = arith.constant 0.000000e+00 : f32
    %62 = vector.broadcast %cst_43 : f32 to vector<16x32xf32>
    %63 = vector.extract_strided_slice %57 {offsets = [0, 0], sizes = [16, 8], strides = [1, 1]} : vector<16x32xbf16> to vector<16x8xbf16>
    %64 = vector.extract_strided_slice %59 {offsets = [0, 0], sizes = [16, 8], strides = [1, 1]} : vector<16x32xbf16> to vector<16x8xbf16>
    %65 = vector.extract_strided_slice %61 {offsets = [0, 0], sizes = [16, 8], strides = [1, 1]} : vector<16x32xbf16> to vector<16x8xbf16>
    %cst_44 = arith.constant dense<0.000000e+00> : vector<16x16xf32>
    %66 = tpu.matmul %63, %64, %cst_44 {dimension_numbers = #tpu.dot_dimension_numbers<[1], [1], [0], [0], [0, 0, 1, 0], [], []>} : vector<16x8xbf16>, vector<16x8xbf16>, vector<16x16xf32> -> vector<16x16xf32>
    %cst_45 = arith.constant 0.353553385 : f32
    %67 = vector.broadcast %cst_45 : f32 to vector<16x16xf32>
    %68 = arith.mulf %66, %67 : vector<16x16xf32>
    %cst_46 = arith.constant dense<0xFF800000> : vector<16xf32>
    %69 = vector.multi_reduction <maximumf>, %68, %cst_46 [1] : vector<16x16xf32> to vector<16xf32>
    %70 = vector.shape_cast %69 : vector<16xf32> to vector<16x1xf32>
    %71 = vector.broadcast %70 : vector<16x1xf32> to vector<16x16xf32>
    %72 = arith.subf %68, %71 : vector<16x16xf32>
    %73 = math.exp %72 : vector<16x16xf32>
    %cst_47 = arith.constant dense<0.000000e+00> : vector<16xf32>
    %74 = vector.multi_reduction <add>, %73, %cst_47 [1] : vector<16x16xf32> to vector<16xf32>
    %75 = vector.shape_cast %74 : vector<16xf32> to vector<16x1xf32>
    %76 = tpu.reciprocal %75 {approx = true} : vector<16x1xf32> -> vector<16x1xf32>
    %77 = vector.broadcast %76 : vector<16x1xf32> to vector<16x16xf32>
    %78 = arith.mulf %73, %77 : vector<16x16xf32>
    %79 = arith.truncf %78 : vector<16x16xf32> to vector<16x16xbf16>
    %cst_48 = arith.constant dense<0.000000e+00> : vector<16x8xf32>
    %80 = tpu.matmul %79, %65, %cst_48 {dimension_numbers = #tpu.dot_dimension_numbers<[1], [0], [0], [1], [0, 0, 1, 1], [], []>} : vector<16x16xbf16>, vector<16x8xbf16>, vector<16x8xf32> -> vector<16x8xf32>
    %81 = arith.truncf %80 : vector<16x8xf32> to vector<16x8xbf16>
    %c0_49 = arith.constant 0 : index
    %c0_50 = arith.constant 0 : index
    %c0_51 = arith.constant 0 : index
    %c0_52 = arith.constant 0 : index
    %82 = vector.load %arg8[%c0_49, %c0_50, %c0_51, %c0_52] : memref<2x4x8x32xbf16, #tpu.memory_space<vmem>>, vector<1x1x8x32xbf16>
    %83 = vector.shape_cast %82 : vector<1x1x8x32xbf16> to vector<8x32xbf16>
    %cst_53 = arith.constant dense<0.000000e+00> : vector<16x32xf32>
    %84 = tpu.matmul %81, %83, %cst_53 {dimension_numbers = #tpu.dot_dimension_numbers<[1], [0], [0], [1], [0, 0, 1, 1], [], []>} : vector<16x8xbf16>, vector<8x32xbf16>, vector<16x32xf32> -> vector<16x32xf32>
    %85 = arith.addf %62, %84 : vector<16x32xf32>
    %86 = vector.extract_strided_slice %57 {offsets = [0, 8], sizes = [16, 8], strides = [1, 1]} : vector<16x32xbf16> to vector<16x8xbf16>
    %87 = vector.extract_strided_slice %59 {offsets = [0, 8], sizes = [16, 8], strides = [1, 1]} : vector<16x32xbf16> to vector<16x8xbf16>
    %88 = vector.extract_strided_slice %61 {offsets = [0, 8], sizes = [16, 8], strides = [1, 1]} : vector<16x32xbf16> to vector<16x8xbf16>
    %cst_54 = arith.constant dense<0.000000e+00> : vector<16x16xf32>
    %89 = tpu.matmul %86, %87, %cst_54 {dimension_numbers = #tpu.dot_dimension_numbers<[1], [1], [0], [0], [0, 0, 1, 0], [], []>} : vector<16x8xbf16>, vector<16x8xbf16>, vector<16x16xf32> -> vector<16x16xf32>
    %cst_55 = arith.constant 0.353553385 : f32
    %90 = vector.broadcast %cst_55 : f32 to vector<16x16xf32>
    %91 = arith.mulf %89, %90 : vector<16x16xf32>
    %cst_56 = arith.constant dense<0xFF800000> : vector<16xf32>
    %92 = vector.multi_reduction <maximumf>, %91, %cst_56 [1] : vector<16x16xf32> to vector<16xf32>
    %93 = vector.shape_cast %92 : vector<16xf32> to vector<16x1xf32>
    %94 = vector.broadcast %93 : vector<16x1xf32> to vector<16x16xf32>
    %95 = arith.subf %91, %94 : vector<16x16xf32>
    %96 = math.exp %95 : vector<16x16xf32>
    %cst_57 = arith.constant dense<0.000000e+00> : vector<16xf32>
    %97 = vector.multi_reduction <add>, %96, %cst_57 [1] : vector<16x16xf32> to vector<16xf32>
    %98 = vector.shape_cast %97 : vector<16xf32> to vector<16x1xf32>
    %99 = tpu.reciprocal %98 {approx = true} : vector<16x1xf32> -> vector<16x1xf32>
    %100 = vector.broadcast %99 : vector<16x1xf32> to vector<16x16xf32>
    %101 = arith.mulf %96, %100 : vector<16x16xf32>
    %102 = arith.truncf %101 : vector<16x16xf32> to vector<16x16xbf16>
    %cst_58 = arith.constant dense<0.000000e+00> : vector<16x8xf32>
    %103 = tpu.matmul %102, %88, %cst_58 {dimension_numbers = #tpu.dot_dimension_numbers<[1], [0], [0], [1], [0, 0, 1, 1], [], []>} : vector<16x16xbf16>, vector<16x8xbf16>, vector<16x8xf32> -> vector<16x8xf32>
    %104 = arith.truncf %103 : vector<16x8xf32> to vector<16x8xbf16>
    %c0_59 = arith.constant 0 : index
    %c1_60 = arith.constant 1 : index
    %c0_61 = arith.constant 0 : index
    %c0_62 = arith.constant 0 : index
    %105 = vector.load %arg8[%c0_59, %c1_60, %c0_61, %c0_62] : memref<2x4x8x32xbf16, #tpu.memory_space<vmem>>, vector<1x1x8x32xbf16>
    %106 = vector.shape_cast %105 : vector<1x1x8x32xbf16> to vector<8x32xbf16>
    %cst_63 = arith.constant dense<0.000000e+00> : vector<16x32xf32>
    %107 = tpu.matmul %104, %106, %cst_63 {dimension_numbers = #tpu.dot_dimension_numbers<[1], [0], [0], [1], [0, 0, 1, 1], [], []>} : vector<16x8xbf16>, vector<8x32xbf16>, vector<16x32xf32> -> vector<16x32xf32>
    %108 = arith.addf %85, %107 : vector<16x32xf32>
    %109 = vector.extract_strided_slice %57 {offsets = [0, 16], sizes = [16, 8], strides = [1, 1]} : vector<16x32xbf16> to vector<16x8xbf16>
    %110 = vector.extract_strided_slice %59 {offsets = [0, 16], sizes = [16, 8], strides = [1, 1]} : vector<16x32xbf16> to vector<16x8xbf16>
    %111 = vector.extract_strided_slice %61 {offsets = [0, 16], sizes = [16, 8], strides = [1, 1]} : vector<16x32xbf16> to vector<16x8xbf16>
    %cst_64 = arith.constant dense<0.000000e+00> : vector<16x16xf32>
    %112 = tpu.matmul %109, %110, %cst_64 {dimension_numbers = #tpu.dot_dimension_numbers<[1], [1], [0], [0], [0, 0, 1, 0], [], []>} : vector<16x8xbf16>, vector<16x8xbf16>, vector<16x16xf32> -> vector<16x16xf32>
    %cst_65 = arith.constant 0.353553385 : f32
    %113 = vector.broadcast %cst_65 : f32 to vector<16x16xf32>
    %114 = arith.mulf %112, %113 : vector<16x16xf32>
    %cst_66 = arith.constant dense<0xFF800000> : vector<16xf32>
    %115 = vector.multi_reduction <maximumf>, %114, %cst_66 [1] : vector<16x16xf32> to vector<16xf32>
    %116 = vector.shape_cast %115 : vector<16xf32> to vector<16x1xf32>
    %117 = vector.broadcast %116 : vector<16x1xf32> to vector<16x16xf32>
    %118 = arith.subf %114, %117 : vector<16x16xf32>
    %119 = math.exp %118 : vector<16x16xf32>
    %cst_67 = arith.constant dense<0.000000e+00> : vector<16xf32>
    %120 = vector.multi_reduction <add>, %119, %cst_67 [1] : vector<16x16xf32> to vector<16xf32>
    %121 = vector.shape_cast %120 : vector<16xf32> to vector<16x1xf32>
    %122 = tpu.reciprocal %121 {approx = true} : vector<16x1xf32> -> vector<16x1xf32>
    %123 = vector.broadcast %122 : vector<16x1xf32> to vector<16x16xf32>
    %124 = arith.mulf %119, %123 : vector<16x16xf32>
    %125 = arith.truncf %124 : vector<16x16xf32> to vector<16x16xbf16>
    %cst_68 = arith.constant dense<0.000000e+00> : vector<16x8xf32>
    %126 = tpu.matmul %125, %111, %cst_68 {dimension_numbers = #tpu.dot_dimension_numbers<[1], [0], [0], [1], [0, 0, 1, 1], [], []>} : vector<16x16xbf16>, vector<16x8xbf16>, vector<16x8xf32> -> vector<16x8xf32>
    %127 = arith.truncf %126 : vector<16x8xf32> to vector<16x8xbf16>
    %c0_69 = arith.constant 0 : index
    %c2_70 = arith.constant 2 : index
    %c0_71 = arith.constant 0 : index
    %c0_72 = arith.constant 0 : index
    %128 = vector.load %arg8[%c0_69, %c2_70, %c0_71, %c0_72] : memref<2x4x8x32xbf16, #tpu.memory_space<vmem>>, vector<1x1x8x32xbf16>
    %129 = vector.shape_cast %128 : vector<1x1x8x32xbf16> to vector<8x32xbf16>
    %cst_73 = arith.constant dense<0.000000e+00> : vector<16x32xf32>
    %130 = tpu.matmul %127, %129, %cst_73 {dimension_numbers = #tpu.dot_dimension_numbers<[1], [0], [0], [1], [0, 0, 1, 1], [], []>} : vector<16x8xbf16>, vector<8x32xbf16>, vector<16x32xf32> -> vector<16x32xf32>
    %131 = arith.addf %108, %130 : vector<16x32xf32>
    %132 = vector.extract_strided_slice %57 {offsets = [0, 24], sizes = [16, 8], strides = [1, 1]} : vector<16x32xbf16> to vector<16x8xbf16>
    %133 = vector.extract_strided_slice %59 {offsets = [0, 24], sizes = [16, 8], strides = [1, 1]} : vector<16x32xbf16> to vector<16x8xbf16>
    %134 = vector.extract_strided_slice %61 {offsets = [0, 24], sizes = [16, 8], strides = [1, 1]} : vector<16x32xbf16> to vector<16x8xbf16>
    %cst_74 = arith.constant dense<0.000000e+00> : vector<16x16xf32>
    %135 = tpu.matmul %132, %133, %cst_74 {dimension_numbers = #tpu.dot_dimension_numbers<[1], [1], [0], [0], [0, 0, 1, 0], [], []>} : vector<16x8xbf16>, vector<16x8xbf16>, vector<16x16xf32> -> vector<16x16xf32>
    %cst_75 = arith.constant 0.353553385 : f32
    %136 = vector.broadcast %cst_75 : f32 to vector<16x16xf32>
    %137 = arith.mulf %135, %136 : vector<16x16xf32>
    %cst_76 = arith.constant dense<0xFF800000> : vector<16xf32>
    %138 = vector.multi_reduction <maximumf>, %137, %cst_76 [1] : vector<16x16xf32> to vector<16xf32>
    %139 = vector.shape_cast %138 : vector<16xf32> to vector<16x1xf32>
    %140 = vector.broadcast %139 : vector<16x1xf32> to vector<16x16xf32>
    %141 = arith.subf %137, %140 : vector<16x16xf32>
    %142 = math.exp %141 : vector<16x16xf32>
    %cst_77 = arith.constant dense<0.000000e+00> : vector<16xf32>
    %143 = vector.multi_reduction <add>, %142, %cst_77 [1] : vector<16x16xf32> to vector<16xf32>
    %144 = vector.shape_cast %143 : vector<16xf32> to vector<16x1xf32>
    %145 = tpu.reciprocal %144 {approx = true} : vector<16x1xf32> -> vector<16x1xf32>
    %146 = vector.broadcast %145 : vector<16x1xf32> to vector<16x16xf32>
    %147 = arith.mulf %142, %146 : vector<16x16xf32>
    %148 = arith.truncf %147 : vector<16x16xf32> to vector<16x16xbf16>
    %cst_78 = arith.constant dense<0.000000e+00> : vector<16x8xf32>
    %149 = tpu.matmul %148, %134, %cst_78 {dimension_numbers = #tpu.dot_dimension_numbers<[1], [0], [0], [1], [0, 0, 1, 1], [], []>} : vector<16x16xbf16>, vector<16x8xbf16>, vector<16x8xf32> -> vector<16x8xf32>
    %150 = arith.truncf %149 : vector<16x8xf32> to vector<16x8xbf16>
    %c0_79 = arith.constant 0 : index
    %c3 = arith.constant 3 : index
    %c0_80 = arith.constant 0 : index
    %c0_81 = arith.constant 0 : index
    %151 = vector.load %arg8[%c0_79, %c3, %c0_80, %c0_81] : memref<2x4x8x32xbf16, #tpu.memory_space<vmem>>, vector<1x1x8x32xbf16>
    %152 = vector.shape_cast %151 : vector<1x1x8x32xbf16> to vector<8x32xbf16>
    %cst_82 = arith.constant dense<0.000000e+00> : vector<16x32xf32>
    %153 = tpu.matmul %150, %152, %cst_82 {dimension_numbers = #tpu.dot_dimension_numbers<[1], [0], [0], [1], [0, 0, 1, 1], [], []>} : vector<16x8xbf16>, vector<8x32xbf16>, vector<16x32xf32> -> vector<16x32xf32>
    %154 = arith.addf %131, %153 : vector<16x32xf32>
    %155 = vector.extract_strided_slice %41 {offsets = [16, 0], sizes = [16, 32], strides = [1, 1]} : vector<32x32xf32> to vector<16x32xf32>
    %156 = arith.truncf %155 : vector<16x32xf32> to vector<16x32xbf16>
    %157 = vector.extract_strided_slice %48 {offsets = [16, 0], sizes = [16, 32], strides = [1, 1]} : vector<32x32xf32> to vector<16x32xf32>
    %158 = arith.truncf %157 : vector<16x32xf32> to vector<16x32xbf16>
    %159 = vector.extract_strided_slice %55 {offsets = [16, 0], sizes = [16, 32], strides = [1, 1]} : vector<32x32xf32> to vector<16x32xf32>
    %160 = arith.truncf %159 : vector<16x32xf32> to vector<16x32xbf16>
    %cst_83 = arith.constant 0.000000e+00 : f32
    %161 = vector.broadcast %cst_83 : f32 to vector<16x32xf32>
    %162 = vector.extract_strided_slice %156 {offsets = [0, 0], sizes = [16, 8], strides = [1, 1]} : vector<16x32xbf16> to vector<16x8xbf16>
    %163 = vector.extract_strided_slice %158 {offsets = [0, 0], sizes = [16, 8], strides = [1, 1]} : vector<16x32xbf16> to vector<16x8xbf16>
    %164 = vector.extract_strided_slice %160 {offsets = [0, 0], sizes = [16, 8], strides = [1, 1]} : vector<16x32xbf16> to vector<16x8xbf16>
    %cst_84 = arith.constant dense<0.000000e+00> : vector<16x16xf32>
    %165 = tpu.matmul %162, %163, %cst_84 {dimension_numbers = #tpu.dot_dimension_numbers<[1], [1], [0], [0], [0, 0, 1, 0], [], []>} : vector<16x8xbf16>, vector<16x8xbf16>, vector<16x16xf32> -> vector<16x16xf32>
    %cst_85 = arith.constant 0.353553385 : f32
    %166 = vector.broadcast %cst_85 : f32 to vector<16x16xf32>
    %167 = arith.mulf %165, %166 : vector<16x16xf32>
    %cst_86 = arith.constant dense<0xFF800000> : vector<16xf32>
    %168 = vector.multi_reduction <maximumf>, %167, %cst_86 [1] : vector<16x16xf32> to vector<16xf32>
    %169 = vector.shape_cast %168 : vector<16xf32> to vector<16x1xf32>
    %170 = vector.broadcast %169 : vector<16x1xf32> to vector<16x16xf32>
    %171 = arith.subf %167, %170 : vector<16x16xf32>
    %172 = math.exp %171 : vector<16x16xf32>
    %cst_87 = arith.constant dense<0.000000e+00> : vector<16xf32>
    %173 = vector.multi_reduction <add>, %172, %cst_87 [1] : vector<16x16xf32> to vector<16xf32>
    %174 = vector.shape_cast %173 : vector<16xf32> to vector<16x1xf32>
    %175 = tpu.reciprocal %174 {approx = true} : vector<16x1xf32> -> vector<16x1xf32>
    %176 = vector.broadcast %175 : vector<16x1xf32> to vector<16x16xf32>
    %177 = arith.mulf %172, %176 : vector<16x16xf32>
    %178 = arith.truncf %177 : vector<16x16xf32> to vector<16x16xbf16>
    %cst_88 = arith.constant dense<0.000000e+00> : vector<16x8xf32>
    %179 = tpu.matmul %178, %164, %cst_88 {dimension_numbers = #tpu.dot_dimension_numbers<[1], [0], [0], [1], [0, 0, 1, 1], [], []>} : vector<16x16xbf16>, vector<16x8xbf16>, vector<16x8xf32> -> vector<16x8xf32>
    %180 = arith.truncf %179 : vector<16x8xf32> to vector<16x8xbf16>
    %c0_89 = arith.constant 0 : index
    %c0_90 = arith.constant 0 : index
    %c0_91 = arith.constant 0 : index
    %c0_92 = arith.constant 0 : index
    %181 = vector.load %arg8[%c0_89, %c0_90, %c0_91, %c0_92] : memref<2x4x8x32xbf16, #tpu.memory_space<vmem>>, vector<1x1x8x32xbf16>
    %182 = vector.shape_cast %181 : vector<1x1x8x32xbf16> to vector<8x32xbf16>
    %cst_93 = arith.constant dense<0.000000e+00> : vector<16x32xf32>
    %183 = tpu.matmul %180, %182, %cst_93 {dimension_numbers = #tpu.dot_dimension_numbers<[1], [0], [0], [1], [0, 0, 1, 1], [], []>} : vector<16x8xbf16>, vector<8x32xbf16>, vector<16x32xf32> -> vector<16x32xf32>
    %184 = arith.addf %161, %183 : vector<16x32xf32>
    %185 = vector.extract_strided_slice %156 {offsets = [0, 8], sizes = [16, 8], strides = [1, 1]} : vector<16x32xbf16> to vector<16x8xbf16>
    %186 = vector.extract_strided_slice %158 {offsets = [0, 8], sizes = [16, 8], strides = [1, 1]} : vector<16x32xbf16> to vector<16x8xbf16>
    %187 = vector.extract_strided_slice %160 {offsets = [0, 8], sizes = [16, 8], strides = [1, 1]} : vector<16x32xbf16> to vector<16x8xbf16>
    %cst_94 = arith.constant dense<0.000000e+00> : vector<16x16xf32>
    %188 = tpu.matmul %185, %186, %cst_94 {dimension_numbers = #tpu.dot_dimension_numbers<[1], [1], [0], [0], [0, 0, 1, 0], [], []>} : vector<16x8xbf16>, vector<16x8xbf16>, vector<16x16xf32> -> vector<16x16xf32>
    %cst_95 = arith.constant 0.353553385 : f32
    %189 = vector.broadcast %cst_95 : f32 to vector<16x16xf32>
    %190 = arith.mulf %188, %189 : vector<16x16xf32>
    %cst_96 = arith.constant dense<0xFF800000> : vector<16xf32>
    %191 = vector.multi_reduction <maximumf>, %190, %cst_96 [1] : vector<16x16xf32> to vector<16xf32>
    %192 = vector.shape_cast %191 : vector<16xf32> to vector<16x1xf32>
    %193 = vector.broadcast %192 : vector<16x1xf32> to vector<16x16xf32>
    %194 = arith.subf %190, %193 : vector<16x16xf32>
    %195 = math.exp %194 : vector<16x16xf32>
    %cst_97 = arith.constant dense<0.000000e+00> : vector<16xf32>
    %196 = vector.multi_reduction <add>, %195, %cst_97 [1] : vector<16x16xf32> to vector<16xf32>
    %197 = vector.shape_cast %196 : vector<16xf32> to vector<16x1xf32>
    %198 = tpu.reciprocal %197 {approx = true} : vector<16x1xf32> -> vector<16x1xf32>
    %199 = vector.broadcast %198 : vector<16x1xf32> to vector<16x16xf32>
    %200 = arith.mulf %195, %199 : vector<16x16xf32>
    %201 = arith.truncf %200 : vector<16x16xf32> to vector<16x16xbf16>
    %cst_98 = arith.constant dense<0.000000e+00> : vector<16x8xf32>
    %202 = tpu.matmul %201, %187, %cst_98 {dimension_numbers = #tpu.dot_dimension_numbers<[1], [0], [0], [1], [0, 0, 1, 1], [], []>} : vector<16x16xbf16>, vector<16x8xbf16>, vector<16x8xf32> -> vector<16x8xf32>
    %203 = arith.truncf %202 : vector<16x8xf32> to vector<16x8xbf16>
    %c0_99 = arith.constant 0 : index
    %c1_100 = arith.constant 1 : index
    %c0_101 = arith.constant 0 : index
    %c0_102 = arith.constant 0 : index
    %204 = vector.load %arg8[%c0_99, %c1_100, %c0_101, %c0_102] : memref<2x4x8x32xbf16, #tpu.memory_space<vmem>>, vector<1x1x8x32xbf16>
    %205 = vector.shape_cast %204 : vector<1x1x8x32xbf16> to vector<8x32xbf16>
    %cst_103 = arith.constant dense<0.000000e+00> : vector<16x32xf32>
    %206 = tpu.matmul %203, %205, %cst_103 {dimension_numbers = #tpu.dot_dimension_numbers<[1], [0], [0], [1], [0, 0, 1, 1], [], []>} : vector<16x8xbf16>, vector<8x32xbf16>, vector<16x32xf32> -> vector<16x32xf32>
    %207 = arith.addf %184, %206 : vector<16x32xf32>
    %208 = vector.extract_strided_slice %156 {offsets = [0, 16], sizes = [16, 8], strides = [1, 1]} : vector<16x32xbf16> to vector<16x8xbf16>
    %209 = vector.extract_strided_slice %158 {offsets = [0, 16], sizes = [16, 8], strides = [1, 1]} : vector<16x32xbf16> to vector<16x8xbf16>
    %210 = vector.extract_strided_slice %160 {offsets = [0, 16], sizes = [16, 8], strides = [1, 1]} : vector<16x32xbf16> to vector<16x8xbf16>
    %cst_104 = arith.constant dense<0.000000e+00> : vector<16x16xf32>
    %211 = tpu.matmul %208, %209, %cst_104 {dimension_numbers = #tpu.dot_dimension_numbers<[1], [1], [0], [0], [0, 0, 1, 0], [], []>} : vector<16x8xbf16>, vector<16x8xbf16>, vector<16x16xf32> -> vector<16x16xf32>
    %cst_105 = arith.constant 0.353553385 : f32
    %212 = vector.broadcast %cst_105 : f32 to vector<16x16xf32>
    %213 = arith.mulf %211, %212 : vector<16x16xf32>
    %cst_106 = arith.constant dense<0xFF800000> : vector<16xf32>
    %214 = vector.multi_reduction <maximumf>, %213, %cst_106 [1] : vector<16x16xf32> to vector<16xf32>
    %215 = vector.shape_cast %214 : vector<16xf32> to vector<16x1xf32>
    %216 = vector.broadcast %215 : vector<16x1xf32> to vector<16x16xf32>
    %217 = arith.subf %213, %216 : vector<16x16xf32>
    %218 = math.exp %217 : vector<16x16xf32>
    %cst_107 = arith.constant dense<0.000000e+00> : vector<16xf32>
    %219 = vector.multi_reduction <add>, %218, %cst_107 [1] : vector<16x16xf32> to vector<16xf32>
    %220 = vector.shape_cast %219 : vector<16xf32> to vector<16x1xf32>
    %221 = tpu.reciprocal %220 {approx = true} : vector<16x1xf32> -> vector<16x1xf32>
    %222 = vector.broadcast %221 : vector<16x1xf32> to vector<16x16xf32>
    %223 = arith.mulf %218, %222 : vector<16x16xf32>
    %224 = arith.truncf %223 : vector<16x16xf32> to vector<16x16xbf16>
    %cst_108 = arith.constant dense<0.000000e+00> : vector<16x8xf32>
    %225 = tpu.matmul %224, %210, %cst_108 {dimension_numbers = #tpu.dot_dimension_numbers<[1], [0], [0], [1], [0, 0, 1, 1], [], []>} : vector<16x16xbf16>, vector<16x8xbf16>, vector<16x8xf32> -> vector<16x8xf32>
    %226 = arith.truncf %225 : vector<16x8xf32> to vector<16x8xbf16>
    %c0_109 = arith.constant 0 : index
    %c2_110 = arith.constant 2 : index
    %c0_111 = arith.constant 0 : index
    %c0_112 = arith.constant 0 : index
    %227 = vector.load %arg8[%c0_109, %c2_110, %c0_111, %c0_112] : memref<2x4x8x32xbf16, #tpu.memory_space<vmem>>, vector<1x1x8x32xbf16>
    %228 = vector.shape_cast %227 : vector<1x1x8x32xbf16> to vector<8x32xbf16>
    %cst_113 = arith.constant dense<0.000000e+00> : vector<16x32xf32>
    %229 = tpu.matmul %226, %228, %cst_113 {dimension_numbers = #tpu.dot_dimension_numbers<[1], [0], [0], [1], [0, 0, 1, 1], [], []>} : vector<16x8xbf16>, vector<8x32xbf16>, vector<16x32xf32> -> vector<16x32xf32>
    %230 = arith.addf %207, %229 : vector<16x32xf32>
    %231 = vector.extract_strided_slice %156 {offsets = [0, 24], sizes = [16, 8], strides = [1, 1]} : vector<16x32xbf16> to vector<16x8xbf16>
    %232 = vector.extract_strided_slice %158 {offsets = [0, 24], sizes = [16, 8], strides = [1, 1]} : vector<16x32xbf16> to vector<16x8xbf16>
    %233 = vector.extract_strided_slice %160 {offsets = [0, 24], sizes = [16, 8], strides = [1, 1]} : vector<16x32xbf16> to vector<16x8xbf16>
    %cst_114 = arith.constant dense<0.000000e+00> : vector<16x16xf32>
    %234 = tpu.matmul %231, %232, %cst_114 {dimension_numbers = #tpu.dot_dimension_numbers<[1], [1], [0], [0], [0, 0, 1, 0], [], []>} : vector<16x8xbf16>, vector<16x8xbf16>, vector<16x16xf32> -> vector<16x16xf32>
    %cst_115 = arith.constant 0.353553385 : f32
    %235 = vector.broadcast %cst_115 : f32 to vector<16x16xf32>
    %236 = arith.mulf %234, %235 : vector<16x16xf32>
    %cst_116 = arith.constant dense<0xFF800000> : vector<16xf32>
    %237 = vector.multi_reduction <maximumf>, %236, %cst_116 [1] : vector<16x16xf32> to vector<16xf32>
    %238 = vector.shape_cast %237 : vector<16xf32> to vector<16x1xf32>
    %239 = vector.broadcast %238 : vector<16x1xf32> to vector<16x16xf32>
    %240 = arith.subf %236, %239 : vector<16x16xf32>
    %241 = math.exp %240 : vector<16x16xf32>
    %cst_117 = arith.constant dense<0.000000e+00> : vector<16xf32>
    %242 = vector.multi_reduction <add>, %241, %cst_117 [1] : vector<16x16xf32> to vector<16xf32>
    %243 = vector.shape_cast %242 : vector<16xf32> to vector<16x1xf32>
    %244 = tpu.reciprocal %243 {approx = true} : vector<16x1xf32> -> vector<16x1xf32>
    %245 = vector.broadcast %244 : vector<16x1xf32> to vector<16x16xf32>
    %246 = arith.mulf %241, %245 : vector<16x16xf32>
    %247 = arith.truncf %246 : vector<16x16xf32> to vector<16x16xbf16>
    %cst_118 = arith.constant dense<0.000000e+00> : vector<16x8xf32>
    %248 = tpu.matmul %247, %233, %cst_118 {dimension_numbers = #tpu.dot_dimension_numbers<[1], [0], [0], [1], [0, 0, 1, 1], [], []>} : vector<16x16xbf16>, vector<16x8xbf16>, vector<16x8xf32> -> vector<16x8xf32>
    %249 = arith.truncf %248 : vector<16x8xf32> to vector<16x8xbf16>
    %c0_119 = arith.constant 0 : index
    %c3_120 = arith.constant 3 : index
    %c0_121 = arith.constant 0 : index
    %c0_122 = arith.constant 0 : index
    %250 = vector.load %arg8[%c0_119, %c3_120, %c0_121, %c0_122] : memref<2x4x8x32xbf16, #tpu.memory_space<vmem>>, vector<1x1x8x32xbf16>
    %251 = vector.shape_cast %250 : vector<1x1x8x32xbf16> to vector<8x32xbf16>
    %cst_123 = arith.constant dense<0.000000e+00> : vector<16x32xf32>
    %252 = tpu.matmul %249, %251, %cst_123 {dimension_numbers = #tpu.dot_dimension_numbers<[1], [0], [0], [1], [0, 0, 1, 1], [], []>} : vector<16x8xbf16>, vector<8x32xbf16>, vector<16x32xf32> -> vector<16x32xf32>
    %253 = arith.addf %230, %252 : vector<16x32xf32>
    %254 = tpu.concatenate %154, %253 in 0 : vector<16x32xf32>, vector<16x32xf32> -> vector<32x32xf32>
    %c0_124 = arith.constant 0 : index
    %c0_125 = arith.constant 0 : index
    %c0_126 = arith.constant 0 : index
    %255 = vector.load %arg9[%c0_124, %c0_125, %c0_126] : memref<2x1x32xf32, #tpu.memory_space<vmem>>, vector<1x1x32xf32>
    %256 = vector.shape_cast %255 : vector<1x1x32xf32> to vector<1x32xf32>
    %257 = vector.broadcast %256 : vector<1x32xf32> to vector<32x32xf32>
    %258 = arith.addf %254, %257 : vector<32x32xf32>
    %259 = arith.addf %7, %258 : vector<32x32xf32>
    %c0_127 = arith.constant 0 : index
    %c0_128 = arith.constant 0 : index
    %c0_129 = arith.constant 0 : index
    %260 = vector.load %arg10[%c0_127, %c0_128, %c0_129] : memref<2x1x32xf32, #tpu.memory_space<vmem>>, vector<1x1x32xf32>
    %261 = vector.shape_cast %260 : vector<1x1x32xf32> to vector<1x32xf32>
    %c0_130 = arith.constant 0 : index
    %c0_131 = arith.constant 0 : index
    %c0_132 = arith.constant 0 : index
    %262 = vector.load %arg11[%c0_130, %c0_131, %c0_132] : memref<2x1x32xf32, #tpu.memory_space<vmem>>, vector<1x1x32xf32>
    %263 = vector.shape_cast %262 : vector<1x1x32xf32> to vector<1x32xf32>
    %cst_133 = arith.constant dense<0.000000e+00> : vector<32xf32>
    %264 = vector.multi_reduction <add>, %259, %cst_133 [1] : vector<32x32xf32> to vector<32xf32>
    %265 = vector.shape_cast %264 : vector<32xf32> to vector<32x1xf32>
    %cst_134 = arith.constant 3.200000e+01 : f32
    %266 = vector.broadcast %cst_134 : f32 to vector<32x1xf32>
    %267 = arith.divf %265, %266 : vector<32x1xf32>
    %268 = vector.broadcast %267 : vector<32x1xf32> to vector<32x32xf32>
    %269 = arith.subf %259, %268 : vector<32x32xf32>
    %270 = arith.mulf %269, %269 : vector<32x32xf32>
    %cst_135 = arith.constant dense<0.000000e+00> : vector<32xf32>
    %271 = vector.multi_reduction <add>, %270, %cst_135 [1] : vector<32x32xf32> to vector<32xf32>
    %272 = vector.shape_cast %271 : vector<32xf32> to vector<32x1xf32>
    %cst_136 = arith.constant 3.200000e+01 : f32
    %273 = vector.broadcast %cst_136 : f32 to vector<32x1xf32>
    %274 = arith.divf %272, %273 : vector<32x1xf32>
    %275 = vector.broadcast %267 : vector<32x1xf32> to vector<32x32xf32>
    %276 = arith.subf %259, %275 : vector<32x32xf32>
    %cst_137 = arith.constant 9.99999974E-6 : f32
    %277 = vector.broadcast %cst_137 : f32 to vector<32x1xf32>
    %278 = arith.addf %274, %277 : vector<32x1xf32>
    %279 = math.rsqrt %278 : vector<32x1xf32>
    %280 = vector.broadcast %279 : vector<32x1xf32> to vector<32x32xf32>
    %281 = arith.mulf %276, %280 : vector<32x32xf32>
    %282 = vector.broadcast %261 : vector<1x32xf32> to vector<32x32xf32>
    %283 = arith.mulf %281, %282 : vector<32x32xf32>
    %284 = vector.broadcast %263 : vector<1x32xf32> to vector<32x32xf32>
    %285 = arith.addf %283, %284 : vector<32x32xf32>
    %286 = arith.truncf %285 : vector<32x32xf32> to vector<32x32xbf16>
    %c0_138 = arith.constant 0 : index
    %c0_139 = arith.constant 0 : index
    %c0_140 = arith.constant 0 : index
    %287 = vector.load %arg12[%c0_138, %c0_139, %c0_140] : memref<2x32x128xbf16, #tpu.memory_space<vmem>>, vector<1x32x128xbf16>
    %288 = vector.shape_cast %287 : vector<1x32x128xbf16> to vector<32x128xbf16>
    %cst_141 = arith.constant dense<0.000000e+00> : vector<32x128xf32>
    %289 = tpu.matmul %286, %288, %cst_141 {dimension_numbers = #tpu.dot_dimension_numbers<[1], [0], [0], [1], [0, 0, 1, 1], [], []>} : vector<32x32xbf16>, vector<32x128xbf16>, vector<32x128xf32> -> vector<32x128xf32>
    %c0_142 = arith.constant 0 : index
    %c0_143 = arith.constant 0 : index
    %c0_144 = arith.constant 0 : index
    %290 = vector.load %arg13[%c0_142, %c0_143, %c0_144] : memref<2x1x128xf32, #tpu.memory_space<vmem>>, vector<1x1x128xf32>
    %291 = vector.shape_cast %290 : vector<1x1x128xf32> to vector<1x128xf32>
    %292 = vector.broadcast %291 : vector<1x128xf32> to vector<32x128xf32>
    %293 = arith.addf %289, %292 : vector<32x128xf32>
    %294 = arith.mulf %293, %293 : vector<32x128xf32>
    %295 = arith.mulf %293, %294 : vector<32x128xf32>
    %cst_145 = arith.constant 4.471500e-02 : f32
    %296 = vector.broadcast %cst_145 : f32 to vector<32x128xf32>
    %297 = arith.mulf %296, %295 : vector<32x128xf32>
    %298 = arith.addf %293, %297 : vector<32x128xf32>
    %cst_146 = arith.constant 0.797884583 : f32
    %299 = vector.broadcast %cst_146 : f32 to vector<32x128xf32>
    %300 = arith.mulf %299, %298 : vector<32x128xf32>
    %301 = math.tanh %300 : vector<32x128xf32>
    %cst_147 = arith.constant 1.000000e+00 : f32
    %302 = vector.broadcast %cst_147 : f32 to vector<32x128xf32>
    %303 = arith.addf %302, %301 : vector<32x128xf32>
    %cst_148 = arith.constant 5.000000e-01 : f32
    %304 = vector.broadcast %cst_148 : f32 to vector<32x128xf32>
    %305 = arith.mulf %304, %303 : vector<32x128xf32>
    %306 = arith.mulf %293, %305 : vector<32x128xf32>
    %307 = arith.truncf %306 : vector<32x128xf32> to vector<32x128xbf16>
    %c0_149 = arith.constant 0 : index
    %c0_150 = arith.constant 0 : index
    %c0_151 = arith.constant 0 : index
    %308 = vector.load %arg14[%c0_149, %c0_150, %c0_151] : memref<2x128x32xbf16, #tpu.memory_space<vmem>>, vector<1x128x32xbf16>
    %309 = vector.shape_cast %308 : vector<1x128x32xbf16> to vector<128x32xbf16>
    %cst_152 = arith.constant dense<0.000000e+00> : vector<32x32xf32>
    %310 = tpu.matmul %307, %309, %cst_152 {dimension_numbers = #tpu.dot_dimension_numbers<[1], [0], [0], [1], [0, 0, 1, 1], [], []>} : vector<32x128xbf16>, vector<128x32xbf16>, vector<32x32xf32> -> vector<32x32xf32>
    %c0_153 = arith.constant 0 : index
    %c0_154 = arith.constant 0 : index
    %c0_155 = arith.constant 0 : index
    %311 = vector.load %arg15[%c0_153, %c0_154, %c0_155] : memref<2x1x32xf32, #tpu.memory_space<vmem>>, vector<1x1x32xf32>
    %312 = vector.shape_cast %311 : vector<1x1x32xf32> to vector<1x32xf32>
    %313 = vector.broadcast %312 : vector<1x32xf32> to vector<32x32xf32>
    %314 = arith.addf %310, %313 : vector<32x32xf32>
    %315 = arith.addf %259, %314 : vector<32x32xf32>
    %c1_156 = arith.constant 1 : index
    %c0_157 = arith.constant 0 : index
    %c0_158 = arith.constant 0 : index
    %316 = vector.load %arg4[%c1_156, %c0_157, %c0_158] : memref<2x1x32xf32, #tpu.memory_space<vmem>>, vector<1x1x32xf32>
    %317 = vector.shape_cast %316 : vector<1x1x32xf32> to vector<1x32xf32>
    %c1_159 = arith.constant 1 : index
    %c0_160 = arith.constant 0 : index
    %c0_161 = arith.constant 0 : index
    %318 = vector.load %arg5[%c1_159, %c0_160, %c0_161] : memref<2x1x32xf32, #tpu.memory_space<vmem>>, vector<1x1x32xf32>
    %319 = vector.shape_cast %318 : vector<1x1x32xf32> to vector<1x32xf32>
    %cst_162 = arith.constant dense<0.000000e+00> : vector<32xf32>
    %320 = vector.multi_reduction <add>, %315, %cst_162 [1] : vector<32x32xf32> to vector<32xf32>
    %321 = vector.shape_cast %320 : vector<32xf32> to vector<32x1xf32>
    %cst_163 = arith.constant 3.200000e+01 : f32
    %322 = vector.broadcast %cst_163 : f32 to vector<32x1xf32>
    %323 = arith.divf %321, %322 : vector<32x1xf32>
    %324 = vector.broadcast %323 : vector<32x1xf32> to vector<32x32xf32>
    %325 = arith.subf %315, %324 : vector<32x32xf32>
    %326 = arith.mulf %325, %325 : vector<32x32xf32>
    %cst_164 = arith.constant dense<0.000000e+00> : vector<32xf32>
    %327 = vector.multi_reduction <add>, %326, %cst_164 [1] : vector<32x32xf32> to vector<32xf32>
    %328 = vector.shape_cast %327 : vector<32xf32> to vector<32x1xf32>
    %cst_165 = arith.constant 3.200000e+01 : f32
    %329 = vector.broadcast %cst_165 : f32 to vector<32x1xf32>
    %330 = arith.divf %328, %329 : vector<32x1xf32>
    %331 = vector.broadcast %323 : vector<32x1xf32> to vector<32x32xf32>
    %332 = arith.subf %315, %331 : vector<32x32xf32>
    %cst_166 = arith.constant 9.99999974E-6 : f32
    %333 = vector.broadcast %cst_166 : f32 to vector<32x1xf32>
    %334 = arith.addf %330, %333 : vector<32x1xf32>
    %335 = math.rsqrt %334 : vector<32x1xf32>
    %336 = vector.broadcast %335 : vector<32x1xf32> to vector<32x32xf32>
    %337 = arith.mulf %332, %336 : vector<32x32xf32>
    %338 = vector.broadcast %317 : vector<1x32xf32> to vector<32x32xf32>
    %339 = arith.mulf %337, %338 : vector<32x32xf32>
    %340 = vector.broadcast %319 : vector<1x32xf32> to vector<32x32xf32>
    %341 = arith.addf %339, %340 : vector<32x32xf32>
    %342 = arith.truncf %341 : vector<32x32xf32> to vector<32x32xbf16>
    %c1_167 = arith.constant 1 : index
    %c0_168 = arith.constant 0 : index
    %c0_169 = arith.constant 0 : index
    %c0_170 = arith.constant 0 : index
    %343 = vector.load %arg6[%c1_167, %c0_168, %c0_169, %c0_170] : memref<2x3x32x32xbf16, #tpu.memory_space<vmem>>, vector<1x1x32x32xbf16>
    %344 = vector.shape_cast %343 : vector<1x1x32x32xbf16> to vector<32x32xbf16>
    %cst_171 = arith.constant dense<0.000000e+00> : vector<32x32xf32>
    %345 = tpu.matmul %342, %344, %cst_171 {dimension_numbers = #tpu.dot_dimension_numbers<[1], [0], [0], [1], [0, 0, 1, 1], [], []>} : vector<32x32xbf16>, vector<32x32xbf16>, vector<32x32xf32> -> vector<32x32xf32>
    %c1_172 = arith.constant 1 : index
    %c0_173 = arith.constant 0 : index
    %c0_174 = arith.constant 0 : index
    %c0_175 = arith.constant 0 : index
    %346 = vector.load %arg7[%c1_172, %c0_173, %c0_174, %c0_175] : memref<2x3x1x32xf32, #tpu.memory_space<vmem>>, vector<1x1x1x32xf32>
    %347 = vector.shape_cast %346 : vector<1x1x1x32xf32> to vector<1x32xf32>
    %348 = vector.broadcast %347 : vector<1x32xf32> to vector<32x32xf32>
    %349 = arith.addf %345, %348 : vector<32x32xf32>
    %c1_176 = arith.constant 1 : index
    %c1_177 = arith.constant 1 : index
    %c0_178 = arith.constant 0 : index
    %c0_179 = arith.constant 0 : index
    %350 = vector.load %arg6[%c1_176, %c1_177, %c0_178, %c0_179] : memref<2x3x32x32xbf16, #tpu.memory_space<vmem>>, vector<1x1x32x32xbf16>
    %351 = vector.shape_cast %350 : vector<1x1x32x32xbf16> to vector<32x32xbf16>
    %cst_180 = arith.constant dense<0.000000e+00> : vector<32x32xf32>
    %352 = tpu.matmul %342, %351, %cst_180 {dimension_numbers = #tpu.dot_dimension_numbers<[1], [0], [0], [1], [0, 0, 1, 1], [], []>} : vector<32x32xbf16>, vector<32x32xbf16>, vector<32x32xf32> -> vector<32x32xf32>
    %c1_181 = arith.constant 1 : index
    %c1_182 = arith.constant 1 : index
    %c0_183 = arith.constant 0 : index
    %c0_184 = arith.constant 0 : index
    %353 = vector.load %arg7[%c1_181, %c1_182, %c0_183, %c0_184] : memref<2x3x1x32xf32, #tpu.memory_space<vmem>>, vector<1x1x1x32xf32>
    %354 = vector.shape_cast %353 : vector<1x1x1x32xf32> to vector<1x32xf32>
    %355 = vector.broadcast %354 : vector<1x32xf32> to vector<32x32xf32>
    %356 = arith.addf %352, %355 : vector<32x32xf32>
    %c1_185 = arith.constant 1 : index
    %c2_186 = arith.constant 2 : index
    %c0_187 = arith.constant 0 : index
    %c0_188 = arith.constant 0 : index
    %357 = vector.load %arg6[%c1_185, %c2_186, %c0_187, %c0_188] : memref<2x3x32x32xbf16, #tpu.memory_space<vmem>>, vector<1x1x32x32xbf16>
    %358 = vector.shape_cast %357 : vector<1x1x32x32xbf16> to vector<32x32xbf16>
    %cst_189 = arith.constant dense<0.000000e+00> : vector<32x32xf32>
    %359 = tpu.matmul %342, %358, %cst_189 {dimension_numbers = #tpu.dot_dimension_numbers<[1], [0], [0], [1], [0, 0, 1, 1], [], []>} : vector<32x32xbf16>, vector<32x32xbf16>, vector<32x32xf32> -> vector<32x32xf32>
    %c1_190 = arith.constant 1 : index
    %c2_191 = arith.constant 2 : index
    %c0_192 = arith.constant 0 : index
    %c0_193 = arith.constant 0 : index
    %360 = vector.load %arg7[%c1_190, %c2_191, %c0_192, %c0_193] : memref<2x3x1x32xf32, #tpu.memory_space<vmem>>, vector<1x1x1x32xf32>
    %361 = vector.shape_cast %360 : vector<1x1x1x32xf32> to vector<1x32xf32>
    %362 = vector.broadcast %361 : vector<1x32xf32> to vector<32x32xf32>
    %363 = arith.addf %359, %362 : vector<32x32xf32>
    %364 = vector.extract_strided_slice %349 {offsets = [0, 0], sizes = [16, 32], strides = [1, 1]} : vector<32x32xf32> to vector<16x32xf32>
    %365 = arith.truncf %364 : vector<16x32xf32> to vector<16x32xbf16>
    %366 = vector.extract_strided_slice %356 {offsets = [0, 0], sizes = [16, 32], strides = [1, 1]} : vector<32x32xf32> to vector<16x32xf32>
    %367 = arith.truncf %366 : vector<16x32xf32> to vector<16x32xbf16>
    %368 = vector.extract_strided_slice %363 {offsets = [0, 0], sizes = [16, 32], strides = [1, 1]} : vector<32x32xf32> to vector<16x32xf32>
    %369 = arith.truncf %368 : vector<16x32xf32> to vector<16x32xbf16>
    %cst_194 = arith.constant 0.000000e+00 : f32
    %370 = vector.broadcast %cst_194 : f32 to vector<16x32xf32>
    %371 = vector.extract_strided_slice %365 {offsets = [0, 0], sizes = [16, 8], strides = [1, 1]} : vector<16x32xbf16> to vector<16x8xbf16>
    %372 = vector.extract_strided_slice %367 {offsets = [0, 0], sizes = [16, 8], strides = [1, 1]} : vector<16x32xbf16> to vector<16x8xbf16>
    %373 = vector.extract_strided_slice %369 {offsets = [0, 0], sizes = [16, 8], strides = [1, 1]} : vector<16x32xbf16> to vector<16x8xbf16>
    %cst_195 = arith.constant dense<0.000000e+00> : vector<16x16xf32>
    %374 = tpu.matmul %371, %372, %cst_195 {dimension_numbers = #tpu.dot_dimension_numbers<[1], [1], [0], [0], [0, 0, 1, 0], [], []>} : vector<16x8xbf16>, vector<16x8xbf16>, vector<16x16xf32> -> vector<16x16xf32>
    %cst_196 = arith.constant 0.353553385 : f32
    %375 = vector.broadcast %cst_196 : f32 to vector<16x16xf32>
    %376 = arith.mulf %374, %375 : vector<16x16xf32>
    %cst_197 = arith.constant dense<0xFF800000> : vector<16xf32>
    %377 = vector.multi_reduction <maximumf>, %376, %cst_197 [1] : vector<16x16xf32> to vector<16xf32>
    %378 = vector.shape_cast %377 : vector<16xf32> to vector<16x1xf32>
    %379 = vector.broadcast %378 : vector<16x1xf32> to vector<16x16xf32>
    %380 = arith.subf %376, %379 : vector<16x16xf32>
    %381 = math.exp %380 : vector<16x16xf32>
    %cst_198 = arith.constant dense<0.000000e+00> : vector<16xf32>
    %382 = vector.multi_reduction <add>, %381, %cst_198 [1] : vector<16x16xf32> to vector<16xf32>
    %383 = vector.shape_cast %382 : vector<16xf32> to vector<16x1xf32>
    %384 = tpu.reciprocal %383 {approx = true} : vector<16x1xf32> -> vector<16x1xf32>
    %385 = vector.broadcast %384 : vector<16x1xf32> to vector<16x16xf32>
    %386 = arith.mulf %381, %385 : vector<16x16xf32>
    %387 = arith.truncf %386 : vector<16x16xf32> to vector<16x16xbf16>
    %cst_199 = arith.constant dense<0.000000e+00> : vector<16x8xf32>
    %388 = tpu.matmul %387, %373, %cst_199 {dimension_numbers = #tpu.dot_dimension_numbers<[1], [0], [0], [1], [0, 0, 1, 1], [], []>} : vector<16x16xbf16>, vector<16x8xbf16>, vector<16x8xf32> -> vector<16x8xf32>
    %389 = arith.truncf %388 : vector<16x8xf32> to vector<16x8xbf16>
    %c1_200 = arith.constant 1 : index
    %c0_201 = arith.constant 0 : index
    %c0_202 = arith.constant 0 : index
    %c0_203 = arith.constant 0 : index
    %390 = vector.load %arg8[%c1_200, %c0_201, %c0_202, %c0_203] : memref<2x4x8x32xbf16, #tpu.memory_space<vmem>>, vector<1x1x8x32xbf16>
    %391 = vector.shape_cast %390 : vector<1x1x8x32xbf16> to vector<8x32xbf16>
    %cst_204 = arith.constant dense<0.000000e+00> : vector<16x32xf32>
    %392 = tpu.matmul %389, %391, %cst_204 {dimension_numbers = #tpu.dot_dimension_numbers<[1], [0], [0], [1], [0, 0, 1, 1], [], []>} : vector<16x8xbf16>, vector<8x32xbf16>, vector<16x32xf32> -> vector<16x32xf32>
    %393 = arith.addf %370, %392 : vector<16x32xf32>
    %394 = vector.extract_strided_slice %365 {offsets = [0, 8], sizes = [16, 8], strides = [1, 1]} : vector<16x32xbf16> to vector<16x8xbf16>
    %395 = vector.extract_strided_slice %367 {offsets = [0, 8], sizes = [16, 8], strides = [1, 1]} : vector<16x32xbf16> to vector<16x8xbf16>
    %396 = vector.extract_strided_slice %369 {offsets = [0, 8], sizes = [16, 8], strides = [1, 1]} : vector<16x32xbf16> to vector<16x8xbf16>
    %cst_205 = arith.constant dense<0.000000e+00> : vector<16x16xf32>
    %397 = tpu.matmul %394, %395, %cst_205 {dimension_numbers = #tpu.dot_dimension_numbers<[1], [1], [0], [0], [0, 0, 1, 0], [], []>} : vector<16x8xbf16>, vector<16x8xbf16>, vector<16x16xf32> -> vector<16x16xf32>
    %cst_206 = arith.constant 0.353553385 : f32
    %398 = vector.broadcast %cst_206 : f32 to vector<16x16xf32>
    %399 = arith.mulf %397, %398 : vector<16x16xf32>
    %cst_207 = arith.constant dense<0xFF800000> : vector<16xf32>
    %400 = vector.multi_reduction <maximumf>, %399, %cst_207 [1] : vector<16x16xf32> to vector<16xf32>
    %401 = vector.shape_cast %400 : vector<16xf32> to vector<16x1xf32>
    %402 = vector.broadcast %401 : vector<16x1xf32> to vector<16x16xf32>
    %403 = arith.subf %399, %402 : vector<16x16xf32>
    %404 = math.exp %403 : vector<16x16xf32>
    %cst_208 = arith.constant dense<0.000000e+00> : vector<16xf32>
    %405 = vector.multi_reduction <add>, %404, %cst_208 [1] : vector<16x16xf32> to vector<16xf32>
    %406 = vector.shape_cast %405 : vector<16xf32> to vector<16x1xf32>
    %407 = tpu.reciprocal %406 {approx = true} : vector<16x1xf32> -> vector<16x1xf32>
    %408 = vector.broadcast %407 : vector<16x1xf32> to vector<16x16xf32>
    %409 = arith.mulf %404, %408 : vector<16x16xf32>
    %410 = arith.truncf %409 : vector<16x16xf32> to vector<16x16xbf16>
    %cst_209 = arith.constant dense<0.000000e+00> : vector<16x8xf32>
    %411 = tpu.matmul %410, %396, %cst_209 {dimension_numbers = #tpu.dot_dimension_numbers<[1], [0], [0], [1], [0, 0, 1, 1], [], []>} : vector<16x16xbf16>, vector<16x8xbf16>, vector<16x8xf32> -> vector<16x8xf32>
    %412 = arith.truncf %411 : vector<16x8xf32> to vector<16x8xbf16>
    %c1_210 = arith.constant 1 : index
    %c1_211 = arith.constant 1 : index
    %c0_212 = arith.constant 0 : index
    %c0_213 = arith.constant 0 : index
    %413 = vector.load %arg8[%c1_210, %c1_211, %c0_212, %c0_213] : memref<2x4x8x32xbf16, #tpu.memory_space<vmem>>, vector<1x1x8x32xbf16>
    %414 = vector.shape_cast %413 : vector<1x1x8x32xbf16> to vector<8x32xbf16>
    %cst_214 = arith.constant dense<0.000000e+00> : vector<16x32xf32>
    %415 = tpu.matmul %412, %414, %cst_214 {dimension_numbers = #tpu.dot_dimension_numbers<[1], [0], [0], [1], [0, 0, 1, 1], [], []>} : vector<16x8xbf16>, vector<8x32xbf16>, vector<16x32xf32> -> vector<16x32xf32>
    %416 = arith.addf %393, %415 : vector<16x32xf32>
    %417 = vector.extract_strided_slice %365 {offsets = [0, 16], sizes = [16, 8], strides = [1, 1]} : vector<16x32xbf16> to vector<16x8xbf16>
    %418 = vector.extract_strided_slice %367 {offsets = [0, 16], sizes = [16, 8], strides = [1, 1]} : vector<16x32xbf16> to vector<16x8xbf16>
    %419 = vector.extract_strided_slice %369 {offsets = [0, 16], sizes = [16, 8], strides = [1, 1]} : vector<16x32xbf16> to vector<16x8xbf16>
    %cst_215 = arith.constant dense<0.000000e+00> : vector<16x16xf32>
    %420 = tpu.matmul %417, %418, %cst_215 {dimension_numbers = #tpu.dot_dimension_numbers<[1], [1], [0], [0], [0, 0, 1, 0], [], []>} : vector<16x8xbf16>, vector<16x8xbf16>, vector<16x16xf32> -> vector<16x16xf32>
    %cst_216 = arith.constant 0.353553385 : f32
    %421 = vector.broadcast %cst_216 : f32 to vector<16x16xf32>
    %422 = arith.mulf %420, %421 : vector<16x16xf32>
    %cst_217 = arith.constant dense<0xFF800000> : vector<16xf32>
    %423 = vector.multi_reduction <maximumf>, %422, %cst_217 [1] : vector<16x16xf32> to vector<16xf32>
    %424 = vector.shape_cast %423 : vector<16xf32> to vector<16x1xf32>
    %425 = vector.broadcast %424 : vector<16x1xf32> to vector<16x16xf32>
    %426 = arith.subf %422, %425 : vector<16x16xf32>
    %427 = math.exp %426 : vector<16x16xf32>
    %cst_218 = arith.constant dense<0.000000e+00> : vector<16xf32>
    %428 = vector.multi_reduction <add>, %427, %cst_218 [1] : vector<16x16xf32> to vector<16xf32>
    %429 = vector.shape_cast %428 : vector<16xf32> to vector<16x1xf32>
    %430 = tpu.reciprocal %429 {approx = true} : vector<16x1xf32> -> vector<16x1xf32>
    %431 = vector.broadcast %430 : vector<16x1xf32> to vector<16x16xf32>
    %432 = arith.mulf %427, %431 : vector<16x16xf32>
    %433 = arith.truncf %432 : vector<16x16xf32> to vector<16x16xbf16>
    %cst_219 = arith.constant dense<0.000000e+00> : vector<16x8xf32>
    %434 = tpu.matmul %433, %419, %cst_219 {dimension_numbers = #tpu.dot_dimension_numbers<[1], [0], [0], [1], [0, 0, 1, 1], [], []>} : vector<16x16xbf16>, vector<16x8xbf16>, vector<16x8xf32> -> vector<16x8xf32>
    %435 = arith.truncf %434 : vector<16x8xf32> to vector<16x8xbf16>
    %c1_220 = arith.constant 1 : index
    %c2_221 = arith.constant 2 : index
    %c0_222 = arith.constant 0 : index
    %c0_223 = arith.constant 0 : index
    %436 = vector.load %arg8[%c1_220, %c2_221, %c0_222, %c0_223] : memref<2x4x8x32xbf16, #tpu.memory_space<vmem>>, vector<1x1x8x32xbf16>
    %437 = vector.shape_cast %436 : vector<1x1x8x32xbf16> to vector<8x32xbf16>
    %cst_224 = arith.constant dense<0.000000e+00> : vector<16x32xf32>
    %438 = tpu.matmul %435, %437, %cst_224 {dimension_numbers = #tpu.dot_dimension_numbers<[1], [0], [0], [1], [0, 0, 1, 1], [], []>} : vector<16x8xbf16>, vector<8x32xbf16>, vector<16x32xf32> -> vector<16x32xf32>
    %439 = arith.addf %416, %438 : vector<16x32xf32>
    %440 = vector.extract_strided_slice %365 {offsets = [0, 24], sizes = [16, 8], strides = [1, 1]} : vector<16x32xbf16> to vector<16x8xbf16>
    %441 = vector.extract_strided_slice %367 {offsets = [0, 24], sizes = [16, 8], strides = [1, 1]} : vector<16x32xbf16> to vector<16x8xbf16>
    %442 = vector.extract_strided_slice %369 {offsets = [0, 24], sizes = [16, 8], strides = [1, 1]} : vector<16x32xbf16> to vector<16x8xbf16>
    %cst_225 = arith.constant dense<0.000000e+00> : vector<16x16xf32>
    %443 = tpu.matmul %440, %441, %cst_225 {dimension_numbers = #tpu.dot_dimension_numbers<[1], [1], [0], [0], [0, 0, 1, 0], [], []>} : vector<16x8xbf16>, vector<16x8xbf16>, vector<16x16xf32> -> vector<16x16xf32>
    %cst_226 = arith.constant 0.353553385 : f32
    %444 = vector.broadcast %cst_226 : f32 to vector<16x16xf32>
    %445 = arith.mulf %443, %444 : vector<16x16xf32>
    %cst_227 = arith.constant dense<0xFF800000> : vector<16xf32>
    %446 = vector.multi_reduction <maximumf>, %445, %cst_227 [1] : vector<16x16xf32> to vector<16xf32>
    %447 = vector.shape_cast %446 : vector<16xf32> to vector<16x1xf32>
    %448 = vector.broadcast %447 : vector<16x1xf32> to vector<16x16xf32>
    %449 = arith.subf %445, %448 : vector<16x16xf32>
    %450 = math.exp %449 : vector<16x16xf32>
    %cst_228 = arith.constant dense<0.000000e+00> : vector<16xf32>
    %451 = vector.multi_reduction <add>, %450, %cst_228 [1] : vector<16x16xf32> to vector<16xf32>
    %452 = vector.shape_cast %451 : vector<16xf32> to vector<16x1xf32>
    %453 = tpu.reciprocal %452 {approx = true} : vector<16x1xf32> -> vector<16x1xf32>
    %454 = vector.broadcast %453 : vector<16x1xf32> to vector<16x16xf32>
    %455 = arith.mulf %450, %454 : vector<16x16xf32>
    %456 = arith.truncf %455 : vector<16x16xf32> to vector<16x16xbf16>
    %cst_229 = arith.constant dense<0.000000e+00> : vector<16x8xf32>
    %457 = tpu.matmul %456, %442, %cst_229 {dimension_numbers = #tpu.dot_dimension_numbers<[1], [0], [0], [1], [0, 0, 1, 1], [], []>} : vector<16x16xbf16>, vector<16x8xbf16>, vector<16x8xf32> -> vector<16x8xf32>
    %458 = arith.truncf %457 : vector<16x8xf32> to vector<16x8xbf16>
    %c1_230 = arith.constant 1 : index
    %c3_231 = arith.constant 3 : index
    %c0_232 = arith.constant 0 : index
    %c0_233 = arith.constant 0 : index
    %459 = vector.load %arg8[%c1_230, %c3_231, %c0_232, %c0_233] : memref<2x4x8x32xbf16, #tpu.memory_space<vmem>>, vector<1x1x8x32xbf16>
    %460 = vector.shape_cast %459 : vector<1x1x8x32xbf16> to vector<8x32xbf16>
    %cst_234 = arith.constant dense<0.000000e+00> : vector<16x32xf32>
    %461 = tpu.matmul %458, %460, %cst_234 {dimension_numbers = #tpu.dot_dimension_numbers<[1], [0], [0], [1], [0, 0, 1, 1], [], []>} : vector<16x8xbf16>, vector<8x32xbf16>, vector<16x32xf32> -> vector<16x32xf32>
    %462 = arith.addf %439, %461 : vector<16x32xf32>
    %463 = vector.extract_strided_slice %349 {offsets = [16, 0], sizes = [16, 32], strides = [1, 1]} : vector<32x32xf32> to vector<16x32xf32>
    %464 = arith.truncf %463 : vector<16x32xf32> to vector<16x32xbf16>
    %465 = vector.extract_strided_slice %356 {offsets = [16, 0], sizes = [16, 32], strides = [1, 1]} : vector<32x32xf32> to vector<16x32xf32>
    %466 = arith.truncf %465 : vector<16x32xf32> to vector<16x32xbf16>
    %467 = vector.extract_strided_slice %363 {offsets = [16, 0], sizes = [16, 32], strides = [1, 1]} : vector<32x32xf32> to vector<16x32xf32>
    %468 = arith.truncf %467 : vector<16x32xf32> to vector<16x32xbf16>
    %cst_235 = arith.constant 0.000000e+00 : f32
    %469 = vector.broadcast %cst_235 : f32 to vector<16x32xf32>
    %470 = vector.extract_strided_slice %464 {offsets = [0, 0], sizes = [16, 8], strides = [1, 1]} : vector<16x32xbf16> to vector<16x8xbf16>
    %471 = vector.extract_strided_slice %466 {offsets = [0, 0], sizes = [16, 8], strides = [1, 1]} : vector<16x32xbf16> to vector<16x8xbf16>
    %472 = vector.extract_strided_slice %468 {offsets = [0, 0], sizes = [16, 8], strides = [1, 1]} : vector<16x32xbf16> to vector<16x8xbf16>
    %cst_236 = arith.constant dense<0.000000e+00> : vector<16x16xf32>
    %473 = tpu.matmul %470, %471, %cst_236 {dimension_numbers = #tpu.dot_dimension_numbers<[1], [1], [0], [0], [0, 0, 1, 0], [], []>} : vector<16x8xbf16>, vector<16x8xbf16>, vector<16x16xf32> -> vector<16x16xf32>
    %cst_237 = arith.constant 0.353553385 : f32
    %474 = vector.broadcast %cst_237 : f32 to vector<16x16xf32>
    %475 = arith.mulf %473, %474 : vector<16x16xf32>
    %cst_238 = arith.constant dense<0xFF800000> : vector<16xf32>
    %476 = vector.multi_reduction <maximumf>, %475, %cst_238 [1] : vector<16x16xf32> to vector<16xf32>
    %477 = vector.shape_cast %476 : vector<16xf32> to vector<16x1xf32>
    %478 = vector.broadcast %477 : vector<16x1xf32> to vector<16x16xf32>
    %479 = arith.subf %475, %478 : vector<16x16xf32>
    %480 = math.exp %479 : vector<16x16xf32>
    %cst_239 = arith.constant dense<0.000000e+00> : vector<16xf32>
    %481 = vector.multi_reduction <add>, %480, %cst_239 [1] : vector<16x16xf32> to vector<16xf32>
    %482 = vector.shape_cast %481 : vector<16xf32> to vector<16x1xf32>
    %483 = tpu.reciprocal %482 {approx = true} : vector<16x1xf32> -> vector<16x1xf32>
    %484 = vector.broadcast %483 : vector<16x1xf32> to vector<16x16xf32>
    %485 = arith.mulf %480, %484 : vector<16x16xf32>
    %486 = arith.truncf %485 : vector<16x16xf32> to vector<16x16xbf16>
    %cst_240 = arith.constant dense<0.000000e+00> : vector<16x8xf32>
    %487 = tpu.matmul %486, %472, %cst_240 {dimension_numbers = #tpu.dot_dimension_numbers<[1], [0], [0], [1], [0, 0, 1, 1], [], []>} : vector<16x16xbf16>, vector<16x8xbf16>, vector<16x8xf32> -> vector<16x8xf32>
    %488 = arith.truncf %487 : vector<16x8xf32> to vector<16x8xbf16>
    %c1_241 = arith.constant 1 : index
    %c0_242 = arith.constant 0 : index
    %c0_243 = arith.constant 0 : index
    %c0_244 = arith.constant 0 : index
    %489 = vector.load %arg8[%c1_241, %c0_242, %c0_243, %c0_244] : memref<2x4x8x32xbf16, #tpu.memory_space<vmem>>, vector<1x1x8x32xbf16>
    %490 = vector.shape_cast %489 : vector<1x1x8x32xbf16> to vector<8x32xbf16>
    %cst_245 = arith.constant dense<0.000000e+00> : vector<16x32xf32>
    %491 = tpu.matmul %488, %490, %cst_245 {dimension_numbers = #tpu.dot_dimension_numbers<[1], [0], [0], [1], [0, 0, 1, 1], [], []>} : vector<16x8xbf16>, vector<8x32xbf16>, vector<16x32xf32> -> vector<16x32xf32>
    %492 = arith.addf %469, %491 : vector<16x32xf32>
    %493 = vector.extract_strided_slice %464 {offsets = [0, 8], sizes = [16, 8], strides = [1, 1]} : vector<16x32xbf16> to vector<16x8xbf16>
    %494 = vector.extract_strided_slice %466 {offsets = [0, 8], sizes = [16, 8], strides = [1, 1]} : vector<16x32xbf16> to vector<16x8xbf16>
    %495 = vector.extract_strided_slice %468 {offsets = [0, 8], sizes = [16, 8], strides = [1, 1]} : vector<16x32xbf16> to vector<16x8xbf16>
    %cst_246 = arith.constant dense<0.000000e+00> : vector<16x16xf32>
    %496 = tpu.matmul %493, %494, %cst_246 {dimension_numbers = #tpu.dot_dimension_numbers<[1], [1], [0], [0], [0, 0, 1, 0], [], []>} : vector<16x8xbf16>, vector<16x8xbf16>, vector<16x16xf32> -> vector<16x16xf32>
    %cst_247 = arith.constant 0.353553385 : f32
    %497 = vector.broadcast %cst_247 : f32 to vector<16x16xf32>
    %498 = arith.mulf %496, %497 : vector<16x16xf32>
    %cst_248 = arith.constant dense<0xFF800000> : vector<16xf32>
    %499 = vector.multi_reduction <maximumf>, %498, %cst_248 [1] : vector<16x16xf32> to vector<16xf32>
    %500 = vector.shape_cast %499 : vector<16xf32> to vector<16x1xf32>
    %501 = vector.broadcast %500 : vector<16x1xf32> to vector<16x16xf32>
    %502 = arith.subf %498, %501 : vector<16x16xf32>
    %503 = math.exp %502 : vector<16x16xf32>
    %cst_249 = arith.constant dense<0.000000e+00> : vector<16xf32>
    %504 = vector.multi_reduction <add>, %503, %cst_249 [1] : vector<16x16xf32> to vector<16xf32>
    %505 = vector.shape_cast %504 : vector<16xf32> to vector<16x1xf32>
    %506 = tpu.reciprocal %505 {approx = true} : vector<16x1xf32> -> vector<16x1xf32>
    %507 = vector.broadcast %506 : vector<16x1xf32> to vector<16x16xf32>
    %508 = arith.mulf %503, %507 : vector<16x16xf32>
    %509 = arith.truncf %508 : vector<16x16xf32> to vector<16x16xbf16>
    %cst_250 = arith.constant dense<0.000000e+00> : vector<16x8xf32>
    %510 = tpu.matmul %509, %495, %cst_250 {dimension_numbers = #tpu.dot_dimension_numbers<[1], [0], [0], [1], [0, 0, 1, 1], [], []>} : vector<16x16xbf16>, vector<16x8xbf16>, vector<16x8xf32> -> vector<16x8xf32>
    %511 = arith.truncf %510 : vector<16x8xf32> to vector<16x8xbf16>
    %c1_251 = arith.constant 1 : index
    %c1_252 = arith.constant 1 : index
    %c0_253 = arith.constant 0 : index
    %c0_254 = arith.constant 0 : index
    %512 = vector.load %arg8[%c1_251, %c1_252, %c0_253, %c0_254] : memref<2x4x8x32xbf16, #tpu.memory_space<vmem>>, vector<1x1x8x32xbf16>
    %513 = vector.shape_cast %512 : vector<1x1x8x32xbf16> to vector<8x32xbf16>
    %cst_255 = arith.constant dense<0.000000e+00> : vector<16x32xf32>
    %514 = tpu.matmul %511, %513, %cst_255 {dimension_numbers = #tpu.dot_dimension_numbers<[1], [0], [0], [1], [0, 0, 1, 1], [], []>} : vector<16x8xbf16>, vector<8x32xbf16>, vector<16x32xf32> -> vector<16x32xf32>
    %515 = arith.addf %492, %514 : vector<16x32xf32>
    %516 = vector.extract_strided_slice %464 {offsets = [0, 16], sizes = [16, 8], strides = [1, 1]} : vector<16x32xbf16> to vector<16x8xbf16>
    %517 = vector.extract_strided_slice %466 {offsets = [0, 16], sizes = [16, 8], strides = [1, 1]} : vector<16x32xbf16> to vector<16x8xbf16>
    %518 = vector.extract_strided_slice %468 {offsets = [0, 16], sizes = [16, 8], strides = [1, 1]} : vector<16x32xbf16> to vector<16x8xbf16>
    %cst_256 = arith.constant dense<0.000000e+00> : vector<16x16xf32>
    %519 = tpu.matmul %516, %517, %cst_256 {dimension_numbers = #tpu.dot_dimension_numbers<[1], [1], [0], [0], [0, 0, 1, 0], [], []>} : vector<16x8xbf16>, vector<16x8xbf16>, vector<16x16xf32> -> vector<16x16xf32>
    %cst_257 = arith.constant 0.353553385 : f32
    %520 = vector.broadcast %cst_257 : f32 to vector<16x16xf32>
    %521 = arith.mulf %519, %520 : vector<16x16xf32>
    %cst_258 = arith.constant dense<0xFF800000> : vector<16xf32>
    %522 = vector.multi_reduction <maximumf>, %521, %cst_258 [1] : vector<16x16xf32> to vector<16xf32>
    %523 = vector.shape_cast %522 : vector<16xf32> to vector<16x1xf32>
    %524 = vector.broadcast %523 : vector<16x1xf32> to vector<16x16xf32>
    %525 = arith.subf %521, %524 : vector<16x16xf32>
    %526 = math.exp %525 : vector<16x16xf32>
    %cst_259 = arith.constant dense<0.000000e+00> : vector<16xf32>
    %527 = vector.multi_reduction <add>, %526, %cst_259 [1] : vector<16x16xf32> to vector<16xf32>
    %528 = vector.shape_cast %527 : vector<16xf32> to vector<16x1xf32>
    %529 = tpu.reciprocal %528 {approx = true} : vector<16x1xf32> -> vector<16x1xf32>
    %530 = vector.broadcast %529 : vector<16x1xf32> to vector<16x16xf32>
    %531 = arith.mulf %526, %530 : vector<16x16xf32>
    %532 = arith.truncf %531 : vector<16x16xf32> to vector<16x16xbf16>
    %cst_260 = arith.constant dense<0.000000e+00> : vector<16x8xf32>
    %533 = tpu.matmul %532, %518, %cst_260 {dimension_numbers = #tpu.dot_dimension_numbers<[1], [0], [0], [1], [0, 0, 1, 1], [], []>} : vector<16x16xbf16>, vector<16x8xbf16>, vector<16x8xf32> -> vector<16x8xf32>
    %534 = arith.truncf %533 : vector<16x8xf32> to vector<16x8xbf16>
    %c1_261 = arith.constant 1 : index
    %c2_262 = arith.constant 2 : index
    %c0_263 = arith.constant 0 : index
    %c0_264 = arith.constant 0 : index
    %535 = vector.load %arg8[%c1_261, %c2_262, %c0_263, %c0_264] : memref<2x4x8x32xbf16, #tpu.memory_space<vmem>>, vector<1x1x8x32xbf16>
    %536 = vector.shape_cast %535 : vector<1x1x8x32xbf16> to vector<8x32xbf16>
    %cst_265 = arith.constant dense<0.000000e+00> : vector<16x32xf32>
    %537 = tpu.matmul %534, %536, %cst_265 {dimension_numbers = #tpu.dot_dimension_numbers<[1], [0], [0], [1], [0, 0, 1, 1], [], []>} : vector<16x8xbf16>, vector<8x32xbf16>, vector<16x32xf32> -> vector<16x32xf32>
    %538 = arith.addf %515, %537 : vector<16x32xf32>
    %539 = vector.extract_strided_slice %464 {offsets = [0, 24], sizes = [16, 8], strides = [1, 1]} : vector<16x32xbf16> to vector<16x8xbf16>
    %540 = vector.extract_strided_slice %466 {offsets = [0, 24], sizes = [16, 8], strides = [1, 1]} : vector<16x32xbf16> to vector<16x8xbf16>
    %541 = vector.extract_strided_slice %468 {offsets = [0, 24], sizes = [16, 8], strides = [1, 1]} : vector<16x32xbf16> to vector<16x8xbf16>
    %cst_266 = arith.constant dense<0.000000e+00> : vector<16x16xf32>
    %542 = tpu.matmul %539, %540, %cst_266 {dimension_numbers = #tpu.dot_dimension_numbers<[1], [1], [0], [0], [0, 0, 1, 0], [], []>} : vector<16x8xbf16>, vector<16x8xbf16>, vector<16x16xf32> -> vector<16x16xf32>
    %cst_267 = arith.constant 0.353553385 : f32
    %543 = vector.broadcast %cst_267 : f32 to vector<16x16xf32>
    %544 = arith.mulf %542, %543 : vector<16x16xf32>
    %cst_268 = arith.constant dense<0xFF800000> : vector<16xf32>
    %545 = vector.multi_reduction <maximumf>, %544, %cst_268 [1] : vector<16x16xf32> to vector<16xf32>
    %546 = vector.shape_cast %545 : vector<16xf32> to vector<16x1xf32>
    %547 = vector.broadcast %546 : vector<16x1xf32> to vector<16x16xf32>
    %548 = arith.subf %544, %547 : vector<16x16xf32>
    %549 = math.exp %548 : vector<16x16xf32>
    %cst_269 = arith.constant dense<0.000000e+00> : vector<16xf32>
    %550 = vector.multi_reduction <add>, %549, %cst_269 [1] : vector<16x16xf32> to vector<16xf32>
    %551 = vector.shape_cast %550 : vector<16xf32> to vector<16x1xf32>
    %552 = tpu.reciprocal %551 {approx = true} : vector<16x1xf32> -> vector<16x1xf32>
    %553 = vector.broadcast %552 : vector<16x1xf32> to vector<16x16xf32>
    %554 = arith.mulf %549, %553 : vector<16x16xf32>
    %555 = arith.truncf %554 : vector<16x16xf32> to vector<16x16xbf16>
    %cst_270 = arith.constant dense<0.000000e+00> : vector<16x8xf32>
    %556 = tpu.matmul %555, %541, %cst_270 {dimension_numbers = #tpu.dot_dimension_numbers<[1], [0], [0], [1], [0, 0, 1, 1], [], []>} : vector<16x16xbf16>, vector<16x8xbf16>, vector<16x8xf32> -> vector<16x8xf32>
    %557 = arith.truncf %556 : vector<16x8xf32> to vector<16x8xbf16>
    %c1_271 = arith.constant 1 : index
    %c3_272 = arith.constant 3 : index
    %c0_273 = arith.constant 0 : index
    %c0_274 = arith.constant 0 : index
    %558 = vector.load %arg8[%c1_271, %c3_272, %c0_273, %c0_274] : memref<2x4x8x32xbf16, #tpu.memory_space<vmem>>, vector<1x1x8x32xbf16>
    %559 = vector.shape_cast %558 : vector<1x1x8x32xbf16> to vector<8x32xbf16>
    %cst_275 = arith.constant dense<0.000000e+00> : vector<16x32xf32>
    %560 = tpu.matmul %557, %559, %cst_275 {dimension_numbers = #tpu.dot_dimension_numbers<[1], [0], [0], [1], [0, 0, 1, 1], [], []>} : vector<16x8xbf16>, vector<8x32xbf16>, vector<16x32xf32> -> vector<16x32xf32>
    %561 = arith.addf %538, %560 : vector<16x32xf32>
    %562 = tpu.concatenate %462, %561 in 0 : vector<16x32xf32>, vector<16x32xf32> -> vector<32x32xf32>
    %c1_276 = arith.constant 1 : index
    %c0_277 = arith.constant 0 : index
    %c0_278 = arith.constant 0 : index
    %563 = vector.load %arg9[%c1_276, %c0_277, %c0_278] : memref<2x1x32xf32, #tpu.memory_space<vmem>>, vector<1x1x32xf32>
    %564 = vector.shape_cast %563 : vector<1x1x32xf32> to vector<1x32xf32>
    %565 = vector.broadcast %564 : vector<1x32xf32> to vector<32x32xf32>
    %566 = arith.addf %562, %565 : vector<32x32xf32>
    %567 = arith.addf %315, %566 : vector<32x32xf32>
    %c1_279 = arith.constant 1 : index
    %c0_280 = arith.constant 0 : index
    %c0_281 = arith.constant 0 : index
    %568 = vector.load %arg10[%c1_279, %c0_280, %c0_281] : memref<2x1x32xf32, #tpu.memory_space<vmem>>, vector<1x1x32xf32>
    %569 = vector.shape_cast %568 : vector<1x1x32xf32> to vector<1x32xf32>
    %c1_282 = arith.constant 1 : index
    %c0_283 = arith.constant 0 : index
    %c0_284 = arith.constant 0 : index
    %570 = vector.load %arg11[%c1_282, %c0_283, %c0_284] : memref<2x1x32xf32, #tpu.memory_space<vmem>>, vector<1x1x32xf32>
    %571 = vector.shape_cast %570 : vector<1x1x32xf32> to vector<1x32xf32>
    %cst_285 = arith.constant dense<0.000000e+00> : vector<32xf32>
    %572 = vector.multi_reduction <add>, %567, %cst_285 [1] : vector<32x32xf32> to vector<32xf32>
    %573 = vector.shape_cast %572 : vector<32xf32> to vector<32x1xf32>
    %cst_286 = arith.constant 3.200000e+01 : f32
    %574 = vector.broadcast %cst_286 : f32 to vector<32x1xf32>
    %575 = arith.divf %573, %574 : vector<32x1xf32>
    %576 = vector.broadcast %575 : vector<32x1xf32> to vector<32x32xf32>
    %577 = arith.subf %567, %576 : vector<32x32xf32>
    %578 = arith.mulf %577, %577 : vector<32x32xf32>
    %cst_287 = arith.constant dense<0.000000e+00> : vector<32xf32>
    %579 = vector.multi_reduction <add>, %578, %cst_287 [1] : vector<32x32xf32> to vector<32xf32>
    %580 = vector.shape_cast %579 : vector<32xf32> to vector<32x1xf32>
    %cst_288 = arith.constant 3.200000e+01 : f32
    %581 = vector.broadcast %cst_288 : f32 to vector<32x1xf32>
    %582 = arith.divf %580, %581 : vector<32x1xf32>
    %583 = vector.broadcast %575 : vector<32x1xf32> to vector<32x32xf32>
    %584 = arith.subf %567, %583 : vector<32x32xf32>
    %cst_289 = arith.constant 9.99999974E-6 : f32
    %585 = vector.broadcast %cst_289 : f32 to vector<32x1xf32>
    %586 = arith.addf %582, %585 : vector<32x1xf32>
    %587 = math.rsqrt %586 : vector<32x1xf32>
    %588 = vector.broadcast %587 : vector<32x1xf32> to vector<32x32xf32>
    %589 = arith.mulf %584, %588 : vector<32x32xf32>
    %590 = vector.broadcast %569 : vector<1x32xf32> to vector<32x32xf32>
    %591 = arith.mulf %589, %590 : vector<32x32xf32>
    %592 = vector.broadcast %571 : vector<1x32xf32> to vector<32x32xf32>
    %593 = arith.addf %591, %592 : vector<32x32xf32>
    %594 = arith.truncf %593 : vector<32x32xf32> to vector<32x32xbf16>
    %c1_290 = arith.constant 1 : index
    %c0_291 = arith.constant 0 : index
    %c0_292 = arith.constant 0 : index
    %595 = vector.load %arg12[%c1_290, %c0_291, %c0_292] : memref<2x32x128xbf16, #tpu.memory_space<vmem>>, vector<1x32x128xbf16>
    %596 = vector.shape_cast %595 : vector<1x32x128xbf16> to vector<32x128xbf16>
    %cst_293 = arith.constant dense<0.000000e+00> : vector<32x128xf32>
    %597 = tpu.matmul %594, %596, %cst_293 {dimension_numbers = #tpu.dot_dimension_numbers<[1], [0], [0], [1], [0, 0, 1, 1], [], []>} : vector<32x32xbf16>, vector<32x128xbf16>, vector<32x128xf32> -> vector<32x128xf32>
    %c1_294 = arith.constant 1 : index
    %c0_295 = arith.constant 0 : index
    %c0_296 = arith.constant 0 : index
    %598 = vector.load %arg13[%c1_294, %c0_295, %c0_296] : memref<2x1x128xf32, #tpu.memory_space<vmem>>, vector<1x1x128xf32>
    %599 = vector.shape_cast %598 : vector<1x1x128xf32> to vector<1x128xf32>
    %600 = vector.broadcast %599 : vector<1x128xf32> to vector<32x128xf32>
    %601 = arith.addf %597, %600 : vector<32x128xf32>
    %602 = arith.mulf %601, %601 : vector<32x128xf32>
    %603 = arith.mulf %601, %602 : vector<32x128xf32>
    %cst_297 = arith.constant 4.471500e-02 : f32
    %604 = vector.broadcast %cst_297 : f32 to vector<32x128xf32>
    %605 = arith.mulf %604, %603 : vector<32x128xf32>
    %606 = arith.addf %601, %605 : vector<32x128xf32>
    %cst_298 = arith.constant 0.797884583 : f32
    %607 = vector.broadcast %cst_298 : f32 to vector<32x128xf32>
    %608 = arith.mulf %607, %606 : vector<32x128xf32>
    %609 = math.tanh %608 : vector<32x128xf32>
    %cst_299 = arith.constant 1.000000e+00 : f32
    %610 = vector.broadcast %cst_299 : f32 to vector<32x128xf32>
    %611 = arith.addf %610, %609 : vector<32x128xf32>
    %cst_300 = arith.constant 5.000000e-01 : f32
    %612 = vector.broadcast %cst_300 : f32 to vector<32x128xf32>
    %613 = arith.mulf %612, %611 : vector<32x128xf32>
    %614 = arith.mulf %601, %613 : vector<32x128xf32>
    %615 = arith.truncf %614 : vector<32x128xf32> to vector<32x128xbf16>
    %c1_301 = arith.constant 1 : index
    %c0_302 = arith.constant 0 : index
    %c0_303 = arith.constant 0 : index
    %616 = vector.load %arg14[%c1_301, %c0_302, %c0_303] : memref<2x128x32xbf16, #tpu.memory_space<vmem>>, vector<1x128x32xbf16>
    %617 = vector.shape_cast %616 : vector<1x128x32xbf16> to vector<128x32xbf16>
    %cst_304 = arith.constant dense<0.000000e+00> : vector<32x32xf32>
    %618 = tpu.matmul %615, %617, %cst_304 {dimension_numbers = #tpu.dot_dimension_numbers<[1], [0], [0], [1], [0, 0, 1, 1], [], []>} : vector<32x128xbf16>, vector<128x32xbf16>, vector<32x32xf32> -> vector<32x32xf32>
    %c1_305 = arith.constant 1 : index
    %c0_306 = arith.constant 0 : index
    %c0_307 = arith.constant 0 : index
    %619 = vector.load %arg15[%c1_305, %c0_306, %c0_307] : memref<2x1x32xf32, #tpu.memory_space<vmem>>, vector<1x1x32xf32>
    %620 = vector.shape_cast %619 : vector<1x1x32xf32> to vector<1x32xf32>
    %621 = vector.broadcast %620 : vector<1x32xf32> to vector<32x32xf32>
    %622 = arith.addf %618, %621 : vector<32x32xf32>
    %623 = arith.addf %567, %622 : vector<32x32xf32>
    %c0_308 = arith.constant 0 : index
    %c0_309 = arith.constant 0 : index
    %624 = vector.load %arg16[%c0_308, %c0_309] : memref<1x32xf32, #tpu.memory_space<vmem>>, vector<1x32xf32>
    %c0_310 = arith.constant 0 : index
    %c0_311 = arith.constant 0 : index
    %625 = vector.load %arg17[%c0_310, %c0_311] : memref<1x32xf32, #tpu.memory_space<vmem>>, vector<1x32xf32>
    %cst_312 = arith.constant dense<0.000000e+00> : vector<32xf32>
    %626 = vector.multi_reduction <add>, %623, %cst_312 [1] : vector<32x32xf32> to vector<32xf32>
    %627 = vector.shape_cast %626 : vector<32xf32> to vector<32x1xf32>
    %cst_313 = arith.constant 3.200000e+01 : f32
    %628 = vector.broadcast %cst_313 : f32 to vector<32x1xf32>
    %629 = arith.divf %627, %628 : vector<32x1xf32>
    %630 = vector.broadcast %629 : vector<32x1xf32> to vector<32x32xf32>
    %631 = arith.subf %623, %630 : vector<32x32xf32>
    %632 = arith.mulf %631, %631 : vector<32x32xf32>
    %cst_314 = arith.constant dense<0.000000e+00> : vector<32xf32>
    %633 = vector.multi_reduction <add>, %632, %cst_314 [1] : vector<32x32xf32> to vector<32xf32>
    %634 = vector.shape_cast %633 : vector<32xf32> to vector<32x1xf32>
    %cst_315 = arith.constant 3.200000e+01 : f32
    %635 = vector.broadcast %cst_315 : f32 to vector<32x1xf32>
    %636 = arith.divf %634, %635 : vector<32x1xf32>
    %637 = vector.broadcast %629 : vector<32x1xf32> to vector<32x32xf32>
    %638 = arith.subf %623, %637 : vector<32x32xf32>
    %cst_316 = arith.constant 9.99999974E-6 : f32
    %639 = vector.broadcast %cst_316 : f32 to vector<32x1xf32>
    %640 = arith.addf %636, %639 : vector<32x1xf32>
    %641 = math.rsqrt %640 : vector<32x1xf32>
    %642 = vector.broadcast %641 : vector<32x1xf32> to vector<32x32xf32>
    %643 = arith.mulf %638, %642 : vector<32x32xf32>
    %644 = vector.broadcast %624 : vector<1x32xf32> to vector<32x32xf32>
    %645 = arith.mulf %643, %644 : vector<32x32xf32>
    %646 = vector.broadcast %625 : vector<1x32xf32> to vector<32x32xf32>
    %647 = arith.addf %645, %646 : vector<32x32xf32>
    %648 = arith.truncf %647 : vector<32x32xf32> to vector<32x32xbf16>
    %c0_317 = arith.constant 0 : index
    %c0_318 = arith.constant 0 : index
    %c0_319 = arith.constant 0 : index
    %649 = vector.load %arg18[%c0_317, %c0_318, %c0_319] : memref<1x32x64xbf16, #tpu.memory_space<vmem>>, vector<1x32x64xbf16>
    %650 = vector.shape_cast %649 : vector<1x32x64xbf16> to vector<32x64xbf16>
    %cst_320 = arith.constant dense<0.000000e+00> : vector<32x64xf32>
    %651 = tpu.matmul %648, %650, %cst_320 {dimension_numbers = #tpu.dot_dimension_numbers<[1], [0], [0], [1], [0, 0, 1, 1], [], []>} : vector<32x32xbf16>, vector<32x64xbf16>, vector<32x64xf32> -> vector<32x64xf32>
    %c0_321 = arith.constant 0 : index
    %c0_322 = arith.constant 0 : index
    %c0_323 = arith.constant 0 : index
    %652 = vector.load %arg19[%c0_321, %c0_322, %c0_323] : memref<1x1x64xf32, #tpu.memory_space<vmem>>, vector<1x1x64xf32>
    %653 = vector.shape_cast %652 : vector<1x1x64xf32> to vector<1x64xf32>
    %654 = vector.broadcast %653 : vector<1x64xf32> to vector<32x64xf32>
    %655 = arith.addf %651, %654 : vector<32x64xf32>
    %656 = arith.mulf %655, %655 : vector<32x64xf32>
    %657 = arith.mulf %655, %656 : vector<32x64xf32>
    %cst_324 = arith.constant 4.471500e-02 : f32
    %658 = vector.broadcast %cst_324 : f32 to vector<32x64xf32>
    %659 = arith.mulf %658, %657 : vector<32x64xf32>
    %660 = arith.addf %655, %659 : vector<32x64xf32>
    %cst_325 = arith.constant 0.797884583 : f32
    %661 = vector.broadcast %cst_325 : f32 to vector<32x64xf32>
    %662 = arith.mulf %661, %660 : vector<32x64xf32>
    %663 = math.tanh %662 : vector<32x64xf32>
    %cst_326 = arith.constant 1.000000e+00 : f32
    %664 = vector.broadcast %cst_326 : f32 to vector<32x64xf32>
    %665 = arith.addf %664, %663 : vector<32x64xf32>
    %cst_327 = arith.constant 5.000000e-01 : f32
    %666 = vector.broadcast %cst_327 : f32 to vector<32x64xf32>
    %667 = arith.mulf %666, %665 : vector<32x64xf32>
    %668 = arith.mulf %655, %667 : vector<32x64xf32>
    %669 = arith.truncf %668 : vector<32x64xf32> to vector<32x64xbf16>
    %c0_328 = arith.constant 0 : index
    %c0_329 = arith.constant 0 : index
    %c0_330 = arith.constant 0 : index
    %670 = vector.load %arg20[%c0_328, %c0_329, %c0_330] : memref<1x64x32xbf16, #tpu.memory_space<vmem>>, vector<1x64x32xbf16>
    %671 = vector.shape_cast %670 : vector<1x64x32xbf16> to vector<64x32xbf16>
    %cst_331 = arith.constant dense<0.000000e+00> : vector<32x32xf32>
    %672 = tpu.matmul %669, %671, %cst_331 {dimension_numbers = #tpu.dot_dimension_numbers<[1], [0], [0], [1], [0, 0, 1, 1], [], []>} : vector<32x64xbf16>, vector<64x32xbf16>, vector<32x32xf32> -> vector<32x32xf32>
    %c0_332 = arith.constant 0 : index
    %c0_333 = arith.constant 0 : index
    %c0_334 = arith.constant 0 : index
    %673 = vector.load %arg21[%c0_332, %c0_333, %c0_334] : memref<1x1x32xf32, #tpu.memory_space<vmem>>, vector<1x1x32xf32>
    %674 = vector.shape_cast %673 : vector<1x1x32xf32> to vector<1x32xf32>
    %675 = vector.broadcast %674 : vector<1x32xf32> to vector<32x32xf32>
    %676 = arith.addf %672, %675 : vector<32x32xf32>
    %677 = arith.truncf %676 : vector<32x32xf32> to vector<32x32xbf16>
    %c0_335 = arith.constant 0 : index
    %c0_336 = arith.constant 0 : index
    %678 = vector.load %arg22[%c0_335, %c0_336] : memref<32x128xbf16, #tpu.memory_space<vmem>>, vector<32x128xbf16>
    %cst_337 = arith.constant dense<0.000000e+00> : vector<32x128xf32>
    %679 = tpu.matmul %677, %678, %cst_337 {dimension_numbers = #tpu.dot_dimension_numbers<[1], [0], [0], [1], [0, 0, 1, 1], [], []>} : vector<32x32xbf16>, vector<32x128xbf16>, vector<32x128xf32> -> vector<32x128xf32>
    %c0_338 = arith.constant 0 : index
    %c0_339 = arith.constant 0 : index
    %680 = vector.load %arg23[%c0_338, %c0_339] : memref<1x128xf32, #tpu.memory_space<vmem>>, vector<1x128xf32>
    %681 = vector.broadcast %680 : vector<1x128xf32> to vector<32x128xf32>
    %682 = arith.addf %679, %681 : vector<32x128xf32>
    %c0_340 = arith.constant 0 : index
    %c0_341 = arith.constant 0 : index
    %683 = vector.load %arg24[%c0_340, %c0_341] : memref<32x128xf32, #tpu.memory_space<vmem>>, vector<32x128xf32>
    tpu.vector_store %arg24[%c0_340, %c0_341], %682 {strides = array<i32>} : memref<32x128xf32, #tpu.memory_space<vmem>>, vector<32x128xf32>,
    return
  }
}

</mosaic_0001>

<llo_original>
// kernel: vit_for_autoregression_forward.1
$region0: #{vit_for_autoregression_forward.1}
  #allocation0 [shape = 'u32[]', space=smem, size = 0x4, offset = 0x4, fixed_abs, tag = 'smem constant byte address 0x4 - core index']
  #allocation1 [shape = 'u32[144,128]{1,0:T(1,128)}', space=vmem, size = 0x12000, scoped, tag = 'internal scratch']
  %s0 = inlined_call_operand.vmem [shape: bf16[32,48], index: 0, kind: input, shape index: {}]
  %s1 = inlined_call_operand.vmem [shape: f32[32,32], index: 1, kind: input, shape index: {}]
  %s2 = inlined_call_operand.vmem [shape: bf16[48,32], index: 2, kind: input, shape index: {}]
  %s3 = inlined_call_operand.vmem [shape: f32[1,32], index: 3, kind: input, shape index: {}]
  %s4 = inlined_call_operand.vmem [shape: f32[2,1,32], index: 4, kind: input, shape index: {}]
  %s5 = inlined_call_operand.vmem [shape: f32[2,1,32], index: 5, kind: input, shape index: {}]
  %s6 = inlined_call_operand.vmem [shape: bf16[2,3,32,32], index: 6, kind: input, shape index: {}]
  %s7 = inlined_call_operand.vmem [shape: f32[2,3,1,32], index: 7, kind: input, shape index: {}]
  %s8 = inlined_call_operand.vmem [shape: bf16[2,4,8,32], index: 8, kind: input, shape index: {}]
  %s9 = inlined_call_operand.vmem [shape: f32[2,1,32], index: 9, kind: input, shape index: {}]
  %s10 = inlined_call_operand.vmem [shape: f32[2,1,32], index: 10, kind: input, shape index: {}]
  %s11 = inlined_call_operand.vmem [shape: f32[2,1,32], index: 11, kind: input, shape index: {}]
  %s12 = inlined_call_operand.vmem [shape: bf16[2,32,128], index: 12, kind: input, shape index: {}]
  %s13 = inlined_call_operand.vmem [shape: f32[2,1,128], index: 13, kind: input, shape index: {}]
  %s14 = inlined_call_operand.vmem [shape: bf16[2,128,32], index: 14, kind: input, shape index: {}]
  %s15 = inlined_call_operand.vmem [shape: f32[2,1,32], index: 15, kind: input, shape index: {}]
  %s16 = inlined_call_operand.vmem [shape: f32[1,32], index: 16, kind: input, shape index: {}]
  %s17 = inlined_call_operand.vmem [shape: f32[1,32], index: 17, kind: input, shape index: {}]
  %s18 = inlined_call_operand.vmem [shape: bf16[1,32,64], index: 18, kind: input, shape index: {}]
  %s19 = inlined_call_operand.vmem [shape: f32[1,1,64], index: 19, kind: input, shape index: {}]
  %s20 = inlined_call_operand.vmem [shape: bf16[1,64,32], index: 20, kind: input, shape index: {}]
  %s21 = inlined_call_operand.vmem [shape: f32[1,1,32], index: 21, kind: input, shape index: {}]
  %s22 = inlined_call_operand.vmem [shape: bf16[32,128], index: 22, kind: input, shape index: {}]
  %s23 = inlined_call_operand.vmem [shape: f32[1,128], index: 23, kind: input, shape index: {}]
  %s24 = inlined_call_operand.hbm [shape: f32[32,128], index: 24, kind: output, shape index: {}]
  %s25 = sld [smem:[#allocation0]]
  $region106: #{vit_for_autoregression_forward.1} parent=0
    _
  %s27 = ssub.s32 1, %s25
  %s28 = scalar_select 0, %s27, %s25
  $region1: #{vit_for_autoregression_forward.1} parent=0
    #allocation2 [shape = 'u8[16384]{0}', space=vmem, size = 0x4000, scoped, tag = 'output window, operand 0, single buffered']
    #allocation3 [shape = 's32[1]{0}', space=sflag, size = 0x4, scoped, tag = 'scoped memory for vit_for_autoregression_forward.1']
    %29 = vsyncpa [#allocation3], 0
    // Predicated region
    $region2: #{vit_for_autoregression_forward.1} parent=1 // pred_check
      _
    $region3: #{vit_for_autoregression_forward.1} parent=1 // pred_check_branch
      %31 = sbr.rel (0) target = $region5
    $region4: #{vit_for_autoregression_forward.1} parent=1 // pred_region
      _
    $region5: #{vit_for_autoregression_forward.1} parent=1 // pred_fallthru
      _
    // Predicated region
    $region6: #{vit_for_autoregression_forward.1} parent=1 // pred_check
      _
    $region7: #{vit_for_autoregression_forward.1} parent=1 // pred_check_branch
      %33 = sbr.rel (0) target = $region9
    $region8: #{vit_for_autoregression_forward.1} parent=1 // pred_region
      _
    $region9: #{vit_for_autoregression_forward.1} parent=1 // pred_fallthru
      _
    // Predicated region
    $region10: #{vit_for_autoregression_forward.1} parent=1 // pred_check
      _
    $region11: #{vit_for_autoregression_forward.1} parent=1 // pred_check_branch
      %35 = sbr.rel (0) target = $region13
    $region12: #{vit_for_autoregression_forward.1} parent=1 // pred_region
      _
    $region13: #{vit_for_autoregression_forward.1} parent=1 // pred_fallthru
      _
    // Predicated region
    $region14: #{vit_for_autoregression_forward.1} parent=1 // pred_check
      _
    $region15: #{vit_for_autoregression_forward.1} parent=1 // pred_check_branch
      %37 = sbr.rel (0) target = $region17
    $region16: #{vit_for_autoregression_forward.1} parent=1 // pred_region
      _
    $region17: #{vit_for_autoregression_forward.1} parent=1 // pred_fallthru
      _
    // Predicated region
    $region18: #{vit_for_autoregression_forward.1} parent=1 // pred_check
      _
    $region19: #{vit_for_autoregression_forward.1} parent=1 // pred_check_branch
      %39 = sbr.rel (0) target = $region21
    $region20: #{vit_for_autoregression_forward.1} parent=1 // pred_region
      _
    $region21: #{vit_for_autoregression_forward.1} parent=1 // pred_fallthru
      _
    // Predicated region
    $region22: #{vit_for_autoregression_forward.1} parent=1 // pred_check
      _
    $region23: #{vit_for_autoregression_forward.1} parent=1 // pred_check_branch
      %41 = sbr.rel (0) target = $region25
    $region24: #{vit_for_autoregression_forward.1} parent=1 // pred_region
      _
    $region25: #{vit_for_autoregression_forward.1} parent=1 // pred_fallthru
      _
    // Predicated region
    $region26: #{vit_for_autoregression_forward.1} parent=1 // pred_check
      _
    $region27: #{vit_for_autoregression_forward.1} parent=1 // pred_check_branch
      %43 = sbr.rel (0) target = $region29
    $region28: #{vit_for_autoregression_forward.1} parent=1 // pred_region
      _
    $region29: #{vit_for_autoregression_forward.1} parent=1 // pred_fallthru
      _
    // Predicated region
    $region30: #{vit_for_autoregression_forward.1} parent=1 // pred_check
      _
    $region31: #{vit_for_autoregression_forward.1} parent=1 // pred_check_branch
      %45 = sbr.rel (0) target = $region33
    $region32: #{vit_for_autoregression_forward.1} parent=1 // pred_region
      _
    $region33: #{vit_for_autoregression_forward.1} parent=1 // pred_fallthru
      _
    // Predicated region
    $region34: #{vit_for_autoregression_forward.1} parent=1 // pred_check
      _
    $region35: #{vit_for_autoregression_forward.1} parent=1 // pred_check_branch
      %47 = sbr.rel (0) target = $region37
    $region36: #{vit_for_autoregression_forward.1} parent=1 // pred_region
      _
    $region37: #{vit_for_autoregression_forward.1} parent=1 // pred_fallthru
      _
    // Predicated region
    $region38: #{vit_for_autoregression_forward.1} parent=1 // pred_check
      _
    $region39: #{vit_for_autoregression_forward.1} parent=1 // pred_check_branch
      %49 = sbr.rel (0) target = $region41
    $region40: #{vit_for_autoregression_forward.1} parent=1 // pred_region
      _
    $region41: #{vit_for_autoregression_forward.1} parent=1 // pred_fallthru
      _
    // Predicated region
    $region42: #{vit_for_autoregression_forward.1} parent=1 // pred_check
      _
    $region43: #{vit_for_autoregression_forward.1} parent=1 // pred_check_branch
      %51 = sbr.rel (0) target = $region45
    $region44: #{vit_for_autoregression_forward.1} parent=1 // pred_region
      _
    $region45: #{vit_for_autoregression_forward.1} parent=1 // pred_fallthru
      _
    // Predicated region
    $region46: #{vit_for_autoregression_forward.1} parent=1 // pred_check
      _
    $region47: #{vit_for_autoregression_forward.1} parent=1 // pred_check_branch
      %53 = sbr.rel (0) target = $region49
    $region48: #{vit_for_autoregression_forward.1} parent=1 // pred_region
      _
    $region49: #{vit_for_autoregression_forward.1} parent=1 // pred_fallthru
      _
    // Predicated region
    $region50: #{vit_for_autoregression_forward.1} parent=1 // pred_check
      _
    $region51: #{vit_for_autoregression_forward.1} parent=1 // pred_check_branch
      %55 = sbr.rel (0) target = $region53
    $region52: #{vit_for_autoregression_forward.1} parent=1 // pred_region
      _
    $region53: #{vit_for_autoregression_forward.1} parent=1 // pred_fallthru
      _
    // Predicated region
    $region54: #{vit_for_autoregression_forward.1} parent=1 // pred_check
      _
    $region55: #{vit_for_autoregression_forward.1} parent=1 // pred_check_branch
      %57 = sbr.rel (0) target = $region57
    $region56: #{vit_for_autoregression_forward.1} parent=1 // pred_region
      _
    $region57: #{vit_for_autoregression_forward.1} parent=1 // pred_fallthru
      _
    // Predicated region
    $region58: #{vit_for_autoregression_forward.1} parent=1 // pred_check
      _
    $region59: #{vit_for_autoregression_forward.1} parent=1 // pred_check_branch
      %59 = sbr.rel (0) target = $region61
    $region60: #{vit_for_autoregression_forward.1} parent=1 // pred_region
      _
    $region61: #{vit_for_autoregression_forward.1} parent=1 // pred_fallthru
      _
    // Predicated region
    $region62: #{vit_for_autoregression_forward.1} parent=1 // pred_check
      _
    $region63: #{vit_for_autoregression_forward.1} parent=1 // pred_check_branch
      %61 = sbr.rel (0) target = $region65
    $region64: #{vit_for_autoregression_forward.1} parent=1 // pred_region
      _
    $region65: #{vit_for_autoregression_forward.1} parent=1 // pred_fallthru
      _
    // Predicated region
    $region66: #{vit_for_autoregression_forward.1} parent=1 // pred_check
      _
    $region67: #{vit_for_autoregression_forward.1} parent=1 // pred_check_branch
      %63 = sbr.rel (0) target = $region69
    $region68: #{vit_for_autoregression_forward.1} parent=1 // pred_region
      _
    $region69: #{vit_for_autoregression_forward.1} parent=1 // pred_fallthru
      _
    // Predicated region
    $region70: #{vit_for_autoregression_forward.1} parent=1 // pred_check
      _
    $region71: #{vit_for_autoregression_forward.1} parent=1 // pred_check_branch
      %65 = sbr.rel (0) target = $region73
    $region72: #{vit_for_autoregression_forward.1} parent=1 // pred_region
      _
    $region73: #{vit_for_autoregression_forward.1} parent=1 // pred_fallthru
      _
    // Predicated region
    $region74: #{vit_for_autoregression_forward.1} parent=1 // pred_check
      _
    $region75: #{vit_for_autoregression_forward.1} parent=1 // pred_check_branch
      %67 = sbr.rel (0) target = $region77
    $region76: #{vit_for_autoregression_forward.1} parent=1 // pred_region
      _
    $region77: #{vit_for_autoregression_forward.1} parent=1 // pred_fallthru
      _
    // Predicated region
    $region78: #{vit_for_autoregression_forward.1} parent=1 // pred_check
      _
    $region79: #{vit_for_autoregression_forward.1} parent=1 // pred_check_branch
      %69 = sbr.rel (0) target = $region81
    $region80: #{vit_for_autoregression_forward.1} parent=1 // pred_region
      _
    $region81: #{vit_for_autoregression_forward.1} parent=1 // pred_fallthru
      _
    // Predicated region
    $region82: #{vit_for_autoregression_forward.1} parent=1 // pred_check
      _
    $region83: #{vit_for_autoregression_forward.1} parent=1 // pred_check_branch
      %71 = sbr.rel (0) target = $region85
    $region84: #{vit_for_autoregression_forward.1} parent=1 // pred_region
      _
    $region85: #{vit_for_autoregression_forward.1} parent=1 // pred_fallthru
      _
    // Predicated region
    $region86: #{vit_for_autoregression_forward.1} parent=1 // pred_check
      _
    $region87: #{vit_for_autoregression_forward.1} parent=1 // pred_check_branch
      %73 = sbr.rel (0) target = $region89
    $region88: #{vit_for_autoregression_forward.1} parent=1 // pred_region
      _
    $region89: #{vit_for_autoregression_forward.1} parent=1 // pred_fallthru
      _
    // Predicated region
    $region90: #{vit_for_autoregression_forward.1} parent=1 // pred_check
      _
    $region91: #{vit_for_autoregression_forward.1} parent=1 // pred_check_branch
      %75 = sbr.rel (0) target = $region93
    $region92: #{vit_for_autoregression_forward.1} parent=1 // pred_region
      _
    $region93: #{vit_for_autoregression_forward.1} parent=1 // pred_fallthru
      _
    // Predicated region
    $region94: #{vit_for_autoregression_forward.1} parent=1 // pred_check
      _
    $region95: #{vit_for_autoregression_forward.1} parent=1 // pred_check_branch
      %77 = sbr.rel (0) target = $region97
    $region96: #{vit_for_autoregression_forward.1} parent=1 // pred_region
      _
    $region97: #{vit_for_autoregression_forward.1} parent=1 // pred_fallthru
      _
    %v79 = vld [vmem:[%s0] sm:$0xf]
    %v80 = vld [vmem:[%s0 + $0x4] sm:$0xf]
    %v81 = vld [vmem:[%s0 + $0x8] sm:$0xf]
    %v82 = vld [vmem:[%s0 + $0xc] sm:$0xf]
    %v83 = vld [vmem:[%s2] sm:$0xf]
    %v84 = vld [vmem:[%s2 + $0x4] sm:$0xf]
    %v85 = vld [vmem:[%s2 + $0x8] sm:$0xf]
    %v86 = vld [vmem:[%s2 + $0xc] sm:$0xf]
    %v87 = vld [vmem:[%s2 + $0x10] sm:$0xf]
    %v88 = vld [vmem:[%s2 + $0x14] sm:$0xf]
    %v89 = vld [vmem:[%s3] sm:$0x1]
    %v91 = vlaneseq
    %v92 = vshrl.u32 %v91, 7
    %v93 = vsub.s32 0, %v92
    %v94 = vrot.slane %v89, %v93
    %v100 = vunpack.c.l.b16 %v79
    %v101 = vunpack.c.l.b16 %v80
    %v102 = vunpack.c.l.b16 %v81
    %v103 = vunpack.c.l.b16 %v82
    %v104 = vpack.c.b16 %v101, %v100
    %v105 = vpack.c.b16 %v103, %v102
    %v112 = vunpack.c.l.b16 %v83
    %v113 = vunpack.c.l.b16 %v84
    %v114 = vunpack.c.l.b16 %v85
    %v115 = vunpack.c.l.b16 %v86
    %v116 = vunpack.c.l.b16 %v87
    %v117 = vunpack.c.l.b16 %v88
    %v118 = vpack.c.b16 %v113, %v112
    %v119 = vpack.c.b16 %v115, %v114
    %v120 = vpack.c.b16 %v117, %v116
    %vm124 = vcmask 392192
    %v126 = vsel %vm124, %v104, 0
    %v129 = vsel %vm124, %v105, 0
    %131 = vmatprep.subr.bf16.mxu0 0
    %132 = vmatpush1.bf16.msra.mxu0 0
    %133 = vmatprep.subr.bf16.mxu0 0
    %134 = vmatpush1.bf16.msra.mxu0 0
    %135 = vmatprep.subr.bf16.mxu0 0
    %136 = vmatpush1.bf16.msra.mxu0 0
    %137 = vmatprep.subr.bf16.mxu0 0
    %138 = vmatpush1.bf16.msra.mxu0 0
    %139 = vmatprep.subr.bf16.mxu0 0
    %140 = vmatpush1.bf16.msra.mxu0 0
    %141 = vmatprep.subr.bf16.mxu0 0
    %142 = vmatpush1.bf16.msra.mxu0 %v120
    %143 = vmatprep.subr.bf16.mxu0 0
    %144 = vmatpush1.bf16.msra.mxu0 %v119
    %145 = vmatprep.subr.bf16.mxu0 0
    %146 = vmatpush1.bf16.msra.mxu0 %v118
    %147 = vmatprep.subr.bf16.mxu0 0
    %148 = vmatpush2.bf16.msra.mxu0 0
    %149 = vmatprep.subr.bf16.mxu0 0
    %150 = vmatpush2.bf16.msra.mxu0 0
    %151 = vmatprep.subr.bf16.mxu0 0
    %152 = vmatpush2.bf16.msra.mxu0 0
    %153 = vmatprep.subr.bf16.mxu0 0
    %154 = vmatpush2.bf16.msra.mxu0 0
    %155 = vmatprep.subr.bf16.mxu0 0
    %156 = vmatpush2.bf16.msra.mxu0 0
    %157 = vmatprep.subr.bf16.mxu0 0
    %158 = vmatpush2.bf16.msra.mxu0 0
    %159 = vmatprep.subr.bf16.mxu0 0
    %160 = vmatpush2.bf16.msra.mxu0 0
    %161 = vmatprep.subr.bf16.mxu0 0
    %162 = vmatpush2.bf16.msra.mxu0 0
    %163 = vmatprep.mubr.bf16.mxu0 0
    %164 = vmatmul.mubr.bf16.gmra.mxu0 %v126
    %v165 = vpop.f32.mrf.mxu0
    %v166 = vadd.f32 %v94, %v165
    %v167 = vpop.f32.mrf.mxu0
    %v168 = vpop.f32.mrf.mxu0
    %v169 = vadd.f32 %v94, %v168
    %v170 = vpop.f32.mrf.mxu0
    %171 = vmatprep.mubr.bf16.mxu0 0
    %172 = vmatmul.mubr.bf16.gmra.mxu0 %v129
    %v173 = vpop.f32.mrf.mxu0
    %v174 = vadd.f32 %v94, %v173
    %v175 = vpop.f32.mrf.mxu0
    %v176 = vpop.f32.mrf.mxu0
    %v177 = vadd.f32 %v94, %v176
    %v178 = vpop.f32.mrf.mxu0
    %179 = vdwg.mxu0
    %v180 = vld [vmem:[%s1] sm:$0xff]
    %v181 = vld [vmem:[%s1 + $0x8] sm:$0xff]
    %v182 = vld [vmem:[%s1 + $0x10] sm:$0xff]
    %v183 = vld [vmem:[%s1 + $0x18] sm:$0xff]
    %v184 = vadd.f32 %v166, %v180
    %v185 = vadd.f32 %v169, %v181
    %v186 = vadd.f32 %v174, %v182
    %v187 = vadd.f32 %v177, %v183
    %v188 = vld [vmem:[%s4] sm:$0x1]
    %v189 = vld [vmem:[%s5] sm:$0x1]
    %vm190 = vcmask 261120
    %v191 = vsel %vm190, %v184, 0.0
    %192 = vadd.xlane.f32.xlu0 %v191
    %v193 = vpop.xlane.xlu0 %192
    %v194 = vsel %vm190, %v185, 0.0
    %195 = vadd.xlane.f32.xlu0 %v194
    %v196 = vpop.xlane.xlu0 %195
    %v197 = vsel %vm190, %v186, 0.0
    %198 = vadd.xlane.f32.xlu0 %v197
    %v199 = vpop.xlane.xlu0 %198
    %v200 = vsel %vm190, %v187, 0.0
    %201 = vadd.xlane.f32.xlu0 %v200
    %v202 = vpop.xlane.xlu0 %201
    %v203 = vrcp.pop 32.0
    %v204 = vmul.f32 %v193, %v203
    %v205 = vmul.f32 %v196, %v203
    %v206 = vmul.f32 %v199, %v203
    %v207 = vmul.f32 %v202, %v203
    %v208 = vsub.f32 %v184, %v204
    %v209 = vsub.f32 %v185, %v205
    %v210 = vsub.f32 %v186, %v206
    %v211 = vsub.f32 %v187, %v207
    %v212 = vmul.f32 %v208, %v208
    %v213 = vmul.f32 %v209, %v209
    %v214 = vmul.f32 %v210, %v210
    %v215 = vmul.f32 %v211, %v211
    %v216 = vsel %vm190, %v212, 0.0
    %217 = vadd.xlane.f32.xlu0 %v216
    %v218 = vpop.xlane.xlu0 %217
    %v219 = vsel %vm190, %v213, 0.0
    %220 = vadd.xlane.f32.xlu0 %v219
    %v221 = vpop.xlane.xlu0 %220
    %v222 = vsel %vm190, %v214, 0.0
    %223 = vadd.xlane.f32.xlu0 %v222
    %v224 = vpop.xlane.xlu0 %223
    %v225 = vsel %vm190, %v215, 0.0
    %226 = vadd.xlane.f32.xlu0 %v225
    %v227 = vpop.xlane.xlu0 %226
    %v228 = vmul.f32 %v218, %v203
    %v229 = vmul.f32 %v221, %v203
    %v230 = vmul.f32 %v224, %v203
    %v231 = vmul.f32 %v227, %v203
    %v232 = vadd.f32 %v228, 1e-05
    %v233 = vadd.f32 %v229, 1e-05
    %v234 = vadd.f32 %v230, 1e-05
    %v235 = vadd.f32 %v231, 1e-05
    %v236 = vrsqrt.pop %v232
    %v237 = vrsqrt.pop %v233
    %v238 = vrsqrt.pop %v234
    %v239 = vrsqrt.pop %v235
    %v240 = vmul.f32 %v208, %v236
    %v241 = vmul.f32 %v209, %v237
    %v242 = vmul.f32 %v210, %v238
    %v243 = vmul.f32 %v211, %v239
    %v245 = vlaneseq
    %v246 = vshrl.u32 %v245, 7
    %v247 = vsub.s32 0, %v246
    %v248 = vrot.slane %v188, %v247
    %v250 = vmul.f32 %v240, %v248
    %v251 = vmul.f32 %v241, %v248
    %v252 = vmul.f32 %v242, %v248
    %v253 = vmul.f32 %v243, %v248
    %v255 = vlaneseq
    %v256 = vshrl.u32 %v255, 7
    %v257 = vsub.s32 0, %v256
    %v258 = vrot.slane %v189, %v257
    %v260 = vadd.f32 %v250, %v258
    %v261 = vadd.f32 %v251, %v258
    %v262 = vadd.f32 %v252, %v258
    %v263 = vadd.f32 %v253, %v258
    %v264 = vpack.c.bf16 %v261, %v260
    %v265 = vpack.c.bf16 %v263, %v262
    %v266 = vld [vmem:[%s6] sm:$0xf]
    %v267 = vld [vmem:[%s6 + $0x4] sm:$0xf]
    %v268 = vld [vmem:[%s6 + $0x8] sm:$0xf]
    %v269 = vld [vmem:[%s6 + $0xc] sm:$0xf]
    %v270 = vld [vmem:[%s7] sm:$0x1]
    %v272 = vlaneseq
    %v273 = vshrl.u32 %v272, 7
    %v274 = vsub.s32 0, %v273
    %v275 = vrot.slane %v270, %v274
    %v281 = vunpack.c.l.b16 %v266
    %v282 = vunpack.c.l.b16 %v267
    %v283 = vunpack.c.l.b16 %v268
    %v284 = vunpack.c.l.b16 %v269
    %v285 = vpack.c.b16 %v282, %v281
    %v286 = vpack.c.b16 %v284, %v283
    %v290 = vsel %vm190, %v264, 0
    %v293 = vsel %vm190, %v265, 0
    %295 = vmatprep.subr.bf16.mxu0 0
    %296 = vmatpush1.bf16.msra.mxu0 0
    %297 = vmatprep.subr.bf16.mxu0 0
    %298 = vmatpush1.bf16.msra.mxu0 0
    %299 = vmatprep.subr.bf16.mxu0 0
    %300 = vmatpush1.bf16.msra.mxu0 0
    %301 = vmatprep.subr.bf16.mxu0 0
    %302 = vmatpush1.bf16.msra.mxu0 0
    %303 = vmatprep.subr.bf16.mxu0 0
    %304 = vmatpush1.bf16.msra.mxu0 0
    %305 = vmatprep.subr.bf16.mxu0 0
    %306 = vmatpush1.bf16.msra.mxu0 0
    %307 = vmatprep.subr.bf16.mxu0 0
    %308 = vmatpush1.bf16.msra.mxu0 %v286
    %309 = vmatprep.subr.bf16.mxu0 0
    %310 = vmatpush1.bf16.msra.mxu0 %v285
    %311 = vmatprep.subr.bf16.mxu0 0
    %312 = vmatpush2.bf16.msra.mxu0 0
    %313 = vmatprep.subr.bf16.mxu0 0
    %314 = vmatpush2.bf16.msra.mxu0 0
    %315 = vmatprep.subr.bf16.mxu0 0
    %316 = vmatpush2.bf16.msra.mxu0 0
    %317 = vmatprep.subr.bf16.mxu0 0
    %318 = vmatpush2.bf16.msra.mxu0 0
    %319 = vmatprep.subr.bf16.mxu0 0
    %320 = vmatpush2.bf16.msra.mxu0 0
    %321 = vmatprep.subr.bf16.mxu0 0
    %322 = vmatpush2.bf16.msra.mxu0 0
    %323 = vmatprep.subr.bf16.mxu0 0
    %324 = vmatpush2.bf16.msra.mxu0 0
    %325 = vmatprep.subr.bf16.mxu0 0
    %326 = vmatpush2.bf16.msra.mxu0 0
    %327 = vmatprep.mubr.bf16.mxu0 0
    %328 = vmatmul.mubr.bf16.gmra.mxu0 %v290
    %v329 = vpop.f32.mrf.mxu0
    %v330 = vadd.f32 %v275, %v329
    %v331 = vpop.f32.mrf.mxu0
    %v332 = vpop.f32.mrf.mxu0
    %v333 = vadd.f32 %v275, %v332
    %v334 = vpop.f32.mrf.mxu0
    %335 = vmatprep.mubr.bf16.mxu0 0
    %336 = vmatmul.mubr.bf16.gmra.mxu0 %v293
    %v337 = vpop.f32.mrf.mxu0
    %v338 = vadd.f32 %v275, %v337
    %v339 = vpop.f32.mrf.mxu0
    %v340 = vpop.f32.mrf.mxu0
    %v341 = vadd.f32 %v275, %v340
    %v342 = vpop.f32.mrf.mxu0
    %343 = vdwg.mxu0
    %s344 = scalar_lea.vmem %s6, 16
    %v345 = vld [vmem:[%s344] sm:$0xf]
    %v346 = vld [vmem:[%s344 + $0x4] sm:$0xf]
    %v347 = vld [vmem:[%s344 + $0x8] sm:$0xf]
    %v348 = vld [vmem:[%s344 + $0xc] sm:$0xf]
    %s349 = scalar_lea.vmem %s7, 1
    %v350 = vld [vmem:[%s349] sm:$0x1]
    %v352 = vlaneseq
    %v353 = vshrl.u32 %v352, 7
    %v354 = vsub.s32 0, %v353
    %v355 = vrot.slane %v350, %v354
    %v361 = vunpack.c.l.b16 %v345
    %v362 = vunpack.c.l.b16 %v346
    %v363 = vunpack.c.l.b16 %v347
    %v364 = vunpack.c.l.b16 %v348
    %v365 = vpack.c.b16 %v362, %v361
    %v366 = vpack.c.b16 %v364, %v363
    %369 = vmatprep.subr.bf16.mxu0 0
    %370 = vmatpush1.bf16.msra.mxu0 0
    %371 = vmatprep.subr.bf16.mxu0 0
    %372 = vmatpush1.bf16.msra.mxu0 0
    %373 = vmatprep.subr.bf16.mxu0 0
    %374 = vmatpush1.bf16.msra.mxu0 0
    %375 = vmatprep.subr.bf16.mxu0 0
    %376 = vmatpush1.bf16.msra.mxu0 0
    %377 = vmatprep.subr.bf16.mxu0 0
    %378 = vmatpush1.bf16.msra.mxu0 0
    %379 = vmatprep.subr.bf16.mxu0 0
    %380 = vmatpush1.bf16.msra.mxu0 0
    %381 = vmatprep.subr.bf16.mxu0 0
    %382 = vmatpush1.bf16.msra.mxu0 %v366
    %383 = vmatprep.subr.bf16.mxu0 0
    %384 = vmatpush1.bf16.msra.mxu0 %v365
    %385 = vmatprep.subr.bf16.mxu0 0
    %386 = vmatpush2.bf16.msra.mxu0 0
    %387 = vmatprep.subr.bf16.mxu0 0
    %388 = vmatpush2.bf16.msra.mxu0 0
    %389 = vmatprep.subr.bf16.mxu0 0
    %390 = vmatpush2.bf16.msra.mxu0 0
    %391 = vmatprep.subr.bf16.mxu0 0
    %392 = vmatpush2.bf16.msra.mxu0 0
    %393 = vmatprep.subr.bf16.mxu0 0
    %394 = vmatpush2.bf16.msra.mxu0 0
    %395 = vmatprep.subr.bf16.mxu0 0
    %396 = vmatpush2.bf16.msra.mxu0 0
    %397 = vmatprep.subr.bf16.mxu0 0
    %398 = vmatpush2.bf16.msra.mxu0 0
    %399 = vmatprep.subr.bf16.mxu0 0
    %400 = vmatpush2.bf16.msra.mxu0 0
    %401 = vmatprep.mubr.bf16.mxu0 0
    %402 = vmatmul.mubr.bf16.gmra.mxu0 %v290
    %v403 = vpop.f32.mrf.mxu0
    %v404 = vadd.f32 %v355, %v403
    %v405 = vpop.f32.mrf.mxu0
    %v406 = vpop.f32.mrf.mxu0
    %v407 = vadd.f32 %v355, %v406
    %v408 = vpop.f32.mrf.mxu0
    %409 = vmatprep.mubr.bf16.mxu0 0
    %410 = vmatmul.mubr.bf16.gmra.mxu0 %v293
    %v411 = vpop.f32.mrf.mxu0
    %v412 = vadd.f32 %v355, %v411
    %v413 = vpop.f32.mrf.mxu0
    %v414 = vpop.f32.mrf.mxu0
    %v415 = vadd.f32 %v355, %v414
    %v416 = vpop.f32.mrf.mxu0
    %417 = vdwg.mxu0
    %s418 = scalar_lea.vmem %s6, 32
    %v419 = vld [vmem:[%s418] sm:$0xf]
    %v420 = vld [vmem:[%s418 + $0x4] sm:$0xf]
    %v421 = vld [vmem:[%s418 + $0x8] sm:$0xf]
    %v422 = vld [vmem:[%s418 + $0xc] sm:$0xf]
    %s423 = scalar_lea.vmem %s7, 2
    %v424 = vld [vmem:[%s423] sm:$0x1]
    %v426 = vlaneseq
    %v427 = vshrl.u32 %v426, 7
    %v428 = vsub.s32 0, %v427
    %v429 = vrot.slane %v424, %v428
    %v435 = vunpack.c.l.b16 %v419
    %v436 = vunpack.c.l.b16 %v420
    %v437 = vunpack.c.l.b16 %v421
    %v438 = vunpack.c.l.b16 %v422
    %v439 = vpack.c.b16 %v436, %v435
    %v440 = vpack.c.b16 %v438, %v437
    %443 = vmatprep.subr.bf16.mxu0 0
    %444 = vmatpush1.bf16.msra.mxu0 0
    %445 = vmatprep.subr.bf16.mxu0 0
    %446 = vmatpush1.bf16.msra.mxu0 0
    %447 = vmatprep.subr.bf16.mxu0 0
    %448 = vmatpush1.bf16.msra.mxu0 0
    %449 = vmatprep.subr.bf16.mxu0 0
    %450 = vmatpush1.bf16.msra.mxu0 0
    %451 = vmatprep.subr.bf16.mxu0 0
    %452 = vmatpush1.bf16.msra.mxu0 0
    %453 = vmatprep.subr.bf16.mxu0 0
    %454 = vmatpush1.bf16.msra.mxu0 0
    %455 = vmatprep.subr.bf16.mxu0 0
    %456 = vmatpush1.bf16.msra.mxu0 %v440
    %457 = vmatprep.subr.bf16.mxu0 0
    %458 = vmatpush1.bf16.msra.mxu0 %v439
    %459 = vmatprep.subr.bf16.mxu0 0
    %460 = vmatpush2.bf16.msra.mxu0 0
    %461 = vmatprep.subr.bf16.mxu0 0
    %462 = vmatpush2.bf16.msra.mxu0 0
    %463 = vmatprep.subr.bf16.mxu0 0
    %464 = vmatpush2.bf16.msra.mxu0 0
    %465 = vmatprep.subr.bf16.mxu0 0
    %466 = vmatpush2.bf16.msra.mxu0 0
    %467 = vmatprep.subr.bf16.mxu0 0
    %468 = vmatpush2.bf16.msra.mxu0 0
    %469 = vmatprep.subr.bf16.mxu0 0
    %470 = vmatpush2.bf16.msra.mxu0 0
    %471 = vmatprep.subr.bf16.mxu0 0
    %472 = vmatpush2.bf16.msra.mxu0 0
    %473 = vmatprep.subr.bf16.mxu0 0
    %474 = vmatpush2.bf16.msra.mxu0 0
    %475 = vmatprep.mubr.bf16.mxu0 0
    %476 = vmatmul.mubr.bf16.gmra.mxu0 %v290
    %v477 = vpop.f32.mrf.mxu0
    %v478 = vadd.f32 %v429, %v477
    %v479 = vpop.f32.mrf.mxu0
    %v480 = vpop.f32.mrf.mxu0
    %v481 = vadd.f32 %v429, %v480
    %v482 = vpop.f32.mrf.mxu0
    %483 = vmatprep.mubr.bf16.mxu0 0
    %484 = vmatmul.mubr.bf16.gmra.mxu0 %v293
    %v485 = vpop.f32.mrf.mxu0
    %v486 = vadd.f32 %v429, %v485
    %v487 = vpop.f32.mrf.mxu0
    %v488 = vpop.f32.mrf.mxu0
    %v489 = vadd.f32 %v429, %v488
    %v490 = vpop.f32.mrf.mxu0
    %491 = vdwg.mxu0
    %v492 = vpack.c.bf16 %v333, %v330
    %v493 = vpack.c.bf16 %v407, %v404
    %v494 = vpack.c.bf16 %v481, %v478
    %vm495 = vcmask 64512
    %v497 = vsel %vm495, %v492, 0
    %v500 = vsel %vm495, %v493, 0
    %502 = vmatprep.subr.bf16.mxu0 0
    %503 = vmatpush1.bf16.xpose.msra.mxu0 0
    %504 = vmatprep.subr.bf16.mxu0 0
    %505 = vmatpush1.bf16.xpose.msra.mxu0 0
    %506 = vmatprep.subr.bf16.mxu0 0
    %507 = vmatpush1.bf16.xpose.msra.mxu0 0
    %508 = vmatprep.subr.bf16.mxu0 0
    %509 = vmatpush1.bf16.xpose.msra.mxu0 0
    %510 = vmatprep.subr.bf16.mxu0 0
    %511 = vmatpush1.bf16.xpose.msra.mxu0 0
    %512 = vmatprep.subr.bf16.mxu0 0
    %513 = vmatpush1.bf16.xpose.msra.mxu0 0
    %514 = vmatprep.subr.bf16.mxu0 0
    %515 = vmatpush1.bf16.xpose.msra.mxu0 0
    %516 = vmatprep.subr.bf16.mxu0 0
    %517 = vmatpush1.bf16.xpose.msra.mxu0 %v500
    %518 = vmatprep.subr.bf16.mxu0 0
    %519 = vmatpush2.bf16.xpose.msra.mxu0 0
    %520 = vmatprep.subr.bf16.mxu0 0
    %521 = vmatpush2.bf16.xpose.msra.mxu0 0
    %522 = vmatprep.subr.bf16.mxu0 0
    %523 = vmatpush2.bf16.xpose.msra.mxu0 0
    %524 = vmatprep.subr.bf16.mxu0 0
    %525 = vmatpush2.bf16.xpose.msra.mxu0 0
    %526 = vmatprep.subr.bf16.mxu0 0
    %527 = vmatpush2.bf16.xpose.msra.mxu0 0
    %528 = vmatprep.subr.bf16.mxu0 0
    %529 = vmatpush2.bf16.xpose.msra.mxu0 0
    %530 = vmatprep.subr.bf16.mxu0 0
    %531 = vmatpush2.bf16.xpose.msra.mxu0 0
    %532 = vmatprep.subr.bf16.mxu0 0
    %533 = vmatpush2.bf16.xpose.msra.mxu0 0
    %534 = vmatprep.mubr.bf16.mxu0 0
    %535 = vmatmul.mubr.bf16.gmra.mxu0 %v497
    %v536 = vpop.f32.mrf.mxu0
    %v537 = vadd.f32 0.0, %v536
    %v538 = vpop.f32.mrf.mxu0
    %v539 = vpop.f32.mrf.mxu0
    %v540 = vadd.f32 0.0, %v539
    %v541 = vpop.f32.mrf.mxu0
    %542 = vdwg.mxu0
    %v543 = vmul.f32 %v537, 0.35355338
    %v544 = vmul.f32 %v540, 0.35355338
    %vm545 = vcmask 130048
    %v546 = vsel %vm545, %v543, -inf
    %547 = vmax.xlane.f32.xlu0 %v546
    %v548 = vpop.xlane.xlu0 %547
    %v549 = vsel %vm545, %v544, -inf
    %550 = vmax.xlane.f32.xlu0 %v549
    %v551 = vpop.xlane.xlu0 %550
    %v552 = vsub.f32 %v543, %v548
    %v553 = vsub.f32 %v544, %v551
    %v554 = vmul.f32 %v552, 1.442695
    %v555 = vpow.pop %v554
    %v556 = vmul.f32 %v553, 1.442695
    %v557 = vpow.pop %v556
    %v558 = vsel %vm545, %v555, 0.0
    %559 = vadd.xlane.f32.xlu0 %v558
    %v560 = vpop.xlane.xlu0 %559
    %v561 = vsel %vm545, %v557, 0.0
    %562 = vadd.xlane.f32.xlu0 %v561
    %v563 = vpop.xlane.xlu0 %562
    %v564 = vrcp.pop %v560
    %v565 = vrcp.pop %v563
    %v566 = vmul.f32 %v555, %v564
    %v567 = vmul.f32 %v557, %v565
    %v568 = vpack.c.bf16 %v567, %v566
    %v570 = vsel %vm545, %v568, 0
    %572 = vmatprep.subr.bf16.mxu0 0
    %573 = vmatpush1.bf16.msra.mxu0 0
    %574 = vmatprep.subr.bf16.mxu0 0
    %575 = vmatpush1.bf16.msra.mxu0 0
    %576 = vmatprep.subr.bf16.mxu0 0
    %577 = vmatpush1.bf16.msra.mxu0 0
    %578 = vmatprep.subr.bf16.mxu0 0
    %579 = vmatpush1.bf16.msra.mxu0 0
    %580 = vmatprep.subr.bf16.mxu0 0
    %581 = vmatpush1.bf16.msra.mxu0 0
    %582 = vmatprep.subr.bf16.mxu0 0
    %583 = vmatpush1.bf16.msra.mxu0 0
    %584 = vmatprep.subr.bf16.mxu0 0
    %585 = vmatpush1.bf16.msra.mxu0 0
    %586 = vmatprep.subr.bf16.mxu0 0
    %587 = vmatpush1.bf16.msra.mxu0 %v494
    %588 = vmatprep.subr.bf16.mxu0 0
    %589 = vmatpush2.bf16.msra.mxu0 0
    %590 = vmatprep.subr.bf16.mxu0 0
    %591 = vmatpush2.bf16.msra.mxu0 0
    %592 = vmatprep.subr.bf16.mxu0 0
    %593 = vmatpush2.bf16.msra.mxu0 0
    %594 = vmatprep.subr.bf16.mxu0 0
    %595 = vmatpush2.bf16.msra.mxu0 0
    %596 = vmatprep.subr.bf16.mxu0 0
    %597 = vmatpush2.bf16.msra.mxu0 0
    %598 = vmatprep.subr.bf16.mxu0 0
    %599 = vmatpush2.bf16.msra.mxu0 0
    %600 = vmatprep.subr.bf16.mxu0 0
    %601 = vmatpush2.bf16.msra.mxu0 0
    %602 = vmatprep.subr.bf16.mxu0 0
    %603 = vmatpush2.bf16.msra.mxu0 0
    %604 = vmatprep.mubr.bf16.mxu0 0
    %605 = vmatmul.mubr.bf16.gmra.mxu0 %v570
    %v606 = vpop.f32.mrf.mxu0
    %v607 = vadd.f32 0.0, %v606
    %v608 = vpop.f32.mrf.mxu0
    %v609 = vpop.f32.mrf.mxu0
    %v610 = vadd.f32 0.0, %v609
    %v611 = vpop.f32.mrf.mxu0
    %612 = vdwg.mxu0
    %v613 = vpack.c.bf16 %v610, %v607
    %v614 = vld [vmem:[%s8] sm:$0xf]
    %616 = vrot.lane.b32.xlu0 %v492, 120
    %v617 = vpop.permute.xlu0 %616
    %619 = vrot.lane.b32.xlu0 %v493, 120
    %v620 = vpop.permute.xlu0 %619
    %v622 = vsel %vm495, %v617, 0
    %v625 = vsel %vm495, %v620, 0
    %627 = vmatprep.subr.bf16.mxu0 0
    %628 = vmatpush1.bf16.xpose.msra.mxu0 0
    %629 = vmatprep.subr.bf16.mxu0 0
    %630 = vmatpush1.bf16.xpose.msra.mxu0 0
    %631 = vmatprep.subr.bf16.mxu0 0
    %632 = vmatpush1.bf16.xpose.msra.mxu0 0
    %633 = vmatprep.subr.bf16.mxu0 0
    %634 = vmatpush1.bf16.xpose.msra.mxu0 0
    %635 = vmatprep.subr.bf16.mxu0 0
    %636 = vmatpush1.bf16.xpose.msra.mxu0 0
    %637 = vmatprep.subr.bf16.mxu0 0
    %638 = vmatpush1.bf16.xpose.msra.mxu0 0
    %639 = vmatprep.subr.bf16.mxu0 0
    %640 = vmatpush1.bf16.xpose.msra.mxu0 0
    %641 = vmatprep.subr.bf16.mxu0 0
    %642 = vmatpush1.bf16.xpose.msra.mxu0 %v625
    %643 = vmatprep.subr.bf16.mxu0 0
    %644 = vmatpush2.bf16.xpose.msra.mxu0 0
    %645 = vmatprep.subr.bf16.mxu0 0
    %646 = vmatpush2.bf16.xpose.msra.mxu0 0
    %647 = vmatprep.subr.bf16.mxu0 0
    %648 = vmatpush2.bf16.xpose.msra.mxu0 0
    %649 = vmatprep.subr.bf16.mxu0 0
    %650 = vmatpush2.bf16.xpose.msra.mxu0 0
    %651 = vmatprep.subr.bf16.mxu0 0
    %652 = vmatpush2.bf16.xpose.msra.mxu0 0
    %653 = vmatprep.subr.bf16.mxu0 0
    %654 = vmatpush2.bf16.xpose.msra.mxu0 0
    %655 = vmatprep.subr.bf16.mxu0 0
    %656 = vmatpush2.bf16.xpose.msra.mxu0 0
    %657 = vmatprep.subr.bf16.mxu0 0
    %658 = vmatpush2.bf16.xpose.msra.mxu0 0
    %659 = vmatprep.mubr.bf16.mxu0 0
    %660 = vmatmul.mubr.bf16.gmra.mxu0 %v622
    %v661 = vpop.f32.mrf.mxu0
    %v662 = vadd.f32 0.0, %v661
    %v663 = vpop.f32.mrf.mxu0
    %v664 = vpop.f32.mrf.mxu0
    %v665 = vadd.f32 0.0, %v664
    %v666 = vpop.f32.mrf.mxu0
    %667 = vdwg.mxu0
    %v668 = vmul.f32 %v662, 0.35355338
    %v669 = vmul.f32 %v665, 0.35355338
    %v670 = vsel %vm545, %v668, -inf
    %671 = vmax.xlane.f32.xlu0 %v670
    %v672 = vpop.xlane.xlu0 %671
    %v673 = vsel %vm545, %v669, -inf
    %674 = vmax.xlane.f32.xlu0 %v673
    %v675 = vpop.xlane.xlu0 %674
    %v676 = vsub.f32 %v668, %v672
    %v677 = vsub.f32 %v669, %v675
    %v678 = vmul.f32 %v676, 1.442695
    %v679 = vpow.pop %v678
    %v680 = vmul.f32 %v677, 1.442695
    %v681 = vpow.pop %v680
    %v682 = vsel %vm545, %v679, 0.0
    %683 = vadd.xlane.f32.xlu0 %v682
    %v684 = vpop.xlane.xlu0 %683
    %v685 = vsel %vm545, %v681, 0.0
    %686 = vadd.xlane.f32.xlu0 %v685
    %v687 = vpop.xlane.xlu0 %686
    %v688 = vrcp.pop %v684
    %v689 = vrcp.pop %v687
    %v690 = vmul.f32 %v679, %v688
    %v691 = vmul.f32 %v681, %v689
    %v692 = vpack.c.bf16 %v691, %v690
    %694 = vrot.lane.b32.xlu0 %v494, 120
    %v695 = vpop.permute.xlu0 %694
    %v698 = vsel %vm545, %v692, 0
    %700 = vmatprep.subr.bf16.mxu0 0
    %701 = vmatpush1.bf16.msra.mxu0 0
    %702 = vmatprep.subr.bf16.mxu0 0
    %703 = vmatpush1.bf16.msra.mxu0 0
    %704 = vmatprep.subr.bf16.mxu0 0
    %705 = vmatpush1.bf16.msra.mxu0 0
    %706 = vmatprep.subr.bf16.mxu0 0
    %707 = vmatpush1.bf16.msra.mxu0 0
    %708 = vmatprep.subr.bf16.mxu0 0
    %709 = vmatpush1.bf16.msra.mxu0 0
    %710 = vmatprep.subr.bf16.mxu0 0
    %711 = vmatpush1.bf16.msra.mxu0 0
    %712 = vmatprep.subr.bf16.mxu0 0
    %713 = vmatpush1.bf16.msra.mxu0 0
    %714 = vmatprep.subr.bf16.mxu0 0
    %715 = vmatpush1.bf16.msra.mxu0 %v695
    %716 = vmatprep.subr.bf16.mxu0 0
    %717 = vmatpush2.bf16.msra.mxu0 0
    %718 = vmatprep.subr.bf16.mxu0 0
    %719 = vmatpush2.bf16.msra.mxu0 0
    %720 = vmatprep.subr.bf16.mxu0 0
    %721 = vmatpush2.bf16.msra.mxu0 0
    %722 = vmatprep.subr.bf16.mxu0 0
    %723 = vmatpush2.bf16.msra.mxu0 0
    %724 = vmatprep.subr.bf16.mxu0 0
    %725 = vmatpush2.bf16.msra.mxu0 0
    %726 = vmatprep.subr.bf16.mxu0 0
    %727 = vmatpush2.bf16.msra.mxu0 0
    %728 = vmatprep.subr.bf16.mxu0 0
    %729 = vmatpush2.bf16.msra.mxu0 0
    %730 = vmatprep.subr.bf16.mxu0 0
    %731 = vmatpush2.bf16.msra.mxu0 0
    %732 = vmatprep.mubr.bf16.mxu0 0
    %733 = vmatmul.mubr.bf16.gmra.mxu0 %v698
    %v734 = vpop.f32.mrf.mxu0
    %v735 = vadd.f32 0.0, %v734
    %v736 = vpop.f32.mrf.mxu0
    %v737 = vpop.f32.mrf.mxu0
    %v738 = vadd.f32 0.0, %v737
    %v739 = vpop.f32.mrf.mxu0
    %740 = vdwg.mxu0
    %v741 = vpack.c.bf16 %v738, %v735
    %s742 = scalar_lea.vmem %s8, 4
    %v743 = vld [vmem:[%s742] sm:$0xf]
    %v745 = vsel %vm495, %v741, 0
    %vm747 = vcmask 1043456
    %v749 = vsel %vm747, %v743, 0
    %751 = vmatprep.subr.bf16.mxu0 0
    %752 = vmatpush1.bf16.msra.mxu0 0
    %753 = vmatprep.subr.bf16.mxu0 0
    %754 = vmatpush1.bf16.msra.mxu0 0
    %755 = vmatprep.subr.bf16.mxu0 0
    %756 = vmatpush1.bf16.msra.mxu0 0
    %757 = vmatprep.subr.bf16.mxu0 0
    %758 = vmatpush1.bf16.msra.mxu0 0
    %759 = vmatprep.subr.bf16.mxu0 0
    %760 = vmatpush1.bf16.msra.mxu0 0
    %761 = vmatprep.subr.bf16.mxu0 0
    %762 = vmatpush1.bf16.msra.mxu0 0
    %763 = vmatprep.subr.bf16.mxu0 0
    %764 = vmatpush1.bf16.msra.mxu0 0
    %765 = vmatprep.subr.bf16.mxu0 0
    %766 = vmatpush1.bf16.msra.mxu0 %v749
    %767 = vmatprep.subr.bf16.mxu0 0
    %768 = vmatpush2.bf16.msra.mxu0 0
    %769 = vmatprep.subr.bf16.mxu0 0
    %770 = vmatpush2.bf16.msra.mxu0 0
    %771 = vmatprep.subr.bf16.mxu0 0
    %772 = vmatpush2.bf16.msra.mxu0 0
    %773 = vmatprep.subr.bf16.mxu0 0
    %774 = vmatpush2.bf16.msra.mxu0 0
    %775 = vmatprep.subr.bf16.mxu0 0
    %776 = vmatpush2.bf16.msra.mxu0 0
    %777 = vmatprep.subr.bf16.mxu0 0
    %778 = vmatpush2.bf16.msra.mxu0 0
    %779 = vmatprep.subr.bf16.mxu0 0
    %780 = vmatpush2.bf16.msra.mxu0 0
    %781 = vmatprep.subr.bf16.mxu0 0
    %782 = vmatpush2.bf16.msra.mxu0 0
    %783 = vmatprep.mubr.bf16.mxu0 0
    %784 = vmatmul.mubr.bf16.gmra.mxu0 %v745
    %v785 = vpop.f32.mrf.mxu0
    %v786 = vadd.f32 0.0, %v785
    %v787 = vpop.f32.mrf.mxu0
    %v788 = vpop.f32.mrf.mxu0
    %v789 = vadd.f32 0.0, %v788
    %v790 = vpop.f32.mrf.mxu0
    %791 = vdwg.mxu0
    %v793 = vsel %vm495, %v613, 0
    %v796 = vsel %vm747, %v614, 0
    %798 = vmatprep.subr.bf16.mxu0 0
    %799 = vmatpush1.bf16.msra.mxu0 0
    %800 = vmatprep.subr.bf16.mxu0 0
    %801 = vmatpush1.bf16.msra.mxu0 0
    %802 = vmatprep.subr.bf16.mxu0 0
    %803 = vmatpush1.bf16.msra.mxu0 0
    %804 = vmatprep.subr.bf16.mxu0 0
    %805 = vmatpush1.bf16.msra.mxu0 0
    %806 = vmatprep.subr.bf16.mxu0 0
    %807 = vmatpush1.bf16.msra.mxu0 0
    %808 = vmatprep.subr.bf16.mxu0 0
    %809 = vmatpush1.bf16.msra.mxu0 0
    %810 = vmatprep.subr.bf16.mxu0 0
    %811 = vmatpush1.bf16.msra.mxu0 0
    %812 = vmatprep.subr.bf16.mxu0 0
    %813 = vmatpush1.bf16.msra.mxu0 %v796
    %814 = vmatprep.subr.bf16.mxu0 0
    %815 = vmatpush2.bf16.msra.mxu0 0
    %816 = vmatprep.subr.bf16.mxu0 0
    %817 = vmatpush2.bf16.msra.mxu0 0
    %818 = vmatprep.subr.bf16.mxu0 0
    %819 = vmatpush2.bf16.msra.mxu0 0
    %820 = vmatprep.subr.bf16.mxu0 0
    %821 = vmatpush2.bf16.msra.mxu0 0
    %822 = vmatprep.subr.bf16.mxu0 0
    %823 = vmatpush2.bf16.msra.mxu0 0
    %824 = vmatprep.subr.bf16.mxu0 0
    %825 = vmatpush2.bf16.msra.mxu0 0
    %826 = vmatprep.subr.bf16.mxu0 0
    %827 = vmatpush2.bf16.msra.mxu0 0
    %828 = vmatprep.subr.bf16.mxu0 0
    %829 = vmatpush2.bf16.msra.mxu0 0
    %830 = vmatprep.mubr.bf16.mxu0 0
    %831 = vmatmul.mubr.bf16.gmra.mxu0 %v793
    %v832 = vpop.f32.mrf.mxu0
    %v833 = vadd.f32 %v786, %v832
    %v834 = vpop.f32.mrf.mxu0
    %v835 = vpop.f32.mrf.mxu0
    %v836 = vadd.f32 %v789, %v835
    %v837 = vpop.f32.mrf.mxu0
    %838 = vdwg.mxu0
    %839 = vrot.lane.b32.xlu0 %v492, 112
    %v840 = vpop.permute.xlu0 %839
    %841 = vrot.lane.b32.xlu0 %v493, 112
    %v842 = vpop.permute.xlu0 %841
    %v844 = vsel %vm495, %v840, 0
    %v847 = vsel %vm495, %v842, 0
    %849 = vmatprep.subr.bf16.mxu0 0
    %850 = vmatpush1.bf16.xpose.msra.mxu0 0
    %851 = vmatprep.subr.bf16.mxu0 0
    %852 = vmatpush1.bf16.xpose.msra.mxu0 0
    %853 = vmatprep.subr.bf16.mxu0 0
    %854 = vmatpush1.bf16.xpose.msra.mxu0 0
    %855 = vmatprep.subr.bf16.mxu0 0
    %856 = vmatpush1.bf16.xpose.msra.mxu0 0
    %857 = vmatprep.subr.bf16.mxu0 0
    %858 = vmatpush1.bf16.xpose.msra.mxu0 0
    %859 = vmatprep.subr.bf16.mxu0 0
    %860 = vmatpush1.bf16.xpose.msra.mxu0 0
    %861 = vmatprep.subr.bf16.mxu0 0
    %862 = vmatpush1.bf16.xpose.msra.mxu0 0
    %863 = vmatprep.subr.bf16.mxu0 0
    %864 = vmatpush1.bf16.xpose.msra.mxu0 %v847
    %865 = vmatprep.subr.bf16.mxu0 0
    %866 = vmatpush2.bf16.xpose.msra.mxu0 0
    %867 = vmatprep.subr.bf16.mxu0 0
    %868 = vmatpush2.bf16.xpose.msra.mxu0 0
    %869 = vmatprep.subr.bf16.mxu0 0
    %870 = vmatpush2.bf16.xpose.msra.mxu0 0
    %871 = vmatprep.subr.bf16.mxu0 0
    %872 = vmatpush2.bf16.xpose.msra.mxu0 0
    %873 = vmatprep.subr.bf16.mxu0 0
    %874 = vmatpush2.bf16.xpose.msra.mxu0 0
    %875 = vmatprep.subr.bf16.mxu0 0
    %876 = vmatpush2.bf16.xpose.msra.mxu0 0
    %877 = vmatprep.subr.bf16.mxu0 0
    %878 = vmatpush2.bf16.xpose.msra.mxu0 0
    %879 = vmatprep.subr.bf16.mxu0 0
    %880 = vmatpush2.bf16.xpose.msra.mxu0 0
    %881 = vmatprep.mubr.bf16.mxu0 0
    %882 = vmatmul.mubr.bf16.gmra.mxu0 %v844
    %v883 = vpop.f32.mrf.mxu0
    %v884 = vadd.f32 0.0, %v883
    %v885 = vpop.f32.mrf.mxu0
    %v886 = vpop.f32.mrf.mxu0
    %v887 = vadd.f32 0.0, %v886
    %v888 = vpop.f32.mrf.mxu0
    %889 = vdwg.mxu0
    %v890 = vmul.f32 %v884, 0.35355338
    %v891 = vmul.f32 %v887, 0.35355338
    %v892 = vsel %vm545, %v890, -inf
    %893 = vmax.xlane.f32.xlu0 %v892
    %v894 = vpop.xlane.xlu0 %893
    %v895 = vsel %vm545, %v891, -inf
    %896 = vmax.xlane.f32.xlu0 %v895
    %v897 = vpop.xlane.xlu0 %896
    %v898 = vsub.f32 %v890, %v894
    %v899 = vsub.f32 %v891, %v897
    %v900 = vmul.f32 %v898, 1.442695
    %v901 = vpow.pop %v900
    %v902 = vmul.f32 %v899, 1.442695
    %v903 = vpow.pop %v902
    %v904 = vsel %vm545, %v901, 0.0
    %905 = vadd.xlane.f32.xlu0 %v904
    %v906 = vpop.xlane.xlu0 %905
    %v907 = vsel %vm545, %v903, 0.0
    %908 = vadd.xlane.f32.xlu0 %v907
    %v909 = vpop.xlane.xlu0 %908
    %v910 = vrcp.pop %v906
    %v911 = vrcp.pop %v909
    %v912 = vmul.f32 %v901, %v910
    %v913 = vmul.f32 %v903, %v911
    %v914 = vpack.c.bf16 %v913, %v912
    %915 = vrot.lane.b32.xlu0 %v494, 112
    %v916 = vpop.permute.xlu0 %915
    %v919 = vsel %vm545, %v914, 0
    %921 = vmatprep.subr.bf16.mxu0 0
    %922 = vmatpush1.bf16.msra.mxu0 0
    %923 = vmatprep.subr.bf16.mxu0 0
    %924 = vmatpush1.bf16.msra.mxu0 0
    %925 = vmatprep.subr.bf16.mxu0 0
    %926 = vmatpush1.bf16.msra.mxu0 0
    %927 = vmatprep.subr.bf16.mxu0 0
    %928 = vmatpush1.bf16.msra.mxu0 0
    %929 = vmatprep.subr.bf16.mxu0 0
    %930 = vmatpush1.bf16.msra.mxu0 0
    %931 = vmatprep.subr.bf16.mxu0 0
    %932 = vmatpush1.bf16.msra.mxu0 0
    %933 = vmatprep.subr.bf16.mxu0 0
    %934 = vmatpush1.bf16.msra.mxu0 0
    %935 = vmatprep.subr.bf16.mxu0 0
    %936 = vmatpush1.bf16.msra.mxu0 %v916
    %937 = vmatprep.subr.bf16.mxu0 0
    %938 = vmatpush2.bf16.msra.mxu0 0
    %939 = vmatprep.subr.bf16.mxu0 0
    %940 = vmatpush2.bf16.msra.mxu0 0
    %941 = vmatprep.subr.bf16.mxu0 0
    %942 = vmatpush2.bf16.msra.mxu0 0
    %943 = vmatprep.subr.bf16.mxu0 0
    %944 = vmatpush2.bf16.msra.mxu0 0
    %945 = vmatprep.subr.bf16.mxu0 0
    %946 = vmatpush2.bf16.msra.mxu0 0
    %947 = vmatprep.subr.bf16.mxu0 0
    %948 = vmatpush2.bf16.msra.mxu0 0
    %949 = vmatprep.subr.bf16.mxu0 0
    %950 = vmatpush2.bf16.msra.mxu0 0
    %951 = vmatprep.subr.bf16.mxu0 0
    %952 = vmatpush2.bf16.msra.mxu0 0
    %953 = vmatprep.mubr.bf16.mxu0 0
    %954 = vmatmul.mubr.bf16.gmra.mxu0 %v919
    %v955 = vpop.f32.mrf.mxu0
    %v956 = vadd.f32 0.0, %v955
    %v957 = vpop.f32.mrf.mxu0
    %v958 = vpop.f32.mrf.mxu0
    %v959 = vadd.f32 0.0, %v958
    %v960 = vpop.f32.mrf.mxu0
    %961 = vdwg.mxu0
    %v962 = vpack.c.bf16 %v959, %v956
    %s963 = scalar_lea.vmem %s8, 8
    %v964 = vld [vmem:[%s963] sm:$0xf]
    %v966 = vsel %vm495, %v962, 0
    %v969 = vsel %vm747, %v964, 0
    %971 = vmatprep.subr.bf16.mxu0 0
    %972 = vmatpush1.bf16.msra.mxu0 0
    %973 = vmatprep.subr.bf16.mxu0 0
    %974 = vmatpush1.bf16.msra.mxu0 0
    %975 = vmatprep.subr.bf16.mxu0 0
    %976 = vmatpush1.bf16.msra.mxu0 0
    %977 = vmatprep.subr.bf16.mxu0 0
    %978 = vmatpush1.bf16.msra.mxu0 0
    %979 = vmatprep.subr.bf16.mxu0 0
    %980 = vmatpush1.bf16.msra.mxu0 0
    %981 = vmatprep.subr.bf16.mxu0 0
    %982 = vmatpush1.bf16.msra.mxu0 0
    %983 = vmatprep.subr.bf16.mxu0 0
    %984 = vmatpush1.bf16.msra.mxu0 0
    %985 = vmatprep.subr.bf16.mxu0 0
    %986 = vmatpush1.bf16.msra.mxu0 %v969
    %987 = vmatprep.subr.bf16.mxu0 0
    %988 = vmatpush2.bf16.msra.mxu0 0
    %989 = vmatprep.subr.bf16.mxu0 0
    %990 = vmatpush2.bf16.msra.mxu0 0
    %991 = vmatprep.subr.bf16.mxu0 0
    %992 = vmatpush2.bf16.msra.mxu0 0
    %993 = vmatprep.subr.bf16.mxu0 0
    %994 = vmatpush2.bf16.msra.mxu0 0
    %995 = vmatprep.subr.bf16.mxu0 0
    %996 = vmatpush2.bf16.msra.mxu0 0
    %997 = vmatprep.subr.bf16.mxu0 0
    %998 = vmatpush2.bf16.msra.mxu0 0
    %999 = vmatprep.subr.bf16.mxu0 0
    %1000 = vmatpush2.bf16.msra.mxu0 0
    %1001 = vmatprep.subr.bf16.mxu0 0
    %1002 = vmatpush2.bf16.msra.mxu0 0
    %1003 = vmatprep.mubr.bf16.mxu0 0
    %1004 = vmatmul.mubr.bf16.gmra.mxu0 %v966
    %v1005 = vpop.f32.mrf.mxu0
    %v1006 = vadd.f32 0.0, %v1005
    %v1007 = vpop.f32.mrf.mxu0
    %v1008 = vpop.f32.mrf.mxu0
    %v1009 = vadd.f32 0.0, %v1008
    %v1010 = vpop.f32.mrf.mxu0
    %1011 = vdwg.mxu0
    %v1012 = vadd.f32 %v833, %v1006
    %v1013 = vadd.f32 %v836, %v1009
    %1014 = vrot.lane.b32.xlu0 %v492, 104
    %v1015 = vpop.permute.xlu0 %1014
    %1016 = vrot.lane.b32.xlu0 %v493, 104
    %v1017 = vpop.permute.xlu0 %1016
    %v1019 = vsel %vm495, %v1015, 0
    %v1022 = vsel %vm495, %v1017, 0
    %1024 = vmatprep.subr.bf16.mxu0 0
    %1025 = vmatpush1.bf16.xpose.msra.mxu0 0
    %1026 = vmatprep.subr.bf16.mxu0 0
    %1027 = vmatpush1.bf16.xpose.msra.mxu0 0
    %1028 = vmatprep.subr.bf16.mxu0 0
    %1029 = vmatpush1.bf16.xpose.msra.mxu0 0
    %1030 = vmatprep.subr.bf16.mxu0 0
    %1031 = vmatpush1.bf16.xpose.msra.mxu0 0
    %1032 = vmatprep.subr.bf16.mxu0 0
    %1033 = vmatpush1.bf16.xpose.msra.mxu0 0
    %1034 = vmatprep.subr.bf16.mxu0 0
    %1035 = vmatpush1.bf16.xpose.msra.mxu0 0
    %1036 = vmatprep.subr.bf16.mxu0 0
    %1037 = vmatpush1.bf16.xpose.msra.mxu0 0
    %1038 = vmatprep.subr.bf16.mxu0 0
    %1039 = vmatpush1.bf16.xpose.msra.mxu0 %v1022
    %1040 = vmatprep.subr.bf16.mxu0 0
    %1041 = vmatpush2.bf16.xpose.msra.mxu0 0
    %1042 = vmatprep.subr.bf16.mxu0 0
    %1043 = vmatpush2.bf16.xpose.msra.mxu0 0
    %1044 = vmatprep.subr.bf16.mxu0 0
    %1045 = vmatpush2.bf16.xpose.msra.mxu0 0
    %1046 = vmatprep.subr.bf16.mxu0 0
    %1047 = vmatpush2.bf16.xpose.msra.mxu0 0
    %1048 = vmatprep.subr.bf16.mxu0 0
    %1049 = vmatpush2.bf16.xpose.msra.mxu0 0
    %1050 = vmatprep.subr.bf16.mxu0 0
    %1051 = vmatpush2.bf16.xpose.msra.mxu0 0
    %1052 = vmatprep.subr.bf16.mxu0 0
    %1053 = vmatpush2.bf16.xpose.msra.mxu0 0
    %1054 = vmatprep.subr.bf16.mxu0 0
    %1055 = vmatpush2.bf16.xpose.msra.mxu0 0
    %1056 = vmatprep.mubr.bf16.mxu0 0
    %1057 = vmatmul.mubr.bf16.gmra.mxu0 %v1019
    %v1058 = vpop.f32.mrf.mxu0
    %v1059 = vadd.f32 0.0, %v1058
    %v1060 = vpop.f32.mrf.mxu0
    %v1061 = vpop.f32.mrf.mxu0
    %v1062 = vadd.f32 0.0, %v1061
    %v1063 = vpop.f32.mrf.mxu0
    %1064 = vdwg.mxu0
    %v1065 = vmul.f32 %v1059, 0.35355338
    %v1066 = vmul.f32 %v1062, 0.35355338
    %v1067 = vsel %vm545, %v1065, -inf
    %1068 = vmax.xlane.f32.xlu0 %v1067
    %v1069 = vpop.xlane.xlu0 %1068
    %v1070 = vsel %vm545, %v1066, -inf
    %1071 = vmax.xlane.f32.xlu0 %v1070
    %v1072 = vpop.xlane.xlu0 %1071
    %v1073 = vsub.f32 %v1065, %v1069
    %v1074 = vsub.f32 %v1066, %v1072
    %v1075 = vmul.f32 %v1073, 1.442695
    %v1076 = vpow.pop %v1075
    %v1077 = vmul.f32 %v1074, 1.442695
    %v1078 = vpow.pop %v1077
    %v1079 = vsel %vm545, %v1076, 0.0
    %1080 = vadd.xlane.f32.xlu0 %v1079
    %v1081 = vpop.xlane.xlu0 %1080
    %v1082 = vsel %vm545, %v1078, 0.0
    %1083 = vadd.xlane.f32.xlu0 %v1082
    %v1084 = vpop.xlane.xlu0 %1083
    %v1085 = vrcp.pop %v1081
    %v1086 = vrcp.pop %v1084
    %v1087 = vmul.f32 %v1076, %v1085
    %v1088 = vmul.f32 %v1078, %v1086
    %v1089 = vpack.c.bf16 %v1088, %v1087
    %1090 = vrot.lane.b32.xlu0 %v494, 104
    %v1091 = vpop.permute.xlu0 %1090
    %v1094 = vsel %vm545, %v1089, 0
    %1096 = vmatprep.subr.bf16.mxu0 0
    %1097 = vmatpush1.bf16.msra.mxu0 0
    %1098 = vmatprep.subr.bf16.mxu0 0
    %1099 = vmatpush1.bf16.msra.mxu0 0
    %1100 = vmatprep.subr.bf16.mxu0 0
    %1101 = vmatpush1.bf16.msra.mxu0 0
    %1102 = vmatprep.subr.bf16.mxu0 0
    %1103 = vmatpush1.bf16.msra.mxu0 0
    %1104 = vmatprep.subr.bf16.mxu0 0
    %1105 = vmatpush1.bf16.msra.mxu0 0
    %1106 = vmatprep.subr.bf16.mxu0 0
    %1107 = vmatpush1.bf16.msra.mxu0 0
    %1108 = vmatprep.subr.bf16.mxu0 0
    %1109 = vmatpush1.bf16.msra.mxu0 0
    %1110 = vmatprep.subr.bf16.mxu0 0
    %1111 = vmatpush1.bf16.msra.mxu0 %v1091
    %1112 = vmatprep.subr.bf16.mxu0 0
    %1113 = vmatpush2.bf16.msra.mxu0 0
    %1114 = vmatprep.subr.bf16.mxu0 0
    %1115 = vmatpush2.bf16.msra.mxu0 0
    %1116 = vmatprep.subr.bf16.mxu0 0
    %1117 = vmatpush2.bf16.msra.mxu0 0
    %1118 = vmatprep.subr.bf16.mxu0 0
    %1119 = vmatpush2.bf16.msra.mxu0 0
    %1120 = vmatprep.subr.bf16.mxu0 0
    %1121 = vmatpush2.bf16.msra.mxu0 0
    %1122 = vmatprep.subr.bf16.mxu0 0
    %1123 = vmatpush2.bf16.msra.mxu0 0
    %1124 = vmatprep.subr.bf16.mxu0 0
    %1125 = vmatpush2.bf16.msra.mxu0 0
    %1126 = vmatprep.subr.bf16.mxu0 0
    %1127 = vmatpush2.bf16.msra.mxu0 0
    %1128 = vmatprep.mubr.bf16.mxu0 0
    %1129 = vmatmul.mubr.bf16.gmra.mxu0 %v1094
    %v1130 = vpop.f32.mrf.mxu0
    %v1131 = vadd.f32 0.0, %v1130
    %v1132 = vpop.f32.mrf.mxu0
    %v1133 = vpop.f32.mrf.mxu0
    %v1134 = vadd.f32 0.0, %v1133
    %v1135 = vpop.f32.mrf.mxu0
    %1136 = vdwg.mxu0
    %v1137 = vpack.c.bf16 %v1134, %v1131
    %s1138 = scalar_lea.vmem %s8, 12
    %v1139 = vld [vmem:[%s1138] sm:$0xf]
    %v1141 = vsel %vm495, %v1137, 0
    %v1144 = vsel %vm747, %v1139, 0
    %1146 = vmatprep.subr.bf16.mxu0 0
    %1147 = vmatpush1.bf16.msra.mxu0 0
    %1148 = vmatprep.subr.bf16.mxu0 0
    %1149 = vmatpush1.bf16.msra.mxu0 0
    %1150 = vmatprep.subr.bf16.mxu0 0
    %1151 = vmatpush1.bf16.msra.mxu0 0
    %1152 = vmatprep.subr.bf16.mxu0 0
    %1153 = vmatpush1.bf16.msra.mxu0 0
    %1154 = vmatprep.subr.bf16.mxu0 0
    %1155 = vmatpush1.bf16.msra.mxu0 0
    %1156 = vmatprep.subr.bf16.mxu0 0
    %1157 = vmatpush1.bf16.msra.mxu0 0
    %1158 = vmatprep.subr.bf16.mxu0 0
    %1159 = vmatpush1.bf16.msra.mxu0 0
    %1160 = vmatprep.subr.bf16.mxu0 0
    %1161 = vmatpush1.bf16.msra.mxu0 %v1144
    %1162 = vmatprep.subr.bf16.mxu0 0
    %1163 = vmatpush2.bf16.msra.mxu0 0
    %1164 = vmatprep.subr.bf16.mxu0 0
    %1165 = vmatpush2.bf16.msra.mxu0 0
    %1166 = vmatprep.subr.bf16.mxu0 0
    %1167 = vmatpush2.bf16.msra.mxu0 0
    %1168 = vmatprep.subr.bf16.mxu0 0
    %1169 = vmatpush2.bf16.msra.mxu0 0
    %1170 = vmatprep.subr.bf16.mxu0 0
    %1171 = vmatpush2.bf16.msra.mxu0 0
    %1172 = vmatprep.subr.bf16.mxu0 0
    %1173 = vmatpush2.bf16.msra.mxu0 0
    %1174 = vmatprep.subr.bf16.mxu0 0
    %1175 = vmatpush2.bf16.msra.mxu0 0
    %1176 = vmatprep.subr.bf16.mxu0 0
    %1177 = vmatpush2.bf16.msra.mxu0 0
    %1178 = vmatprep.mubr.bf16.mxu0 0
    %1179 = vmatmul.mubr.bf16.gmra.mxu0 %v1141
    %v1180 = vpop.f32.mrf.mxu0
    %v1181 = vadd.f32 0.0, %v1180
    %v1182 = vpop.f32.mrf.mxu0
    %v1183 = vpop.f32.mrf.mxu0
    %v1184 = vadd.f32 0.0, %v1183
    %v1185 = vpop.f32.mrf.mxu0
    %1186 = vdwg.mxu0
    %v1187 = vadd.f32 %v1012, %v1181
    %v1188 = vadd.f32 %v1013, %v1184
    %v1189 = vpack.c.bf16 %v341, %v338
    %v1190 = vpack.c.bf16 %v415, %v412
    %v1191 = vpack.c.bf16 %v489, %v486
    %v1193 = vsel %vm495, %v1189, 0
    %v1196 = vsel %vm495, %v1190, 0
    %1198 = vmatprep.subr.bf16.mxu0 0
    %1199 = vmatpush1.bf16.xpose.msra.mxu0 0
    %1200 = vmatprep.subr.bf16.mxu0 0
    %1201 = vmatpush1.bf16.xpose.msra.mxu0 0
    %1202 = vmatprep.subr.bf16.mxu0 0
    %1203 = vmatpush1.bf16.xpose.msra.mxu0 0
    %1204 = vmatprep.subr.bf16.mxu0 0
    %1205 = vmatpush1.bf16.xpose.msra.mxu0 0
    %1206 = vmatprep.subr.bf16.mxu0 0
    %1207 = vmatpush1.bf16.xpose.msra.mxu0 0
    %1208 = vmatprep.subr.bf16.mxu0 0
    %1209 = vmatpush1.bf16.xpose.msra.mxu0 0
    %1210 = vmatprep.subr.bf16.mxu0 0
    %1211 = vmatpush1.bf16.xpose.msra.mxu0 0
    %1212 = vmatprep.subr.bf16.mxu0 0
    %1213 = vmatpush1.bf16.xpose.msra.mxu0 %v1196
    %1214 = vmatprep.subr.bf16.mxu0 0
    %1215 = vmatpush2.bf16.xpose.msra.mxu0 0
    %1216 = vmatprep.subr.bf16.mxu0 0
    %1217 = vmatpush2.bf16.xpose.msra.mxu0 0
    %1218 = vmatprep.subr.bf16.mxu0 0
    %1219 = vmatpush2.bf16.xpose.msra.mxu0 0
    %1220 = vmatprep.subr.bf16.mxu0 0
    %1221 = vmatpush2.bf16.xpose.msra.mxu0 0
    %1222 = vmatprep.subr.bf16.mxu0 0
    %1223 = vmatpush2.bf16.xpose.msra.mxu0 0
    %1224 = vmatprep.subr.bf16.mxu0 0
    %1225 = vmatpush2.bf16.xpose.msra.mxu0 0
    %1226 = vmatprep.subr.bf16.mxu0 0
    %1227 = vmatpush2.bf16.xpose.msra.mxu0 0
    %1228 = vmatprep.subr.bf16.mxu0 0
    %1229 = vmatpush2.bf16.xpose.msra.mxu0 0
    %1230 = vmatprep.mubr.bf16.mxu0 0
    %1231 = vmatmul.mubr.bf16.gmra.mxu0 %v1193
    %v1232 = vpop.f32.mrf.mxu0
    %v1233 = vadd.f32 0.0, %v1232
    %v1234 = vpop.f32.mrf.mxu0
    %v1235 = vpop.f32.mrf.mxu0
    %v1236 = vadd.f32 0.0, %v1235
    %v1237 = vpop.f32.mrf.mxu0
    %1238 = vdwg.mxu0
    %v1239 = vmul.f32 %v1233, 0.35355338
    %v1240 = vmul.f32 %v1236, 0.35355338
    %v1241 = vsel %vm545, %v1239, -inf
    %1242 = vmax.xlane.f32.xlu0 %v1241
    %v1243 = vpop.xlane.xlu0 %1242
    %v1244 = vsel %vm545, %v1240, -inf
    %1245 = vmax.xlane.f32.xlu0 %v1244
    %v1246 = vpop.xlane.xlu0 %1245
    %v1247 = vsub.f32 %v1239, %v1243
    %v1248 = vsub.f32 %v1240, %v1246
    %v1249 = vmul.f32 %v1247, 1.442695
    %v1250 = vpow.pop %v1249
    %v1251 = vmul.f32 %v1248, 1.442695
    %v1252 = vpow.pop %v1251
    %v1253 = vsel %vm545, %v1250, 0.0
    %1254 = vadd.xlane.f32.xlu0 %v1253
    %v1255 = vpop.xlane.xlu0 %1254
    %v1256 = vsel %vm545, %v1252, 0.0
    %1257 = vadd.xlane.f32.xlu0 %v1256
    %v1258 = vpop.xlane.xlu0 %1257
    %v1259 = vrcp.pop %v1255
    %v1260 = vrcp.pop %v1258
    %v1261 = vmul.f32 %v1250, %v1259
    %v1262 = vmul.f32 %v1252, %v1260
    %v1263 = vpack.c.bf16 %v1262, %v1261
    %v1265 = vsel %vm545, %v1263, 0
    %1267 = vmatprep.subr.bf16.mxu0 0
    %1268 = vmatpush1.bf16.msra.mxu0 0
    %1269 = vmatprep.subr.bf16.mxu0 0
    %1270 = vmatpush1.bf16.msra.mxu0 0
    %1271 = vmatprep.subr.bf16.mxu0 0
    %1272 = vmatpush1.bf16.msra.mxu0 0
    %1273 = vmatprep.subr.bf16.mxu0 0
    %1274 = vmatpush1.bf16.msra.mxu0 0
    %1275 = vmatprep.subr.bf16.mxu0 0
    %1276 = vmatpush1.bf16.msra.mxu0 0
    %1277 = vmatprep.subr.bf16.mxu0 0
    %1278 = vmatpush1.bf16.msra.mxu0 0
    %1279 = vmatprep.subr.bf16.mxu0 0
    %1280 = vmatpush1.bf16.msra.mxu0 0
    %1281 = vmatprep.subr.bf16.mxu0 0
    %1282 = vmatpush1.bf16.msra.mxu0 %v1191
    %1283 = vmatprep.subr.bf16.mxu0 0
    %1284 = vmatpush2.bf16.msra.mxu0 0
    %1285 = vmatprep.subr.bf16.mxu0 0
    %1286 = vmatpush2.bf16.msra.mxu0 0
    %1287 = vmatprep.subr.bf16.mxu0 0
    %1288 = vmatpush2.bf16.msra.mxu0 0
    %1289 = vmatprep.subr.bf16.mxu0 0
    %1290 = vmatpush2.bf16.msra.mxu0 0
    %1291 = vmatprep.subr.bf16.mxu0 0
    %1292 = vmatpush2.bf16.msra.mxu0 0
    %1293 = vmatprep.subr.bf16.mxu0 0
    %1294 = vmatpush2.bf16.msra.mxu0 0
    %1295 = vmatprep.subr.bf16.mxu0 0
    %1296 = vmatpush2.bf16.msra.mxu0 0
    %1297 = vmatprep.subr.bf16.mxu0 0
    %1298 = vmatpush2.bf16.msra.mxu0 0
    %1299 = vmatprep.mubr.bf16.mxu0 0
    %1300 = vmatmul.mubr.bf16.gmra.mxu0 %v1265
    %v1301 = vpop.f32.mrf.mxu0
    %v1302 = vadd.f32 0.0, %v1301
    %v1303 = vpop.f32.mrf.mxu0
    %v1304 = vpop.f32.mrf.mxu0
    %v1305 = vadd.f32 0.0, %v1304
    %v1306 = vpop.f32.mrf.mxu0
    %1307 = vdwg.mxu0
    %v1308 = vpack.c.bf16 %v1305, %v1302
    %1310 = vrot.lane.b32.xlu0 %v1189, 120
    %v1311 = vpop.permute.xlu0 %1310
    %1313 = vrot.lane.b32.xlu0 %v1190, 120
    %v1314 = vpop.permute.xlu0 %1313
    %v1316 = vsel %vm495, %v1311, 0
    %v1319 = vsel %vm495, %v1314, 0
    %1321 = vmatprep.subr.bf16.mxu0 0
    %1322 = vmatpush1.bf16.xpose.msra.mxu0 0
    %1323 = vmatprep.subr.bf16.mxu0 0
    %1324 = vmatpush1.bf16.xpose.msra.mxu0 0
    %1325 = vmatprep.subr.bf16.mxu0 0
    %1326 = vmatpush1.bf16.xpose.msra.mxu0 0
    %1327 = vmatprep.subr.bf16.mxu0 0
    %1328 = vmatpush1.bf16.xpose.msra.mxu0 0
    %1329 = vmatprep.subr.bf16.mxu0 0
    %1330 = vmatpush1.bf16.xpose.msra.mxu0 0
    %1331 = vmatprep.subr.bf16.mxu0 0
    %1332 = vmatpush1.bf16.xpose.msra.mxu0 0
    %1333 = vmatprep.subr.bf16.mxu0 0
    %1334 = vmatpush1.bf16.xpose.msra.mxu0 0
    %1335 = vmatprep.subr.bf16.mxu0 0
    %1336 = vmatpush1.bf16.xpose.msra.mxu0 %v1319
    %1337 = vmatprep.subr.bf16.mxu0 0
    %1338 = vmatpush2.bf16.xpose.msra.mxu0 0
    %1339 = vmatprep.subr.bf16.mxu0 0
    %1340 = vmatpush2.bf16.xpose.msra.mxu0 0
    %1341 = vmatprep.subr.bf16.mxu0 0
    %1342 = vmatpush2.bf16.xpose.msra.mxu0 0
    %1343 = vmatprep.subr.bf16.mxu0 0
    %1344 = vmatpush2.bf16.xpose.msra.mxu0 0
    %1345 = vmatprep.subr.bf16.mxu0 0
    %1346 = vmatpush2.bf16.xpose.msra.mxu0 0
    %1347 = vmatprep.subr.bf16.mxu0 0
    %1348 = vmatpush2.bf16.xpose.msra.mxu0 0
    %1349 = vmatprep.subr.bf16.mxu0 0
    %1350 = vmatpush2.bf16.xpose.msra.mxu0 0
    %1351 = vmatprep.subr.bf16.mxu0 0
    %1352 = vmatpush2.bf16.xpose.msra.mxu0 0
    %1353 = vmatprep.mubr.bf16.mxu0 0
    %1354 = vmatmul.mubr.bf16.gmra.mxu0 %v1316
    %v1355 = vpop.f32.mrf.mxu0
    %v1356 = vadd.f32 0.0, %v1355
    %v1357 = vpop.f32.mrf.mxu0
    %v1358 = vpop.f32.mrf.mxu0
    %v1359 = vadd.f32 0.0, %v1358
    %v1360 = vpop.f32.mrf.mxu0
    %1361 = vdwg.mxu0
    %v1362 = vmul.f32 %v1356, 0.35355338
    %v1363 = vmul.f32 %v1359, 0.35355338
    %v1364 = vsel %vm545, %v1362, -inf
    %1365 = vmax.xlane.f32.xlu0 %v1364
    %v1366 = vpop.xlane.xlu0 %1365
    %v1367 = vsel %vm545, %v1363, -inf
    %1368 = vmax.xlane.f32.xlu0 %v1367
    %v1369 = vpop.xlane.xlu0 %1368
    %v1370 = vsub.f32 %v1362, %v1366
    %v1371 = vsub.f32 %v1363, %v1369
    %v1372 = vmul.f32 %v1370, 1.442695
    %v1373 = vpow.pop %v1372
    %v1374 = vmul.f32 %v1371, 1.442695
    %v1375 = vpow.pop %v1374
    %v1376 = vsel %vm545, %v1373, 0.0
    %1377 = vadd.xlane.f32.xlu0 %v1376
    %v1378 = vpop.xlane.xlu0 %1377
    %v1379 = vsel %vm545, %v1375, 0.0
    %1380 = vadd.xlane.f32.xlu0 %v1379
    %v1381 = vpop.xlane.xlu0 %1380
    %v1382 = vrcp.pop %v1378
    %v1383 = vrcp.pop %v1381
    %v1384 = vmul.f32 %v1373, %v1382
    %v1385 = vmul.f32 %v1375, %v1383
    %v1386 = vpack.c.bf16 %v1385, %v1384
    %1388 = vrot.lane.b32.xlu0 %v1191, 120
    %v1389 = vpop.permute.xlu0 %1388
    %v1392 = vsel %vm545, %v1386, 0
    %1394 = vmatprep.subr.bf16.mxu0 0
    %1395 = vmatpush1.bf16.msra.mxu0 0
    %1396 = vmatprep.subr.bf16.mxu0 0
    %1397 = vmatpush1.bf16.msra.mxu0 0
    %1398 = vmatprep.subr.bf16.mxu0 0
    %1399 = vmatpush1.bf16.msra.mxu0 0
    %1400 = vmatprep.subr.bf16.mxu0 0
    %1401 = vmatpush1.bf16.msra.mxu0 0
    %1402 = vmatprep.subr.bf16.mxu0 0
    %1403 = vmatpush1.bf16.msra.mxu0 0
    %1404 = vmatprep.subr.bf16.mxu0 0
    %1405 = vmatpush1.bf16.msra.mxu0 0
    %1406 = vmatprep.subr.bf16.mxu0 0
    %1407 = vmatpush1.bf16.msra.mxu0 0
    %1408 = vmatprep.subr.bf16.mxu0 0
    %1409 = vmatpush1.bf16.msra.mxu0 %v1389
    %1410 = vmatprep.subr.bf16.mxu0 0
    %1411 = vmatpush2.bf16.msra.mxu0 0
    %1412 = vmatprep.subr.bf16.mxu0 0
    %1413 = vmatpush2.bf16.msra.mxu0 0
    %1414 = vmatprep.subr.bf16.mxu0 0
    %1415 = vmatpush2.bf16.msra.mxu0 0
    %1416 = vmatprep.subr.bf16.mxu0 0
    %1417 = vmatpush2.bf16.msra.mxu0 0
    %1418 = vmatprep.subr.bf16.mxu0 0
    %1419 = vmatpush2.bf16.msra.mxu0 0
    %1420 = vmatprep.subr.bf16.mxu0 0
    %1421 = vmatpush2.bf16.msra.mxu0 0
    %1422 = vmatprep.subr.bf16.mxu0 0
    %1423 = vmatpush2.bf16.msra.mxu0 0
    %1424 = vmatprep.subr.bf16.mxu0 0
    %1425 = vmatpush2.bf16.msra.mxu0 0
    %1426 = vmatprep.mubr.bf16.mxu0 0
    %1427 = vmatmul.mubr.bf16.gmra.mxu0 %v1392
    %v1428 = vpop.f32.mrf.mxu0
    %v1429 = vadd.f32 0.0, %v1428
    %v1430 = vpop.f32.mrf.mxu0
    %v1431 = vpop.f32.mrf.mxu0
    %v1432 = vadd.f32 0.0, %v1431
    %v1433 = vpop.f32.mrf.mxu0
    %1434 = vdwg.mxu0
    %v1435 = vpack.c.bf16 %v1432, %v1429
    %v1437 = vsel %vm495, %v1435, 0
    %1439 = vmatprep.subr.bf16.mxu0 0
    %1440 = vmatpush1.bf16.msra.mxu0 0
    %1441 = vmatprep.subr.bf16.mxu0 0
    %1442 = vmatpush1.bf16.msra.mxu0 0
    %1443 = vmatprep.subr.bf16.mxu0 0
    %1444 = vmatpush1.bf16.msra.mxu0 0
    %1445 = vmatprep.subr.bf16.mxu0 0
    %1446 = vmatpush1.bf16.msra.mxu0 0
    %1447 = vmatprep.subr.bf16.mxu0 0
    %1448 = vmatpush1.bf16.msra.mxu0 0
    %1449 = vmatprep.subr.bf16.mxu0 0
    %1450 = vmatpush1.bf16.msra.mxu0 0
    %1451 = vmatprep.subr.bf16.mxu0 0
    %1452 = vmatpush1.bf16.msra.mxu0 0
    %1453 = vmatprep.subr.bf16.mxu0 0
    %1454 = vmatpush1.bf16.msra.mxu0 %v749
    %1455 = vmatprep.subr.bf16.mxu0 0
    %1456 = vmatpush2.bf16.msra.mxu0 0
    %1457 = vmatprep.subr.bf16.mxu0 0
    %1458 = vmatpush2.bf16.msra.mxu0 0
    %1459 = vmatprep.subr.bf16.mxu0 0
    %1460 = vmatpush2.bf16.msra.mxu0 0
    %1461 = vmatprep.subr.bf16.mxu0 0
    %1462 = vmatpush2.bf16.msra.mxu0 0
    %1463 = vmatprep.subr.bf16.mxu0 0
    %1464 = vmatpush2.bf16.msra.mxu0 0
    %1465 = vmatprep.subr.bf16.mxu0 0
    %1466 = vmatpush2.bf16.msra.mxu0 0
    %1467 = vmatprep.subr.bf16.mxu0 0
    %1468 = vmatpush2.bf16.msra.mxu0 0
    %1469 = vmatprep.subr.bf16.mxu0 0
    %1470 = vmatpush2.bf16.msra.mxu0 0
    %1471 = vmatprep.mubr.bf16.mxu0 0
    %1472 = vmatmul.mubr.bf16.gmra.mxu0 %v1437
    %v1473 = vpop.f32.mrf.mxu0
    %v1474 = vadd.f32 0.0, %v1473
    %v1475 = vpop.f32.mrf.mxu0
    %v1476 = vpop.f32.mrf.mxu0
    %v1477 = vadd.f32 0.0, %v1476
    %v1478 = vpop.f32.mrf.mxu0
    %1479 = vdwg.mxu0
    %v1481 = vsel %vm495, %v1308, 0
    %1483 = vmatprep.subr.bf16.mxu0 0
    %1484 = vmatpush1.bf16.msra.mxu0 0
    %1485 = vmatprep.subr.bf16.mxu0 0
    %1486 = vmatpush1.bf16.msra.mxu0 0
    %1487 = vmatprep.subr.bf16.mxu0 0
    %1488 = vmatpush1.bf16.msra.mxu0 0
    %1489 = vmatprep.subr.bf16.mxu0 0
    %1490 = vmatpush1.bf16.msra.mxu0 0
    %1491 = vmatprep.subr.bf16.mxu0 0
    %1492 = vmatpush1.bf16.msra.mxu0 0
    %1493 = vmatprep.subr.bf16.mxu0 0
    %1494 = vmatpush1.bf16.msra.mxu0 0
    %1495 = vmatprep.subr.bf16.mxu0 0
    %1496 = vmatpush1.bf16.msra.mxu0 0
    %1497 = vmatprep.subr.bf16.mxu0 0
    %1498 = vmatpush1.bf16.msra.mxu0 %v796
    %1499 = vmatprep.subr.bf16.mxu0 0
    %1500 = vmatpush2.bf16.msra.mxu0 0
    %1501 = vmatprep.subr.bf16.mxu0 0
    %1502 = vmatpush2.bf16.msra.mxu0 0
    %1503 = vmatprep.subr.bf16.mxu0 0
    %1504 = vmatpush2.bf16.msra.mxu0 0
    %1505 = vmatprep.subr.bf16.mxu0 0
    %1506 = vmatpush2.bf16.msra.mxu0 0
    %1507 = vmatprep.subr.bf16.mxu0 0
    %1508 = vmatpush2.bf16.msra.mxu0 0
    %1509 = vmatprep.subr.bf16.mxu0 0
    %1510 = vmatpush2.bf16.msra.mxu0 0
    %1511 = vmatprep.subr.bf16.mxu0 0
    %1512 = vmatpush2.bf16.msra.mxu0 0
    %1513 = vmatprep.subr.bf16.mxu0 0
    %1514 = vmatpush2.bf16.msra.mxu0 0
    %1515 = vmatprep.mubr.bf16.mxu0 0
    %1516 = vmatmul.mubr.bf16.gmra.mxu0 %v1481
    %v1517 = vpop.f32.mrf.mxu0
    %v1518 = vadd.f32 %v1474, %v1517
    %v1519 = vpop.f32.mrf.mxu0
    %v1520 = vpop.f32.mrf.mxu0
    %v1521 = vadd.f32 %v1477, %v1520
    %v1522 = vpop.f32.mrf.mxu0
    %1523 = vdwg.mxu0
    %1524 = vrot.lane.b32.xlu0 %v1189, 112
    %v1525 = vpop.permute.xlu0 %1524
    %1526 = vrot.lane.b32.xlu0 %v1190, 112
    %v1527 = vpop.permute.xlu0 %1526
    %v1529 = vsel %vm495, %v1525, 0
    %v1532 = vsel %vm495, %v1527, 0
    %1534 = vmatprep.subr.bf16.mxu0 0
    %1535 = vmatpush1.bf16.xpose.msra.mxu0 0
    %1536 = vmatprep.subr.bf16.mxu0 0
    %1537 = vmatpush1.bf16.xpose.msra.mxu0 0
    %1538 = vmatprep.subr.bf16.mxu0 0
    %1539 = vmatpush1.bf16.xpose.msra.mxu0 0
    %1540 = vmatprep.subr.bf16.mxu0 0
    %1541 = vmatpush1.bf16.xpose.msra.mxu0 0
    %1542 = vmatprep.subr.bf16.mxu0 0
    %1543 = vmatpush1.bf16.xpose.msra.mxu0 0
    %1544 = vmatprep.subr.bf16.mxu0 0
    %1545 = vmatpush1.bf16.xpose.msra.mxu0 0
    %1546 = vmatprep.subr.bf16.mxu0 0
    %1547 = vmatpush1.bf16.xpose.msra.mxu0 0
    %1548 = vmatprep.subr.bf16.mxu0 0
    %1549 = vmatpush1.bf16.xpose.msra.mxu0 %v1532
    %1550 = vmatprep.subr.bf16.mxu0 0
    %1551 = vmatpush2.bf16.xpose.msra.mxu0 0
    %1552 = vmatprep.subr.bf16.mxu0 0
    %1553 = vmatpush2.bf16.xpose.msra.mxu0 0
    %1554 = vmatprep.subr.bf16.mxu0 0
    %1555 = vmatpush2.bf16.xpose.msra.mxu0 0
    %1556 = vmatprep.subr.bf16.mxu0 0
    %1557 = vmatpush2.bf16.xpose.msra.mxu0 0
    %1558 = vmatprep.subr.bf16.mxu0 0
    %1559 = vmatpush2.bf16.xpose.msra.mxu0 0
    %1560 = vmatprep.subr.bf16.mxu0 0
    %1561 = vmatpush2.bf16.xpose.msra.mxu0 0
    %1562 = vmatprep.subr.bf16.mxu0 0
    %1563 = vmatpush2.bf16.xpose.msra.mxu0 0
    %1564 = vmatprep.subr.bf16.mxu0 0
    %1565 = vmatpush2.bf16.xpose.msra.mxu0 0
    %1566 = vmatprep.mubr.bf16.mxu0 0
    %1567 = vmatmul.mubr.bf16.gmra.mxu0 %v1529
    %v1568 = vpop.f32.mrf.mxu0
    %v1569 = vadd.f32 0.0, %v1568
    %v1570 = vpop.f32.mrf.mxu0
    %v1571 = vpop.f32.mrf.mxu0
    %v1572 = vadd.f32 0.0, %v1571
    %v1573 = vpop.f32.mrf.mxu0
    %1574 = vdwg.mxu0
    %v1575 = vmul.f32 %v1569, 0.35355338
    %v1576 = vmul.f32 %v1572, 0.35355338
    %v1577 = vsel %vm545, %v1575, -inf
    %1578 = vmax.xlane.f32.xlu0 %v1577
    %v1579 = vpop.xlane.xlu0 %1578
    %v1580 = vsel %vm545, %v1576, -inf
    %1581 = vmax.xlane.f32.xlu0 %v1580
    %v1582 = vpop.xlane.xlu0 %1581
    %v1583 = vsub.f32 %v1575, %v1579
    %v1584 = vsub.f32 %v1576, %v1582
    %v1585 = vmul.f32 %v1583, 1.442695
    %v1586 = vpow.pop %v1585
    %v1587 = vmul.f32 %v1584, 1.442695
    %v1588 = vpow.pop %v1587
    %v1589 = vsel %vm545, %v1586, 0.0
    %1590 = vadd.xlane.f32.xlu0 %v1589
    %v1591 = vpop.xlane.xlu0 %1590
    %v1592 = vsel %vm545, %v1588, 0.0
    %1593 = vadd.xlane.f32.xlu0 %v1592
    %v1594 = vpop.xlane.xlu0 %1593
    %v1595 = vrcp.pop %v1591
    %v1596 = vrcp.pop %v1594
    %v1597 = vmul.f32 %v1586, %v1595
    %v1598 = vmul.f32 %v1588, %v1596
    %v1599 = vpack.c.bf16 %v1598, %v1597
    %1600 = vrot.lane.b32.xlu0 %v1191, 112
    %v1601 = vpop.permute.xlu0 %1600
    %v1604 = vsel %vm545, %v1599, 0
    %1606 = vmatprep.subr.bf16.mxu0 0
    %1607 = vmatpush1.bf16.msra.mxu0 0
    %1608 = vmatprep.subr.bf16.mxu0 0
    %1609 = vmatpush1.bf16.msra.mxu0 0
    %1610 = vmatprep.subr.bf16.mxu0 0
    %1611 = vmatpush1.bf16.msra.mxu0 0
    %1612 = vmatprep.subr.bf16.mxu0 0
    %1613 = vmatpush1.bf16.msra.mxu0 0
    %1614 = vmatprep.subr.bf16.mxu0 0
    %1615 = vmatpush1.bf16.msra.mxu0 0
    %1616 = vmatprep.subr.bf16.mxu0 0
    %1617 = vmatpush1.bf16.msra.mxu0 0
    %1618 = vmatprep.subr.bf16.mxu0 0
    %1619 = vmatpush1.bf16.msra.mxu0 0
    %1620 = vmatprep.subr.bf16.mxu0 0
    %1621 = vmatpush1.bf16.msra.mxu0 %v1601
    %1622 = vmatprep.subr.bf16.mxu0 0
    %1623 = vmatpush2.bf16.msra.mxu0 0
    %1624 = vmatprep.subr.bf16.mxu0 0
    %1625 = vmatpush2.bf16.msra.mxu0 0
    %1626 = vmatprep.subr.bf16.mxu0 0
    %1627 = vmatpush2.bf16.msra.mxu0 0
    %1628 = vmatprep.subr.bf16.mxu0 0
    %1629 = vmatpush2.bf16.msra.mxu0 0
    %1630 = vmatprep.subr.bf16.mxu0 0
    %1631 = vmatpush2.bf16.msra.mxu0 0
    %1632 = vmatprep.subr.bf16.mxu0 0
    %1633 = vmatpush2.bf16.msra.mxu0 0
    %1634 = vmatprep.subr.bf16.mxu0 0
    %1635 = vmatpush2.bf16.msra.mxu0 0
    %1636 = vmatprep.subr.bf16.mxu0 0
    %1637 = vmatpush2.bf16.msra.mxu0 0
    %1638 = vmatprep.mubr.bf16.mxu0 0
    %1639 = vmatmul.mubr.bf16.gmra.mxu0 %v1604
    %v1640 = vpop.f32.mrf.mxu0
    %v1641 = vadd.f32 0.0, %v1640
    %v1642 = vpop.f32.mrf.mxu0
    %v1643 = vpop.f32.mrf.mxu0
    %v1644 = vadd.f32 0.0, %v1643
    %v1645 = vpop.f32.mrf.mxu0
    %1646 = vdwg.mxu0
    %v1647 = vpack.c.bf16 %v1644, %v1641
    %v1649 = vsel %vm495, %v1647, 0
    %1651 = vmatprep.subr.bf16.mxu0 0
    %1652 = vmatpush1.bf16.msra.mxu0 0
    %1653 = vmatprep.subr.bf16.mxu0 0
    %1654 = vmatpush1.bf16.msra.mxu0 0
    %1655 = vmatprep.subr.bf16.mxu0 0
    %1656 = vmatpush1.bf16.msra.mxu0 0
    %1657 = vmatprep.subr.bf16.mxu0 0
    %1658 = vmatpush1.bf16.msra.mxu0 0
    %1659 = vmatprep.subr.bf16.mxu0 0
    %1660 = vmatpush1.bf16.msra.mxu0 0
    %1661 = vmatprep.subr.bf16.mxu0 0
    %1662 = vmatpush1.bf16.msra.mxu0 0
    %1663 = vmatprep.subr.bf16.mxu0 0
    %1664 = vmatpush1.bf16.msra.mxu0 0
    %1665 = vmatprep.subr.bf16.mxu0 0
    %1666 = vmatpush1.bf16.msra.mxu0 %v969
    %1667 = vmatprep.subr.bf16.mxu0 0
    %1668 = vmatpush2.bf16.msra.mxu0 0
    %1669 = vmatprep.subr.bf16.mxu0 0
    %1670 = vmatpush2.bf16.msra.mxu0 0
    %1671 = vmatprep.subr.bf16.mxu0 0
    %1672 = vmatpush2.bf16.msra.mxu0 0
    %1673 = vmatprep.subr.bf16.mxu0 0
    %1674 = vmatpush2.bf16.msra.mxu0 0
    %1675 = vmatprep.subr.bf16.mxu0 0
    %1676 = vmatpush2.bf16.msra.mxu0 0
    %1677 = vmatprep.subr.bf16.mxu0 0
    %1678 = vmatpush2.bf16.msra.mxu0 0
    %1679 = vmatprep.subr.bf16.mxu0 0
    %1680 = vmatpush2.bf16.msra.mxu0 0
    %1681 = vmatprep.subr.bf16.mxu0 0
    %1682 = vmatpush2.bf16.msra.mxu0 0
    %1683 = vmatprep.mubr.bf16.mxu0 0
    %1684 = vmatmul.mubr.bf16.gmra.mxu0 %v1649
    %v1685 = vpop.f32.mrf.mxu0
    %v1686 = vadd.f32 0.0, %v1685
    %v1687 = vpop.f32.mrf.mxu0
    %v1688 = vpop.f32.mrf.mxu0
    %v1689 = vadd.f32 0.0, %v1688
    %v1690 = vpop.f32.mrf.mxu0
    %1691 = vdwg.mxu0
    %v1692 = vadd.f32 %v1518, %v1686
    %v1693 = vadd.f32 %v1521, %v1689
    %1694 = vrot.lane.b32.xlu0 %v1189, 104
    %v1695 = vpop.permute.xlu0 %1694
    %1696 = vrot.lane.b32.xlu0 %v1190, 104
    %v1697 = vpop.permute.xlu0 %1696
    %v1699 = vsel %vm495, %v1695, 0
    %v1702 = vsel %vm495, %v1697, 0
    %1704 = vmatprep.subr.bf16.mxu0 0
    %1705 = vmatpush1.bf16.xpose.msra.mxu0 0
    %1706 = vmatprep.subr.bf16.mxu0 0
    %1707 = vmatpush1.bf16.xpose.msra.mxu0 0
    %1708 = vmatprep.subr.bf16.mxu0 0
    %1709 = vmatpush1.bf16.xpose.msra.mxu0 0
    %1710 = vmatprep.subr.bf16.mxu0 0
    %1711 = vmatpush1.bf16.xpose.msra.mxu0 0
    %1712 = vmatprep.subr.bf16.mxu0 0
    %1713 = vmatpush1.bf16.xpose.msra.mxu0 0
    %1714 = vmatprep.subr.bf16.mxu0 0
    %1715 = vmatpush1.bf16.xpose.msra.mxu0 0
    %1716 = vmatprep.subr.bf16.mxu0 0
    %1717 = vmatpush1.bf16.xpose.msra.mxu0 0
    %1718 = vmatprep.subr.bf16.mxu0 0
    %1719 = vmatpush1.bf16.xpose.msra.mxu0 %v1702
    %1720 = vmatprep.subr.bf16.mxu0 0
    %1721 = vmatpush2.bf16.xpose.msra.mxu0 0
    %1722 = vmatprep.subr.bf16.mxu0 0
    %1723 = vmatpush2.bf16.xpose.msra.mxu0 0
    %1724 = vmatprep.subr.bf16.mxu0 0
    %1725 = vmatpush2.bf16.xpose.msra.mxu0 0
    %1726 = vmatprep.subr.bf16.mxu0 0
    %1727 = vmatpush2.bf16.xpose.msra.mxu0 0
    %1728 = vmatprep.subr.bf16.mxu0 0
    %1729 = vmatpush2.bf16.xpose.msra.mxu0 0
    %1730 = vmatprep.subr.bf16.mxu0 0
    %1731 = vmatpush2.bf16.xpose.msra.mxu0 0
    %1732 = vmatprep.subr.bf16.mxu0 0
    %1733 = vmatpush2.bf16.xpose.msra.mxu0 0
    %1734 = vmatprep.subr.bf16.mxu0 0
    %1735 = vmatpush2.bf16.xpose.msra.mxu0 0
    %1736 = vmatprep.mubr.bf16.mxu0 0
    %1737 = vmatmul.mubr.bf16.gmra.mxu0 %v1699
    %v1738 = vpop.f32.mrf.mxu0
    %v1739 = vadd.f32 0.0, %v1738
    %v1740 = vpop.f32.mrf.mxu0
    %v1741 = vpop.f32.mrf.mxu0
    %v1742 = vadd.f32 0.0, %v1741
    %v1743 = vpop.f32.mrf.mxu0
    %1744 = vdwg.mxu0
    %v1745 = vmul.f32 %v1739, 0.35355338
    %v1746 = vmul.f32 %v1742, 0.35355338
    %v1747 = vsel %vm545, %v1745, -inf
    %1748 = vmax.xlane.f32.xlu0 %v1747
    %v1749 = vpop.xlane.xlu0 %1748
    %v1750 = vsel %vm545, %v1746, -inf
    %1751 = vmax.xlane.f32.xlu0 %v1750
    %v1752 = vpop.xlane.xlu0 %1751
    %v1753 = vsub.f32 %v1745, %v1749
    %v1754 = vsub.f32 %v1746, %v1752
    %v1755 = vmul.f32 %v1753, 1.442695
    %v1756 = vpow.pop %v1755
    %v1757 = vmul.f32 %v1754, 1.442695
    %v1758 = vpow.pop %v1757
    %v1759 = vsel %vm545, %v1756, 0.0
    %1760 = vadd.xlane.f32.xlu0 %v1759
    %v1761 = vpop.xlane.xlu0 %1760
    %v1762 = vsel %vm545, %v1758, 0.0
    %1763 = vadd.xlane.f32.xlu0 %v1762
    %v1764 = vpop.xlane.xlu0 %1763
    %v1765 = vrcp.pop %v1761
    %v1766 = vrcp.pop %v1764
    %v1767 = vmul.f32 %v1756, %v1765
    %v1768 = vmul.f32 %v1758, %v1766
    %v1769 = vpack.c.bf16 %v1768, %v1767
    %1770 = vrot.lane.b32.xlu0 %v1191, 104
    %v1771 = vpop.permute.xlu0 %1770
    %v1774 = vsel %vm545, %v1769, 0
    %1776 = vmatprep.subr.bf16.mxu0 0
    %1777 = vmatpush1.bf16.msra.mxu0 0
    %1778 = vmatprep.subr.bf16.mxu0 0
    %1779 = vmatpush1.bf16.msra.mxu0 0
    %1780 = vmatprep.subr.bf16.mxu0 0
    %1781 = vmatpush1.bf16.msra.mxu0 0
    %1782 = vmatprep.subr.bf16.mxu0 0
    %1783 = vmatpush1.bf16.msra.mxu0 0
    %1784 = vmatprep.subr.bf16.mxu0 0
    %1785 = vmatpush1.bf16.msra.mxu0 0
    %1786 = vmatprep.subr.bf16.mxu0 0
    %1787 = vmatpush1.bf16.msra.mxu0 0
    %1788 = vmatprep.subr.bf16.mxu0 0
    %1789 = vmatpush1.bf16.msra.mxu0 0
    %1790 = vmatprep.subr.bf16.mxu0 0
    %1791 = vmatpush1.bf16.msra.mxu0 %v1771
    %1792 = vmatprep.subr.bf16.mxu0 0
    %1793 = vmatpush2.bf16.msra.mxu0 0
    %1794 = vmatprep.subr.bf16.mxu0 0
    %1795 = vmatpush2.bf16.msra.mxu0 0
    %1796 = vmatprep.subr.bf16.mxu0 0
    %1797 = vmatpush2.bf16.msra.mxu0 0
    %1798 = vmatprep.subr.bf16.mxu0 0
    %1799 = vmatpush2.bf16.msra.mxu0 0
    %1800 = vmatprep.subr.bf16.mxu0 0
    %1801 = vmatpush2.bf16.msra.mxu0 0
    %1802 = vmatprep.subr.bf16.mxu0 0
    %1803 = vmatpush2.bf16.msra.mxu0 0
    %1804 = vmatprep.subr.bf16.mxu0 0
    %1805 = vmatpush2.bf16.msra.mxu0 0
    %1806 = vmatprep.subr.bf16.mxu0 0
    %1807 = vmatpush2.bf16.msra.mxu0 0
    %1808 = vmatprep.mubr.bf16.mxu0 0
    %1809 = vmatmul.mubr.bf16.gmra.mxu0 %v1774
    %v1810 = vpop.f32.mrf.mxu0
    %v1811 = vadd.f32 0.0, %v1810
    %v1812 = vpop.f32.mrf.mxu0
    %v1813 = vpop.f32.mrf.mxu0
    %v1814 = vadd.f32 0.0, %v1813
    %v1815 = vpop.f32.mrf.mxu0
    %1816 = vdwg.mxu0
    %v1817 = vpack.c.bf16 %v1814, %v1811
    %v1819 = vsel %vm495, %v1817, 0
    %1821 = vmatprep.subr.bf16.mxu0 0
    %1822 = vmatpush1.bf16.msra.mxu0 0
    %1823 = vmatprep.subr.bf16.mxu0 0
    %1824 = vmatpush1.bf16.msra.mxu0 0
    %1825 = vmatprep.subr.bf16.mxu0 0
    %1826 = vmatpush1.bf16.msra.mxu0 0
    %1827 = vmatprep.subr.bf16.mxu0 0
    %1828 = vmatpush1.bf16.msra.mxu0 0
    %1829 = vmatprep.subr.bf16.mxu0 0
    %1830 = vmatpush1.bf16.msra.mxu0 0
    %1831 = vmatprep.subr.bf16.mxu0 0
    %1832 = vmatpush1.bf16.msra.mxu0 0
    %1833 = vmatprep.subr.bf16.mxu0 0
    %1834 = vmatpush1.bf16.msra.mxu0 0
    %1835 = vmatprep.subr.bf16.mxu0 0
    %1836 = vmatpush1.bf16.msra.mxu0 %v1144
    %1837 = vmatprep.subr.bf16.mxu0 0
    %1838 = vmatpush2.bf16.msra.mxu0 0
    %1839 = vmatprep.subr.bf16.mxu0 0
    %1840 = vmatpush2.bf16.msra.mxu0 0
    %1841 = vmatprep.subr.bf16.mxu0 0
    %1842 = vmatpush2.bf16.msra.mxu0 0
    %1843 = vmatprep.subr.bf16.mxu0 0
    %1844 = vmatpush2.bf16.msra.mxu0 0
    %1845 = vmatprep.subr.bf16.mxu0 0
    %1846 = vmatpush2.bf16.msra.mxu0 0
    %1847 = vmatprep.subr.bf16.mxu0 0
    %1848 = vmatpush2.bf16.msra.mxu0 0
    %1849 = vmatprep.subr.bf16.mxu0 0
    %1850 = vmatpush2.bf16.msra.mxu0 0
    %1851 = vmatprep.subr.bf16.mxu0 0
    %1852 = vmatpush2.bf16.msra.mxu0 0
    %1853 = vmatprep.mubr.bf16.mxu0 0
    %1854 = vmatmul.mubr.bf16.gmra.mxu0 %v1819
    %v1855 = vpop.f32.mrf.mxu0
    %v1856 = vadd.f32 0.0, %v1855
    %v1857 = vpop.f32.mrf.mxu0
    %v1858 = vpop.f32.mrf.mxu0
    %v1859 = vadd.f32 0.0, %v1858
    %v1860 = vpop.f32.mrf.mxu0
    %1861 = vdwg.mxu0
    %v1862 = vadd.f32 %v1692, %v1856
    %v1863 = vadd.f32 %v1693, %v1859
    %v1864 = vld [vmem:[%s9] sm:$0x1]
    %v1866 = vlaneseq
    %v1867 = vshrl.u32 %v1866, 7
    %v1868 = vsub.s32 0, %v1867
    %v1869 = vrot.slane %v1864, %v1868
    %v1871 = vadd.f32 %v1187, %v1869
    %v1872 = vadd.f32 %v1188, %v1869
    %v1873 = vadd.f32 %v1862, %v1869
    %v1874 = vadd.f32 %v1863, %v1869
    %v1875 = vadd.f32 %v184, %v1871
    %v1876 = vadd.f32 %v185, %v1872
    %v1877 = vadd.f32 %v186, %v1873
    %v1878 = vadd.f32 %v187, %v1874
    %v1879 = vld [vmem:[%s10] sm:$0x1]
    %v1880 = vld [vmem:[%s11] sm:$0x1]
    %v1881 = vsel %vm190, %v1875, 0.0
    %1882 = vadd.xlane.f32.xlu0 %v1881
    %v1883 = vpop.xlane.xlu0 %1882
    %v1884 = vsel %vm190, %v1876, 0.0
    %1885 = vadd.xlane.f32.xlu0 %v1884
    %v1886 = vpop.xlane.xlu0 %1885
    %v1887 = vsel %vm190, %v1877, 0.0
    %1888 = vadd.xlane.f32.xlu0 %v1887
    %v1889 = vpop.xlane.xlu0 %1888
    %v1890 = vsel %vm190, %v1878, 0.0
    %1891 = vadd.xlane.f32.xlu0 %v1890
    %v1892 = vpop.xlane.xlu0 %1891
    %v1893 = vmul.f32 %v1883, %v203
    %v1894 = vmul.f32 %v1886, %v203
    %v1895 = vmul.f32 %v1889, %v203
    %v1896 = vmul.f32 %v1892, %v203
    %v1897 = vsub.f32 %v1875, %v1893
    %v1898 = vsub.f32 %v1876, %v1894
    %v1899 = vsub.f32 %v1877, %v1895
    %v1900 = vsub.f32 %v1878, %v1896
    %v1901 = vmul.f32 %v1897, %v1897
    %v1902 = vmul.f32 %v1898, %v1898
    %v1903 = vmul.f32 %v1899, %v1899
    %v1904 = vmul.f32 %v1900, %v1900
    %v1905 = vsel %vm190, %v1901, 0.0
    %1906 = vadd.xlane.f32.xlu0 %v1905
    %v1907 = vpop.xlane.xlu0 %1906
    %v1908 = vsel %vm190, %v1902, 0.0
    %1909 = vadd.xlane.f32.xlu0 %v1908
    %v1910 = vpop.xlane.xlu0 %1909
    %v1911 = vsel %vm190, %v1903, 0.0
    %1912 = vadd.xlane.f32.xlu0 %v1911
    %v1913 = vpop.xlane.xlu0 %1912
    %v1914 = vsel %vm190, %v1904, 0.0
    %1915 = vadd.xlane.f32.xlu0 %v1914
    %v1916 = vpop.xlane.xlu0 %1915
    %v1917 = vmul.f32 %v1907, %v203
    %v1918 = vmul.f32 %v1910, %v203
    %v1919 = vmul.f32 %v1913, %v203
    %v1920 = vmul.f32 %v1916, %v203
    %v1921 = vadd.f32 %v1917, 1e-05
    %v1922 = vadd.f32 %v1918, 1e-05
    %v1923 = vadd.f32 %v1919, 1e-05
    %v1924 = vadd.f32 %v1920, 1e-05
    %v1925 = vrsqrt.pop %v1921
    %v1926 = vrsqrt.pop %v1922
    %v1927 = vrsqrt.pop %v1923
    %v1928 = vrsqrt.pop %v1924
    %v1929 = vmul.f32 %v1897, %v1925
    %v1930 = vmul.f32 %v1898, %v1926
    %v1931 = vmul.f32 %v1899, %v1927
    %v1932 = vmul.f32 %v1900, %v1928
    %v1934 = vlaneseq
    %v1935 = vshrl.u32 %v1934, 7
    %v1936 = vsub.s32 0, %v1935
    %v1937 = vrot.slane %v1879, %v1936
    %v1939 = vmul.f32 %v1929, %v1937
    %v1940 = vmul.f32 %v1930, %v1937
    %v1941 = vmul.f32 %v1931, %v1937
    %v1942 = vmul.f32 %v1932, %v1937
    %v1944 = vlaneseq
    %v1945 = vshrl.u32 %v1944, 7
    %v1946 = vsub.s32 0, %v1945
    %v1947 = vrot.slane %v1880, %v1946
    %v1949 = vadd.f32 %v1939, %v1947
    %v1950 = vadd.f32 %v1940, %v1947
    %v1951 = vadd.f32 %v1941, %v1947
    %v1952 = vadd.f32 %v1942, %v1947
    %v1953 = vpack.c.bf16 %v1950, %v1949
    %v1954 = vpack.c.bf16 %v1952, %v1951
    %v1955 = vld [vmem:[%s12] sm:$0xf]
    %v1956 = vld [vmem:[%s12 + $0x4] sm:$0xf]
    %v1957 = vld [vmem:[%s12 + $0x8] sm:$0xf]
    %v1958 = vld [vmem:[%s12 + $0xc] sm:$0xf]
    %v1959 = vld [vmem:[%s13] sm:$0x1]
    %v1961 = vlaneseq
    %v1962 = vshrl.u32 %v1961, 7
    %v1963 = vsub.s32 0, %v1962
    %v1964 = vrot.slane %v1959, %v1963
    %v1970 = vunpack.c.l.b16 %v1955
    %v1971 = vunpack.c.l.b16 %v1956
    %v1972 = vunpack.c.l.b16 %v1957
    %v1973 = vunpack.c.l.b16 %v1958
    %v1974 = vpack.c.b16 %v1971, %v1970
    %v1975 = vpack.c.b16 %v1973, %v1972
    %v1979 = vsel %vm190, %v1953, 0
    %v1982 = vsel %vm190, %v1954, 0
    %1984 = vmatprep.subr.bf16.mxu0 0
    %1985 = vmatpush1.bf16.msra.mxu0 0
    %1986 = vmatprep.subr.bf16.mxu0 0
    %1987 = vmatpush1.bf16.msra.mxu0 0
    %1988 = vmatprep.subr.bf16.mxu0 0
    %1989 = vmatpush1.bf16.msra.mxu0 0
    %1990 = vmatprep.subr.bf16.mxu0 0
    %1991 = vmatpush1.bf16.msra.mxu0 0
    %1992 = vmatprep.subr.bf16.mxu0 0
    %1993 = vmatpush1.bf16.msra.mxu0 0
    %1994 = vmatprep.subr.bf16.mxu0 0
    %1995 = vmatpush1.bf16.msra.mxu0 0
    %1996 = vmatprep.subr.bf16.mxu0 0
    %1997 = vmatpush1.bf16.msra.mxu0 %v1975
    %1998 = vmatprep.subr.bf16.mxu0 0
    %1999 = vmatpush1.bf16.msra.mxu0 %v1974
    %2000 = vmatprep.subr.bf16.mxu0 0
    %2001 = vmatpush2.bf16.msra.mxu0 0
    %2002 = vmatprep.subr.bf16.mxu0 0
    %2003 = vmatpush2.bf16.msra.mxu0 0
    %2004 = vmatprep.subr.bf16.mxu0 0
    %2005 = vmatpush2.bf16.msra.mxu0 0
    %2006 = vmatprep.subr.bf16.mxu0 0
    %2007 = vmatpush2.bf16.msra.mxu0 0
    %2008 = vmatprep.subr.bf16.mxu0 0
    %2009 = vmatpush2.bf16.msra.mxu0 0
    %2010 = vmatprep.subr.bf16.mxu0 0
    %2011 = vmatpush2.bf16.msra.mxu0 0
    %2012 = vmatprep.subr.bf16.mxu0 0
    %2013 = vmatpush2.bf16.msra.mxu0 0
    %2014 = vmatprep.subr.bf16.mxu0 0
    %2015 = vmatpush2.bf16.msra.mxu0 0
    %2016 = vmatprep.mubr.bf16.mxu0 0
    %2017 = vmatmul.mubr.bf16.gmra.mxu0 %v1979
    %v2018 = vpop.f32.mrf.mxu0
    %v2019 = vadd.f32 %v1964, %v2018
    %v2020 = vpop.f32.mrf.mxu0
    %v2021 = vpop.f32.mrf.mxu0
    %v2022 = vadd.f32 %v1964, %v2021
    %v2023 = vpop.f32.mrf.mxu0
    %2024 = vmatprep.mubr.bf16.mxu0 0
    %2025 = vmatmul.mubr.bf16.gmra.mxu0 %v1982
    %v2026 = vpop.f32.mrf.mxu0
    %v2027 = vadd.f32 %v1964, %v2026
    %v2028 = vpop.f32.mrf.mxu0
    %v2029 = vpop.f32.mrf.mxu0
    %v2030 = vadd.f32 %v1964, %v2029
    %v2031 = vpop.f32.mrf.mxu0
    %2032 = vdwg.mxu0
    %v2033 = vmul.f32 %v2019, %v2019
    %v2034 = vmul.f32 %v2022, %v2022
    %v2035 = vmul.f32 %v2027, %v2027
    %v2036 = vmul.f32 %v2030, %v2030
    %v2037 = vmul.f32 %v2019, %v2033
    %v2038 = vmul.f32 %v2022, %v2034
    %v2039 = vmul.f32 %v2027, %v2035
    %v2040 = vmul.f32 %v2030, %v2036
    %v2041 = vmul.f32 %v2037, 0.044715
    %v2042 = vmul.f32 %v2038, 0.044715
    %v2043 = vmul.f32 %v2039, 0.044715
    %v2044 = vmul.f32 %v2040, 0.044715
    %v2045 = vadd.f32 %v2019, %v2041
    %v2046 = vadd.f32 %v2022, %v2042
    %v2047 = vadd.f32 %v2027, %v2043
    %v2048 = vadd.f32 %v2030, %v2044
    %v2049 = vmul.f32 %v2045, 0.7978846
    %v2050 = vmul.f32 %v2046, 0.7978846
    %v2051 = vmul.f32 %v2047, 0.7978846
    %v2052 = vmul.f32 %v2048, 0.7978846
    %v2053 = vtanh.pop %v2049
    %v2054 = vtanh.pop %v2050
    %v2055 = vtanh.pop %v2051
    %v2056 = vtanh.pop %v2052
    %v2057 = vadd.f32 %v2053, 1.0
    %v2058 = vadd.f32 %v2054, 1.0
    %v2059 = vadd.f32 %v2055, 1.0
    %v2060 = vadd.f32 %v2056, 1.0
    %v2061 = vmul.f32 %v2057, 0.5
    %v2062 = vmul.f32 %v2058, 0.5
    %v2063 = vmul.f32 %v2059, 0.5
    %v2064 = vmul.f32 %v2060, 0.5
    %v2065 = vmul.f32 %v2019, %v2061
    %v2066 = vmul.f32 %v2022, %v2062
    %v2067 = vmul.f32 %v2027, %v2063
    %v2068 = vmul.f32 %v2030, %v2064
    %v2069 = vpack.c.bf16 %v2066, %v2065
    %v2070 = vpack.c.bf16 %v2068, %v2067
    %v2071 = vld [vmem:[%s14] sm:$0xf]
    %v2072 = vld [vmem:[%s14 + $0x4] sm:$0xf]
    %v2073 = vld [vmem:[%s14 + $0x8] sm:$0xf]
    %v2074 = vld [vmem:[%s14 + $0xc] sm:$0xf]
    %v2075 = vld [vmem:[%s14 + $0x10] sm:$0xf]
    %v2076 = vld [vmem:[%s14 + $0x14] sm:$0xf]
    %v2077 = vld [vmem:[%s14 + $0x18] sm:$0xf]
    %v2078 = vld [vmem:[%s14 + $0x1c] sm:$0xf]
    %v2079 = vld [vmem:[%s14 + $0x20] sm:$0xf]
    %v2080 = vld [vmem:[%s14 + $0x24] sm:$0xf]
    %v2081 = vld [vmem:[%s14 + $0x28] sm:$0xf]
    %v2082 = vld [vmem:[%s14 + $0x2c] sm:$0xf]
    %v2083 = vld [vmem:[%s14 + $0x30] sm:$0xf]
    %v2084 = vld [vmem:[%s14 + $0x34] sm:$0xf]
    %v2085 = vld [vmem:[%s14 + $0x38] sm:$0xf]
    %v2086 = vld [vmem:[%s14 + $0x3c] sm:$0xf]
    %v2087 = vld [vmem:[%s15] sm:$0x1]
    %v2089 = vlaneseq
    %v2090 = vshrl.u32 %v2089, 7
    %v2091 = vsub.s32 0, %v2090
    %v2092 = vrot.slane %v2087, %v2091
    %v2110 = vunpack.c.l.b16 %v2071
    %v2111 = vunpack.c.l.b16 %v2072
    %v2112 = vunpack.c.l.b16 %v2073
    %v2113 = vunpack.c.l.b16 %v2074
    %v2114 = vunpack.c.l.b16 %v2075
    %v2115 = vunpack.c.l.b16 %v2076
    %v2116 = vunpack.c.l.b16 %v2077
    %v2117 = vunpack.c.l.b16 %v2078
    %v2118 = vunpack.c.l.b16 %v2079
    %v2119 = vunpack.c.l.b16 %v2080
    %v2120 = vunpack.c.l.b16 %v2081
    %v2121 = vunpack.c.l.b16 %v2082
    %v2122 = vunpack.c.l.b16 %v2083
    %v2123 = vunpack.c.l.b16 %v2084
    %v2124 = vunpack.c.l.b16 %v2085
    %v2125 = vunpack.c.l.b16 %v2086
    %v2126 = vpack.c.b16 %v2111, %v2110
    %v2127 = vpack.c.b16 %v2113, %v2112
    %v2128 = vpack.c.b16 %v2115, %v2114
    %v2129 = vpack.c.b16 %v2117, %v2116
    %v2130 = vpack.c.b16 %v2119, %v2118
    %v2131 = vpack.c.b16 %v2121, %v2120
    %v2132 = vpack.c.b16 %v2123, %v2122
    %v2133 = vpack.c.b16 %v2125, %v2124
    %2142 = vmatprep.subr.bf16.mxu0 0
    %2143 = vmatpush1.bf16.msra.mxu0 %v2133
    %2144 = vmatprep.subr.bf16.mxu0 0
    %2145 = vmatpush1.bf16.msra.mxu0 %v2132
    %2146 = vmatprep.subr.bf16.mxu0 0
    %2147 = vmatpush1.bf16.msra.mxu0 %v2131
    %2148 = vmatprep.subr.bf16.mxu0 0
    %2149 = vmatpush1.bf16.msra.mxu0 %v2130
    %2150 = vmatprep.subr.bf16.mxu0 0
    %2151 = vmatpush1.bf16.msra.mxu0 %v2129
    %2152 = vmatprep.subr.bf16.mxu0 0
    %2153 = vmatpush1.bf16.msra.mxu0 %v2128
    %2154 = vmatprep.subr.bf16.mxu0 0
    %2155 = vmatpush1.bf16.msra.mxu0 %v2127
    %2156 = vmatprep.subr.bf16.mxu0 0
    %2157 = vmatpush1.bf16.msra.mxu0 %v2126
    %2158 = vmatprep.subr.bf16.mxu0 0
    %2159 = vmatpush2.bf16.msra.mxu0 0
    %2160 = vmatprep.subr.bf16.mxu0 0
    %2161 = vmatpush2.bf16.msra.mxu0 0
    %2162 = vmatprep.subr.bf16.mxu0 0
    %2163 = vmatpush2.bf16.msra.mxu0 0
    %2164 = vmatprep.subr.bf16.mxu0 0
    %2165 = vmatpush2.bf16.msra.mxu0 0
    %2166 = vmatprep.subr.bf16.mxu0 0
    %2167 = vmatpush2.bf16.msra.mxu0 0
    %2168 = vmatprep.subr.bf16.mxu0 0
    %2169 = vmatpush2.bf16.msra.mxu0 0
    %2170 = vmatprep.subr.bf16.mxu0 0
    %2171 = vmatpush2.bf16.msra.mxu0 0
    %2172 = vmatprep.subr.bf16.mxu0 0
    %2173 = vmatpush2.bf16.msra.mxu0 0
    %2174 = vmatprep.mubr.bf16.mxu0 0
    %2175 = vmatmul.mubr.bf16.gmra.mxu0 %v2069
    %v2176 = vpop.f32.mrf.mxu0
    %v2177 = vadd.f32 %v2092, %v2176
    %v2178 = vpop.f32.mrf.mxu0
    %v2179 = vpop.f32.mrf.mxu0
    %v2180 = vadd.f32 %v2092, %v2179
    %v2181 = vpop.f32.mrf.mxu0
    %2182 = vmatprep.mubr.bf16.mxu0 0
    %2183 = vmatmul.mubr.bf16.gmra.mxu0 %v2070
    %v2184 = vpop.f32.mrf.mxu0
    %v2185 = vadd.f32 %v2092, %v2184
    %v2186 = vpop.f32.mrf.mxu0
    %v2187 = vpop.f32.mrf.mxu0
    %v2188 = vadd.f32 %v2092, %v2187
    %v2189 = vpop.f32.mrf.mxu0
    %2190 = vdwg.mxu0
    %v2191 = vadd.f32 %v1875, %v2177
    %v2192 = vadd.f32 %v1876, %v2180
    %v2193 = vadd.f32 %v1877, %v2185
    %v2194 = vadd.f32 %v1878, %v2188
    %s2195 = scalar_lea.vmem %s4, 1
    %v2196 = vld [vmem:[%s2195] sm:$0x1]
    %s2197 = scalar_lea.vmem %s5, 1
    %v2198 = vld [vmem:[%s2197] sm:$0x1]
    %v2199 = vsel %vm190, %v2191, 0.0
    %2200 = vadd.xlane.f32.xlu0 %v2199
    %v2201 = vpop.xlane.xlu0 %2200
    %v2202 = vsel %vm190, %v2192, 0.0
    %2203 = vadd.xlane.f32.xlu0 %v2202
    %v2204 = vpop.xlane.xlu0 %2203
    %v2205 = vsel %vm190, %v2193, 0.0
    %2206 = vadd.xlane.f32.xlu0 %v2205
    %v2207 = vpop.xlane.xlu0 %2206
    %v2208 = vsel %vm190, %v2194, 0.0
    %2209 = vadd.xlane.f32.xlu0 %v2208
    %v2210 = vpop.xlane.xlu0 %2209
    %v2211 = vmul.f32 %v2201, %v203
    %v2212 = vmul.f32 %v2204, %v203
    %v2213 = vmul.f32 %v2207, %v203
    %v2214 = vmul.f32 %v2210, %v203
    %v2215 = vsub.f32 %v2191, %v2211
    %v2216 = vsub.f32 %v2192, %v2212
    %v2217 = vsub.f32 %v2193, %v2213
    %v2218 = vsub.f32 %v2194, %v2214
    %v2219 = vmul.f32 %v2215, %v2215
    %v2220 = vmul.f32 %v2216, %v2216
    %v2221 = vmul.f32 %v2217, %v2217
    %v2222 = vmul.f32 %v2218, %v2218
    %v2223 = vsel %vm190, %v2219, 0.0
    %2224 = vadd.xlane.f32.xlu0 %v2223
    %v2225 = vpop.xlane.xlu0 %2224
    %v2226 = vsel %vm190, %v2220, 0.0
    %2227 = vadd.xlane.f32.xlu0 %v2226
    %v2228 = vpop.xlane.xlu0 %2227
    %v2229 = vsel %vm190, %v2221, 0.0
    %2230 = vadd.xlane.f32.xlu0 %v2229
    %v2231 = vpop.xlane.xlu0 %2230
    %v2232 = vsel %vm190, %v2222, 0.0
    %2233 = vadd.xlane.f32.xlu0 %v2232
    %v2234 = vpop.xlane.xlu0 %2233
    %v2235 = vmul.f32 %v2225, %v203
    %v2236 = vmul.f32 %v2228, %v203
    %v2237 = vmul.f32 %v2231, %v203
    %v2238 = vmul.f32 %v2234, %v203
    %v2239 = vadd.f32 %v2235, 1e-05
    %v2240 = vadd.f32 %v2236, 1e-05
    %v2241 = vadd.f32 %v2237, 1e-05
    %v2242 = vadd.f32 %v2238, 1e-05
    %v2243 = vrsqrt.pop %v2239
    %v2244 = vrsqrt.pop %v2240
    %v2245 = vrsqrt.pop %v2241
    %v2246 = vrsqrt.pop %v2242
    %v2247 = vmul.f32 %v2215, %v2243
    %v2248 = vmul.f32 %v2216, %v2244
    %v2249 = vmul.f32 %v2217, %v2245
    %v2250 = vmul.f32 %v2218, %v2246
    %v2252 = vlaneseq
    %v2253 = vshrl.u32 %v2252, 7
    %v2254 = vsub.s32 0, %v2253
    %v2255 = vrot.slane %v2196, %v2254
    %v2257 = vmul.f32 %v2247, %v2255
    %v2258 = vmul.f32 %v2248, %v2255
    %v2259 = vmul.f32 %v2249, %v2255
    %v2260 = vmul.f32 %v2250, %v2255
    %v2262 = vlaneseq
    %v2263 = vshrl.u32 %v2262, 7
    %v2264 = vsub.s32 0, %v2263
    %v2265 = vrot.slane %v2198, %v2264
    %v2267 = vadd.f32 %v2257, %v2265
    %v2268 = vadd.f32 %v2258, %v2265
    %v2269 = vadd.f32 %v2259, %v2265
    %v2270 = vadd.f32 %v2260, %v2265
    %v2271 = vpack.c.bf16 %v2268, %v2267
    %v2272 = vpack.c.bf16 %v2270, %v2269
    %s2273 = scalar_lea.vmem %s6, 48
    %v2274 = vld [vmem:[%s2273] sm:$0xf]
    %v2275 = vld [vmem:[%s2273 + $0x4] sm:$0xf]
    %v2276 = vld [vmem:[%s2273 + $0x8] sm:$0xf]
    %v2277 = vld [vmem:[%s2273 + $0xc] sm:$0xf]
    %s2278 = scalar_lea.vmem %s7, 3
    %v2279 = vld [vmem:[%s2278] sm:$0x1]
    %v2281 = vlaneseq
    %v2282 = vshrl.u32 %v2281, 7
    %v2283 = vsub.s32 0, %v2282
    %v2284 = vrot.slane %v2279, %v2283
    %v2290 = vunpack.c.l.b16 %v2274
    %v2291 = vunpack.c.l.b16 %v2275
    %v2292 = vunpack.c.l.b16 %v2276
    %v2293 = vunpack.c.l.b16 %v2277
    %v2294 = vpack.c.b16 %v2291, %v2290
    %v2295 = vpack.c.b16 %v2293, %v2292
    %v2299 = vsel %vm190, %v2271, 0
    %v2302 = vsel %vm190, %v2272, 0
    %2304 = vmatprep.subr.bf16.mxu0 0
    %2305 = vmatpush1.bf16.msra.mxu0 0
    %2306 = vmatprep.subr.bf16.mxu0 0
    %2307 = vmatpush1.bf16.msra.mxu0 0
    %2308 = vmatprep.subr.bf16.mxu0 0
    %2309 = vmatpush1.bf16.msra.mxu0 0
    %2310 = vmatprep.subr.bf16.mxu0 0
    %2311 = vmatpush1.bf16.msra.mxu0 0
    %2312 = vmatprep.subr.bf16.mxu0 0
    %2313 = vmatpush1.bf16.msra.mxu0 0
    %2314 = vmatprep.subr.bf16.mxu0 0
    %2315 = vmatpush1.bf16.msra.mxu0 0
    %2316 = vmatprep.subr.bf16.mxu0 0
    %2317 = vmatpush1.bf16.msra.mxu0 %v2295
    %2318 = vmatprep.subr.bf16.mxu0 0
    %2319 = vmatpush1.bf16.msra.mxu0 %v2294
    %2320 = vmatprep.subr.bf16.mxu0 0
    %2321 = vmatpush2.bf16.msra.mxu0 0
    %2322 = vmatprep.subr.bf16.mxu0 0
    %2323 = vmatpush2.bf16.msra.mxu0 0
    %2324 = vmatprep.subr.bf16.mxu0 0
    %2325 = vmatpush2.bf16.msra.mxu0 0
    %2326 = vmatprep.subr.bf16.mxu0 0
    %2327 = vmatpush2.bf16.msra.mxu0 0
    %2328 = vmatprep.subr.bf16.mxu0 0
    %2329 = vmatpush2.bf16.msra.mxu0 0
    %2330 = vmatprep.subr.bf16.mxu0 0
    %2331 = vmatpush2.bf16.msra.mxu0 0
    %2332 = vmatprep.subr.bf16.mxu0 0
    %2333 = vmatpush2.bf16.msra.mxu0 0
    %2334 = vmatprep.subr.bf16.mxu0 0
    %2335 = vmatpush2.bf16.msra.mxu0 0
    %2336 = vmatprep.mubr.bf16.mxu0 0
    %2337 = vmatmul.mubr.bf16.gmra.mxu0 %v2299
    %v2338 = vpop.f32.mrf.mxu0
    %v2339 = vadd.f32 %v2284, %v2338
    %v2340 = vpop.f32.mrf.mxu0
    %v2341 = vpop.f32.mrf.mxu0
    %v2342 = vadd.f32 %v2284, %v2341
    %v2343 = vpop.f32.mrf.mxu0
    %2344 = vmatprep.mubr.bf16.mxu0 0
    %2345 = vmatmul.mubr.bf16.gmra.mxu0 %v2302
    %v2346 = vpop.f32.mrf.mxu0
    %v2347 = vadd.f32 %v2284, %v2346
    %v2348 = vpop.f32.mrf.mxu0
    %v2349 = vpop.f32.mrf.mxu0
    %v2350 = vadd.f32 %v2284, %v2349
    %v2351 = vpop.f32.mrf.mxu0
    %2352 = vdwg.mxu0
    %s2353 = scalar_lea.vmem %s6, 64
    %v2354 = vld [vmem:[%s2353] sm:$0xf]
    %v2355 = vld [vmem:[%s2353 + $0x4] sm:$0xf]
    %v2356 = vld [vmem:[%s2353 + $0x8] sm:$0xf]
    %v2357 = vld [vmem:[%s2353 + $0xc] sm:$0xf]
    %s2358 = scalar_lea.vmem %s7, 4
    %v2359 = vld [vmem:[%s2358] sm:$0x1]
    %v2361 = vlaneseq
    %v2362 = vshrl.u32 %v2361, 7
    %v2363 = vsub.s32 0, %v2362
    %v2364 = vrot.slane %v2359, %v2363
    %v2370 = vunpack.c.l.b16 %v2354
    %v2371 = vunpack.c.l.b16 %v2355
    %v2372 = vunpack.c.l.b16 %v2356
    %v2373 = vunpack.c.l.b16 %v2357
    %v2374 = vpack.c.b16 %v2371, %v2370
    %v2375 = vpack.c.b16 %v2373, %v2372
    %2378 = vmatprep.subr.bf16.mxu0 0
    %2379 = vmatpush1.bf16.msra.mxu0 0
    %2380 = vmatprep.subr.bf16.mxu0 0
    %2381 = vmatpush1.bf16.msra.mxu0 0
    %2382 = vmatprep.subr.bf16.mxu0 0
    %2383 = vmatpush1.bf16.msra.mxu0 0
    %2384 = vmatprep.subr.bf16.mxu0 0
    %2385 = vmatpush1.bf16.msra.mxu0 0
    %2386 = vmatprep.subr.bf16.mxu0 0
    %2387 = vmatpush1.bf16.msra.mxu0 0
    %2388 = vmatprep.subr.bf16.mxu0 0
    %2389 = vmatpush1.bf16.msra.mxu0 0
    %2390 = vmatprep.subr.bf16.mxu0 0
    %2391 = vmatpush1.bf16.msra.mxu0 %v2375
    %2392 = vmatprep.subr.bf16.mxu0 0
    %2393 = vmatpush1.bf16.msra.mxu0 %v2374
    %2394 = vmatprep.subr.bf16.mxu0 0
    %2395 = vmatpush2.bf16.msra.mxu0 0
    %2396 = vmatprep.subr.bf16.mxu0 0
    %2397 = vmatpush2.bf16.msra.mxu0 0
    %2398 = vmatprep.subr.bf16.mxu0 0
    %2399 = vmatpush2.bf16.msra.mxu0 0
    %2400 = vmatprep.subr.bf16.mxu0 0
    %2401 = vmatpush2.bf16.msra.mxu0 0
    %2402 = vmatprep.subr.bf16.mxu0 0
    %2403 = vmatpush2.bf16.msra.mxu0 0
    %2404 = vmatprep.subr.bf16.mxu0 0
    %2405 = vmatpush2.bf16.msra.mxu0 0
    %2406 = vmatprep.subr.bf16.mxu0 0
    %2407 = vmatpush2.bf16.msra.mxu0 0
    %2408 = vmatprep.subr.bf16.mxu0 0
    %2409 = vmatpush2.bf16.msra.mxu0 0
    %2410 = vmatprep.mubr.bf16.mxu0 0
    %2411 = vmatmul.mubr.bf16.gmra.mxu0 %v2299
    %v2412 = vpop.f32.mrf.mxu0
    %v2413 = vadd.f32 %v2364, %v2412
    %v2414 = vpop.f32.mrf.mxu0
    %v2415 = vpop.f32.mrf.mxu0
    %v2416 = vadd.f32 %v2364, %v2415
    %v2417 = vpop.f32.mrf.mxu0
    %2418 = vmatprep.mubr.bf16.mxu0 0
    %2419 = vmatmul.mubr.bf16.gmra.mxu0 %v2302
    %v2420 = vpop.f32.mrf.mxu0
    %v2421 = vadd.f32 %v2364, %v2420
    %v2422 = vpop.f32.mrf.mxu0
    %v2423 = vpop.f32.mrf.mxu0
    %v2424 = vadd.f32 %v2364, %v2423
    %v2425 = vpop.f32.mrf.mxu0
    %2426 = vdwg.mxu0
    %s2427 = scalar_lea.vmem %s6, 80
    %v2428 = vld [vmem:[%s2427] sm:$0xf]
    %v2429 = vld [vmem:[%s2427 + $0x4] sm:$0xf]
    %v2430 = vld [vmem:[%s2427 + $0x8] sm:$0xf]
    %v2431 = vld [vmem:[%s2427 + $0xc] sm:$0xf]
    %s2432 = scalar_lea.vmem %s7, 5
    %v2433 = vld [vmem:[%s2432] sm:$0x1]
    %v2435 = vlaneseq
    %v2436 = vshrl.u32 %v2435, 7
    %v2437 = vsub.s32 0, %v2436
    %v2438 = vrot.slane %v2433, %v2437
    %v2444 = vunpack.c.l.b16 %v2428
    %v2445 = vunpack.c.l.b16 %v2429
    %v2446 = vunpack.c.l.b16 %v2430
    %v2447 = vunpack.c.l.b16 %v2431
    %v2448 = vpack.c.b16 %v2445, %v2444
    %v2449 = vpack.c.b16 %v2447, %v2446
    %2452 = vmatprep.subr.bf16.mxu0 0
    %2453 = vmatpush1.bf16.msra.mxu0 0
    %2454 = vmatprep.subr.bf16.mxu0 0
    %2455 = vmatpush1.bf16.msra.mxu0 0
    %2456 = vmatprep.subr.bf16.mxu0 0
    %2457 = vmatpush1.bf16.msra.mxu0 0
    %2458 = vmatprep.subr.bf16.mxu0 0
    %2459 = vmatpush1.bf16.msra.mxu0 0
    %2460 = vmatprep.subr.bf16.mxu0 0
    %2461 = vmatpush1.bf16.msra.mxu0 0
    %2462 = vmatprep.subr.bf16.mxu0 0
    %2463 = vmatpush1.bf16.msra.mxu0 0
    %2464 = vmatprep.subr.bf16.mxu0 0
    %2465 = vmatpush1.bf16.msra.mxu0 %v2449
    %2466 = vmatprep.subr.bf16.mxu0 0
    %2467 = vmatpush1.bf16.msra.mxu0 %v2448
    %2468 = vmatprep.subr.bf16.mxu0 0
    %2469 = vmatpush2.bf16.msra.mxu0 0
    %2470 = vmatprep.subr.bf16.mxu0 0
    %2471 = vmatpush2.bf16.msra.mxu0 0
    %2472 = vmatprep.subr.bf16.mxu0 0
    %2473 = vmatpush2.bf16.msra.mxu0 0
    %2474 = vmatprep.subr.bf16.mxu0 0
    %2475 = vmatpush2.bf16.msra.mxu0 0
    %2476 = vmatprep.subr.bf16.mxu0 0
    %2477 = vmatpush2.bf16.msra.mxu0 0
    %2478 = vmatprep.subr.bf16.mxu0 0
    %2479 = vmatpush2.bf16.msra.mxu0 0
    %2480 = vmatprep.subr.bf16.mxu0 0
    %2481 = vmatpush2.bf16.msra.mxu0 0
    %2482 = vmatprep.subr.bf16.mxu0 0
    %2483 = vmatpush2.bf16.msra.mxu0 0
    %2484 = vmatprep.mubr.bf16.mxu0 0
    %2485 = vmatmul.mubr.bf16.gmra.mxu0 %v2299
    %v2486 = vpop.f32.mrf.mxu0
    %v2487 = vadd.f32 %v2438, %v2486
    %v2488 = vpop.f32.mrf.mxu0
    %v2489 = vpop.f32.mrf.mxu0
    %v2490 = vadd.f32 %v2438, %v2489
    %v2491 = vpop.f32.mrf.mxu0
    %2492 = vmatprep.mubr.bf16.mxu0 0
    %2493 = vmatmul.mubr.bf16.gmra.mxu0 %v2302
    %v2494 = vpop.f32.mrf.mxu0
    %v2495 = vadd.f32 %v2438, %v2494
    %v2496 = vpop.f32.mrf.mxu0
    %v2497 = vpop.f32.mrf.mxu0
    %v2498 = vadd.f32 %v2438, %v2497
    %v2499 = vpop.f32.mrf.mxu0
    %2500 = vdwg.mxu0
    %v2501 = vpack.c.bf16 %v2342, %v2339
    %v2502 = vpack.c.bf16 %v2416, %v2413
    %v2503 = vpack.c.bf16 %v2490, %v2487
    %v2505 = vsel %vm495, %v2501, 0
    %v2508 = vsel %vm495, %v2502, 0
    %2510 = vmatprep.subr.bf16.mxu0 0
    %2511 = vmatpush1.bf16.xpose.msra.mxu0 0
    %2512 = vmatprep.subr.bf16.mxu0 0
    %2513 = vmatpush1.bf16.xpose.msra.mxu0 0
    %2514 = vmatprep.subr.bf16.mxu0 0
    %2515 = vmatpush1.bf16.xpose.msra.mxu0 0
    %2516 = vmatprep.subr.bf16.mxu0 0
    %2517 = vmatpush1.bf16.xpose.msra.mxu0 0
    %2518 = vmatprep.subr.bf16.mxu0 0
    %2519 = vmatpush1.bf16.xpose.msra.mxu0 0
    %2520 = vmatprep.subr.bf16.mxu0 0
    %2521 = vmatpush1.bf16.xpose.msra.mxu0 0
    %2522 = vmatprep.subr.bf16.mxu0 0
    %2523 = vmatpush1.bf16.xpose.msra.mxu0 0
    %2524 = vmatprep.subr.bf16.mxu0 0
    %2525 = vmatpush1.bf16.xpose.msra.mxu0 %v2508
    %2526 = vmatprep.subr.bf16.mxu0 0
    %2527 = vmatpush2.bf16.xpose.msra.mxu0 0
    %2528 = vmatprep.subr.bf16.mxu0 0
    %2529 = vmatpush2.bf16.xpose.msra.mxu0 0
    %2530 = vmatprep.subr.bf16.mxu0 0
    %2531 = vmatpush2.bf16.xpose.msra.mxu0 0
    %2532 = vmatprep.subr.bf16.mxu0 0
    %2533 = vmatpush2.bf16.xpose.msra.mxu0 0
    %2534 = vmatprep.subr.bf16.mxu0 0
    %2535 = vmatpush2.bf16.xpose.msra.mxu0 0
    %2536 = vmatprep.subr.bf16.mxu0 0
    %2537 = vmatpush2.bf16.xpose.msra.mxu0 0
    %2538 = vmatprep.subr.bf16.mxu0 0
    %2539 = vmatpush2.bf16.xpose.msra.mxu0 0
    %2540 = vmatprep.subr.bf16.mxu0 0
    %2541 = vmatpush2.bf16.xpose.msra.mxu0 0
    %2542 = vmatprep.mubr.bf16.mxu0 0
    %2543 = vmatmul.mubr.bf16.gmra.mxu0 %v2505
    %v2544 = vpop.f32.mrf.mxu0
    %v2545 = vadd.f32 0.0, %v2544
    %v2546 = vpop.f32.mrf.mxu0
    %v2547 = vpop.f32.mrf.mxu0
    %v2548 = vadd.f32 0.0, %v2547
    %v2549 = vpop.f32.mrf.mxu0
    %2550 = vdwg.mxu0
    %v2551 = vmul.f32 %v2545, 0.35355338
    %v2552 = vmul.f32 %v2548, 0.35355338
    %v2553 = vsel %vm545, %v2551, -inf
    %2554 = vmax.xlane.f32.xlu0 %v2553
    %v2555 = vpop.xlane.xlu0 %2554
    %v2556 = vsel %vm545, %v2552, -inf
    %2557 = vmax.xlane.f32.xlu0 %v2556
    %v2558 = vpop.xlane.xlu0 %2557
    %v2559 = vsub.f32 %v2551, %v2555
    %v2560 = vsub.f32 %v2552, %v2558
    %v2561 = vmul.f32 %v2559, 1.442695
    %v2562 = vpow.pop %v2561
    %v2563 = vmul.f32 %v2560, 1.442695
    %v2564 = vpow.pop %v2563
    %v2565 = vsel %vm545, %v2562, 0.0
    %2566 = vadd.xlane.f32.xlu0 %v2565
    %v2567 = vpop.xlane.xlu0 %2566
    %v2568 = vsel %vm545, %v2564, 0.0
    %2569 = vadd.xlane.f32.xlu0 %v2568
    %v2570 = vpop.xlane.xlu0 %2569
    %v2571 = vrcp.pop %v2567
    %v2572 = vrcp.pop %v2570
    %v2573 = vmul.f32 %v2562, %v2571
    %v2574 = vmul.f32 %v2564, %v2572
    %v2575 = vpack.c.bf16 %v2574, %v2573
    %v2577 = vsel %vm545, %v2575, 0
    %2579 = vmatprep.subr.bf16.mxu0 0
    %2580 = vmatpush1.bf16.msra.mxu0 0
    %2581 = vmatprep.subr.bf16.mxu0 0
    %2582 = vmatpush1.bf16.msra.mxu0 0
    %2583 = vmatprep.subr.bf16.mxu0 0
    %2584 = vmatpush1.bf16.msra.mxu0 0
    %2585 = vmatprep.subr.bf16.mxu0 0
    %2586 = vmatpush1.bf16.msra.mxu0 0
    %2587 = vmatprep.subr.bf16.mxu0 0
    %2588 = vmatpush1.bf16.msra.mxu0 0
    %2589 = vmatprep.subr.bf16.mxu0 0
    %2590 = vmatpush1.bf16.msra.mxu0 0
    %2591 = vmatprep.subr.bf16.mxu0 0
    %2592 = vmatpush1.bf16.msra.mxu0 0
    %2593 = vmatprep.subr.bf16.mxu0 0
    %2594 = vmatpush1.bf16.msra.mxu0 %v2503
    %2595 = vmatprep.subr.bf16.mxu0 0
    %2596 = vmatpush2.bf16.msra.mxu0 0
    %2597 = vmatprep.subr.bf16.mxu0 0
    %2598 = vmatpush2.bf16.msra.mxu0 0
    %2599 = vmatprep.subr.bf16.mxu0 0
    %2600 = vmatpush2.bf16.msra.mxu0 0
    %2601 = vmatprep.subr.bf16.mxu0 0
    %2602 = vmatpush2.bf16.msra.mxu0 0
    %2603 = vmatprep.subr.bf16.mxu0 0
    %2604 = vmatpush2.bf16.msra.mxu0 0
    %2605 = vmatprep.subr.bf16.mxu0 0
    %2606 = vmatpush2.bf16.msra.mxu0 0
    %2607 = vmatprep.subr.bf16.mxu0 0
    %2608 = vmatpush2.bf16.msra.mxu0 0
    %2609 = vmatprep.subr.bf16.mxu0 0
    %2610 = vmatpush2.bf16.msra.mxu0 0
    %2611 = vmatprep.mubr.bf16.mxu0 0
    %2612 = vmatmul.mubr.bf16.gmra.mxu0 %v2577
    %v2613 = vpop.f32.mrf.mxu0
    %v2614 = vadd.f32 0.0, %v2613
    %v2615 = vpop.f32.mrf.mxu0
    %v2616 = vpop.f32.mrf.mxu0
    %v2617 = vadd.f32 0.0, %v2616
    %v2618 = vpop.f32.mrf.mxu0
    %2619 = vdwg.mxu0
    %v2620 = vpack.c.bf16 %v2617, %v2614
    %s2621 = scalar_lea.vmem %s8, 16
    %v2622 = vld [vmem:[%s2621] sm:$0xf]
    %2624 = vrot.lane.b32.xlu0 %v2501, 120
    %v2625 = vpop.permute.xlu0 %2624
    %2627 = vrot.lane.b32.xlu0 %v2502, 120
    %v2628 = vpop.permute.xlu0 %2627
    %v2630 = vsel %vm495, %v2625, 0
    %v2633 = vsel %vm495, %v2628, 0
    %2635 = vmatprep.subr.bf16.mxu0 0
    %2636 = vmatpush1.bf16.xpose.msra.mxu0 0
    %2637 = vmatprep.subr.bf16.mxu0 0
    %2638 = vmatpush1.bf16.xpose.msra.mxu0 0
    %2639 = vmatprep.subr.bf16.mxu0 0
    %2640 = vmatpush1.bf16.xpose.msra.mxu0 0
    %2641 = vmatprep.subr.bf16.mxu0 0
    %2642 = vmatpush1.bf16.xpose.msra.mxu0 0
    %2643 = vmatprep.subr.bf16.mxu0 0
    %2644 = vmatpush1.bf16.xpose.msra.mxu0 0
    %2645 = vmatprep.subr.bf16.mxu0 0
    %2646 = vmatpush1.bf16.xpose.msra.mxu0 0
    %2647 = vmatprep.subr.bf16.mxu0 0
    %2648 = vmatpush1.bf16.xpose.msra.mxu0 0
    %2649 = vmatprep.subr.bf16.mxu0 0
    %2650 = vmatpush1.bf16.xpose.msra.mxu0 %v2633
    %2651 = vmatprep.subr.bf16.mxu0 0
    %2652 = vmatpush2.bf16.xpose.msra.mxu0 0
    %2653 = vmatprep.subr.bf16.mxu0 0
    %2654 = vmatpush2.bf16.xpose.msra.mxu0 0
    %2655 = vmatprep.subr.bf16.mxu0 0
    %2656 = vmatpush2.bf16.xpose.msra.mxu0 0
    %2657 = vmatprep.subr.bf16.mxu0 0
    %2658 = vmatpush2.bf16.xpose.msra.mxu0 0
    %2659 = vmatprep.subr.bf16.mxu0 0
    %2660 = vmatpush2.bf16.xpose.msra.mxu0 0
    %2661 = vmatprep.subr.bf16.mxu0 0
    %2662 = vmatpush2.bf16.xpose.msra.mxu0 0
    %2663 = vmatprep.subr.bf16.mxu0 0
    %2664 = vmatpush2.bf16.xpose.msra.mxu0 0
    %2665 = vmatprep.subr.bf16.mxu0 0
    %2666 = vmatpush2.bf16.xpose.msra.mxu0 0
    %2667 = vmatprep.mubr.bf16.mxu0 0
    %2668 = vmatmul.mubr.bf16.gmra.mxu0 %v2630
    %v2669 = vpop.f32.mrf.mxu0
    %v2670 = vadd.f32 0.0, %v2669
    %v2671 = vpop.f32.mrf.mxu0
    %v2672 = vpop.f32.mrf.mxu0
    %v2673 = vadd.f32 0.0, %v2672
    %v2674 = vpop.f32.mrf.mxu0
    %2675 = vdwg.mxu0
    %v2676 = vmul.f32 %v2670, 0.35355338
    %v2677 = vmul.f32 %v2673, 0.35355338
    %v2678 = vsel %vm545, %v2676, -inf
    %2679 = vmax.xlane.f32.xlu0 %v2678
    %v2680 = vpop.xlane.xlu0 %2679
    %v2681 = vsel %vm545, %v2677, -inf
    %2682 = vmax.xlane.f32.xlu0 %v2681
    %v2683 = vpop.xlane.xlu0 %2682
    %v2684 = vsub.f32 %v2676, %v2680
    %v2685 = vsub.f32 %v2677, %v2683
    %v2686 = vmul.f32 %v2684, 1.442695
    %v2687 = vpow.pop %v2686
    %v2688 = vmul.f32 %v2685, 1.442695
    %v2689 = vpow.pop %v2688
    %v2690 = vsel %vm545, %v2687, 0.0
    %2691 = vadd.xlane.f32.xlu0 %v2690
    %v2692 = vpop.xlane.xlu0 %2691
    %v2693 = vsel %vm545, %v2689, 0.0
    %2694 = vadd.xlane.f32.xlu0 %v2693
    %v2695 = vpop.xlane.xlu0 %2694
    %v2696 = vrcp.pop %v2692
    %v2697 = vrcp.pop %v2695
    %v2698 = vmul.f32 %v2687, %v2696
    %v2699 = vmul.f32 %v2689, %v2697
    %v2700 = vpack.c.bf16 %v2699, %v2698
    %2702 = vrot.lane.b32.xlu0 %v2503, 120
    %v2703 = vpop.permute.xlu0 %2702
    %v2706 = vsel %vm545, %v2700, 0
    %2708 = vmatprep.subr.bf16.mxu0 0
    %2709 = vmatpush1.bf16.msra.mxu0 0
    %2710 = vmatprep.subr.bf16.mxu0 0
    %2711 = vmatpush1.bf16.msra.mxu0 0
    %2712 = vmatprep.subr.bf16.mxu0 0
    %2713 = vmatpush1.bf16.msra.mxu0 0
    %2714 = vmatprep.subr.bf16.mxu0 0
    %2715 = vmatpush1.bf16.msra.mxu0 0
    %2716 = vmatprep.subr.bf16.mxu0 0
    %2717 = vmatpush1.bf16.msra.mxu0 0
    %2718 = vmatprep.subr.bf16.mxu0 0
    %2719 = vmatpush1.bf16.msra.mxu0 0
    %2720 = vmatprep.subr.bf16.mxu0 0
    %2721 = vmatpush1.bf16.msra.mxu0 0
    %2722 = vmatprep.subr.bf16.mxu0 0
    %2723 = vmatpush1.bf16.msra.mxu0 %v2703
    %2724 = vmatprep.subr.bf16.mxu0 0
    %2725 = vmatpush2.bf16.msra.mxu0 0
    %2726 = vmatprep.subr.bf16.mxu0 0
    %2727 = vmatpush2.bf16.msra.mxu0 0
    %2728 = vmatprep.subr.bf16.mxu0 0
    %2729 = vmatpush2.bf16.msra.mxu0 0
    %2730 = vmatprep.subr.bf16.mxu0 0
    %2731 = vmatpush2.bf16.msra.mxu0 0
    %2732 = vmatprep.subr.bf16.mxu0 0
    %2733 = vmatpush2.bf16.msra.mxu0 0
    %2734 = vmatprep.subr.bf16.mxu0 0
    %2735 = vmatpush2.bf16.msra.mxu0 0
    %2736 = vmatprep.subr.bf16.mxu0 0
    %2737 = vmatpush2.bf16.msra.mxu0 0
    %2738 = vmatprep.subr.bf16.mxu0 0
    %2739 = vmatpush2.bf16.msra.mxu0 0
    %2740 = vmatprep.mubr.bf16.mxu0 0
    %2741 = vmatmul.mubr.bf16.gmra.mxu0 %v2706
    %v2742 = vpop.f32.mrf.mxu0
    %v2743 = vadd.f32 0.0, %v2742
    %v2744 = vpop.f32.mrf.mxu0
    %v2745 = vpop.f32.mrf.mxu0
    %v2746 = vadd.f32 0.0, %v2745
    %v2747 = vpop.f32.mrf.mxu0
    %2748 = vdwg.mxu0
    %v2749 = vpack.c.bf16 %v2746, %v2743
    %s2750 = scalar_lea.vmem %s8, 20
    %v2751 = vld [vmem:[%s2750] sm:$0xf]
    %v2753 = vsel %vm495, %v2749, 0
    %v2756 = vsel %vm747, %v2751, 0
    %2758 = vmatprep.subr.bf16.mxu0 0
    %2759 = vmatpush1.bf16.msra.mxu0 0
    %2760 = vmatprep.subr.bf16.mxu0 0
    %2761 = vmatpush1.bf16.msra.mxu0 0
    %2762 = vmatprep.subr.bf16.mxu0 0
    %2763 = vmatpush1.bf16.msra.mxu0 0
    %2764 = vmatprep.subr.bf16.mxu0 0
    %2765 = vmatpush1.bf16.msra.mxu0 0
    %2766 = vmatprep.subr.bf16.mxu0 0
    %2767 = vmatpush1.bf16.msra.mxu0 0
    %2768 = vmatprep.subr.bf16.mxu0 0
    %2769 = vmatpush1.bf16.msra.mxu0 0
    %2770 = vmatprep.subr.bf16.mxu0 0
    %2771 = vmatpush1.bf16.msra.mxu0 0
    %2772 = vmatprep.subr.bf16.mxu0 0
    %2773 = vmatpush1.bf16.msra.mxu0 %v2756
    %2774 = vmatprep.subr.bf16.mxu0 0
    %2775 = vmatpush2.bf16.msra.mxu0 0
    %2776 = vmatprep.subr.bf16.mxu0 0
    %2777 = vmatpush2.bf16.msra.mxu0 0
    %2778 = vmatprep.subr.bf16.mxu0 0
    %2779 = vmatpush2.bf16.msra.mxu0 0
    %2780 = vmatprep.subr.bf16.mxu0 0
    %2781 = vmatpush2.bf16.msra.mxu0 0
    %2782 = vmatprep.subr.bf16.mxu0 0
    %2783 = vmatpush2.bf16.msra.mxu0 0
    %2784 = vmatprep.subr.bf16.mxu0 0
    %2785 = vmatpush2.bf16.msra.mxu0 0
    %2786 = vmatprep.subr.bf16.mxu0 0
    %2787 = vmatpush2.bf16.msra.mxu0 0
    %2788 = vmatprep.subr.bf16.mxu0 0
    %2789 = vmatpush2.bf16.msra.mxu0 0
    %2790 = vmatprep.mubr.bf16.mxu0 0
    %2791 = vmatmul.mubr.bf16.gmra.mxu0 %v2753
    %v2792 = vpop.f32.mrf.mxu0
    %v2793 = vadd.f32 0.0, %v2792
    %v2794 = vpop.f32.mrf.mxu0
    %v2795 = vpop.f32.mrf.mxu0
    %v2796 = vadd.f32 0.0, %v2795
    %v2797 = vpop.f32.mrf.mxu0
    %2798 = vdwg.mxu0
    %v2800 = vsel %vm495, %v2620, 0
    %v2803 = vsel %vm747, %v2622, 0
    %2805 = vmatprep.subr.bf16.mxu0 0
    %2806 = vmatpush1.bf16.msra.mxu0 0
    %2807 = vmatprep.subr.bf16.mxu0 0
    %2808 = vmatpush1.bf16.msra.mxu0 0
    %2809 = vmatprep.subr.bf16.mxu0 0
    %2810 = vmatpush1.bf16.msra.mxu0 0
    %2811 = vmatprep.subr.bf16.mxu0 0
    %2812 = vmatpush1.bf16.msra.mxu0 0
    %2813 = vmatprep.subr.bf16.mxu0 0
    %2814 = vmatpush1.bf16.msra.mxu0 0
    %2815 = vmatprep.subr.bf16.mxu0 0
    %2816 = vmatpush1.bf16.msra.mxu0 0
    %2817 = vmatprep.subr.bf16.mxu0 0
    %2818 = vmatpush1.bf16.msra.mxu0 0
    %2819 = vmatprep.subr.bf16.mxu0 0
    %2820 = vmatpush1.bf16.msra.mxu0 %v2803
    %2821 = vmatprep.subr.bf16.mxu0 0
    %2822 = vmatpush2.bf16.msra.mxu0 0
    %2823 = vmatprep.subr.bf16.mxu0 0
    %2824 = vmatpush2.bf16.msra.mxu0 0
    %2825 = vmatprep.subr.bf16.mxu0 0
    %2826 = vmatpush2.bf16.msra.mxu0 0
    %2827 = vmatprep.subr.bf16.mxu0 0
    %2828 = vmatpush2.bf16.msra.mxu0 0
    %2829 = vmatprep.subr.bf16.mxu0 0
    %2830 = vmatpush2.bf16.msra.mxu0 0
    %2831 = vmatprep.subr.bf16.mxu0 0
    %2832 = vmatpush2.bf16.msra.mxu0 0
    %2833 = vmatprep.subr.bf16.mxu0 0
    %2834 = vmatpush2.bf16.msra.mxu0 0
    %2835 = vmatprep.subr.bf16.mxu0 0
    %2836 = vmatpush2.bf16.msra.mxu0 0
    %2837 = vmatprep.mubr.bf16.mxu0 0
    %2838 = vmatmul.mubr.bf16.gmra.mxu0 %v2800
    %v2839 = vpop.f32.mrf.mxu0
    %v2840 = vadd.f32 %v2793, %v2839
    %v2841 = vpop.f32.mrf.mxu0
    %v2842 = vpop.f32.mrf.mxu0
    %v2843 = vadd.f32 %v2796, %v2842
    %v2844 = vpop.f32.mrf.mxu0
    %2845 = vdwg.mxu0
    %2846 = vrot.lane.b32.xlu0 %v2501, 112
    %v2847 = vpop.permute.xlu0 %2846
    %2848 = vrot.lane.b32.xlu0 %v2502, 112
    %v2849 = vpop.permute.xlu0 %2848
    %v2851 = vsel %vm495, %v2847, 0
    %v2854 = vsel %vm495, %v2849, 0
    %2856 = vmatprep.subr.bf16.mxu0 0
    %2857 = vmatpush1.bf16.xpose.msra.mxu0 0
    %2858 = vmatprep.subr.bf16.mxu0 0
    %2859 = vmatpush1.bf16.xpose.msra.mxu0 0
    %2860 = vmatprep.subr.bf16.mxu0 0
    %2861 = vmatpush1.bf16.xpose.msra.mxu0 0
    %2862 = vmatprep.subr.bf16.mxu0 0
    %2863 = vmatpush1.bf16.xpose.msra.mxu0 0
    %2864 = vmatprep.subr.bf16.mxu0 0
    %2865 = vmatpush1.bf16.xpose.msra.mxu0 0
    %2866 = vmatprep.subr.bf16.mxu0 0
    %2867 = vmatpush1.bf16.xpose.msra.mxu0 0
    %2868 = vmatprep.subr.bf16.mxu0 0
    %2869 = vmatpush1.bf16.xpose.msra.mxu0 0
    %2870 = vmatprep.subr.bf16.mxu0 0
    %2871 = vmatpush1.bf16.xpose.msra.mxu0 %v2854
    %2872 = vmatprep.subr.bf16.mxu0 0
    %2873 = vmatpush2.bf16.xpose.msra.mxu0 0
    %2874 = vmatprep.subr.bf16.mxu0 0
    %2875 = vmatpush2.bf16.xpose.msra.mxu0 0
    %2876 = vmatprep.subr.bf16.mxu0 0
    %2877 = vmatpush2.bf16.xpose.msra.mxu0 0
    %2878 = vmatprep.subr.bf16.mxu0 0
    %2879 = vmatpush2.bf16.xpose.msra.mxu0 0
    %2880 = vmatprep.subr.bf16.mxu0 0
    %2881 = vmatpush2.bf16.xpose.msra.mxu0 0
    %2882 = vmatprep.subr.bf16.mxu0 0
    %2883 = vmatpush2.bf16.xpose.msra.mxu0 0
    %2884 = vmatprep.subr.bf16.mxu0 0
    %2885 = vmatpush2.bf16.xpose.msra.mxu0 0
    %2886 = vmatprep.subr.bf16.mxu0 0
    %2887 = vmatpush2.bf16.xpose.msra.mxu0 0
    %2888 = vmatprep.mubr.bf16.mxu0 0
    %2889 = vmatmul.mubr.bf16.gmra.mxu0 %v2851
    %v2890 = vpop.f32.mrf.mxu0
    %v2891 = vadd.f32 0.0, %v2890
    %v2892 = vpop.f32.mrf.mxu0
    %v2893 = vpop.f32.mrf.mxu0
    %v2894 = vadd.f32 0.0, %v2893
    %v2895 = vpop.f32.mrf.mxu0
    %2896 = vdwg.mxu0
    %v2897 = vmul.f32 %v2891, 0.35355338
    %v2898 = vmul.f32 %v2894, 0.35355338
    %v2899 = vsel %vm545, %v2897, -inf
    %2900 = vmax.xlane.f32.xlu0 %v2899
    %v2901 = vpop.xlane.xlu0 %2900
    %v2902 = vsel %vm545, %v2898, -inf
    %2903 = vmax.xlane.f32.xlu0 %v2902
    %v2904 = vpop.xlane.xlu0 %2903
    %v2905 = vsub.f32 %v2897, %v2901
    %v2906 = vsub.f32 %v2898, %v2904
    %v2907 = vmul.f32 %v2905, 1.442695
    %v2908 = vpow.pop %v2907
    %v2909 = vmul.f32 %v2906, 1.442695
    %v2910 = vpow.pop %v2909
    %v2911 = vsel %vm545, %v2908, 0.0
    %2912 = vadd.xlane.f32.xlu0 %v2911
    %v2913 = vpop.xlane.xlu0 %2912
    %v2914 = vsel %vm545, %v2910, 0.0
    %2915 = vadd.xlane.f32.xlu0 %v2914
    %v2916 = vpop.xlane.xlu0 %2915
    %v2917 = vrcp.pop %v2913
    %v2918 = vrcp.pop %v2916
    %v2919 = vmul.f32 %v2908, %v2917
    %v2920 = vmul.f32 %v2910, %v2918
    %v2921 = vpack.c.bf16 %v2920, %v2919
    %2922 = vrot.lane.b32.xlu0 %v2503, 112
    %v2923 = vpop.permute.xlu0 %2922
    %v2926 = vsel %vm545, %v2921, 0
    %2928 = vmatprep.subr.bf16.mxu0 0
    %2929 = vmatpush1.bf16.msra.mxu0 0
    %2930 = vmatprep.subr.bf16.mxu0 0
    %2931 = vmatpush1.bf16.msra.mxu0 0
    %2932 = vmatprep.subr.bf16.mxu0 0
    %2933 = vmatpush1.bf16.msra.mxu0 0
    %2934 = vmatprep.subr.bf16.mxu0 0
    %2935 = vmatpush1.bf16.msra.mxu0 0
    %2936 = vmatprep.subr.bf16.mxu0 0
    %2937 = vmatpush1.bf16.msra.mxu0 0
    %2938 = vmatprep.subr.bf16.mxu0 0
    %2939 = vmatpush1.bf16.msra.mxu0 0
    %2940 = vmatprep.subr.bf16.mxu0 0
    %2941 = vmatpush1.bf16.msra.mxu0 0
    %2942 = vmatprep.subr.bf16.mxu0 0
    %2943 = vmatpush1.bf16.msra.mxu0 %v2923
    %2944 = vmatprep.subr.bf16.mxu0 0
    %2945 = vmatpush2.bf16.msra.mxu0 0
    %2946 = vmatprep.subr.bf16.mxu0 0
    %2947 = vmatpush2.bf16.msra.mxu0 0
    %2948 = vmatprep.subr.bf16.mxu0 0
    %2949 = vmatpush2.bf16.msra.mxu0 0
    %2950 = vmatprep.subr.bf16.mxu0 0
    %2951 = vmatpush2.bf16.msra.mxu0 0
    %2952 = vmatprep.subr.bf16.mxu0 0
    %2953 = vmatpush2.bf16.msra.mxu0 0
    %2954 = vmatprep.subr.bf16.mxu0 0
    %2955 = vmatpush2.bf16.msra.mxu0 0
    %2956 = vmatprep.subr.bf16.mxu0 0
    %2957 = vmatpush2.bf16.msra.mxu0 0
    %2958 = vmatprep.subr.bf16.mxu0 0
    %2959 = vmatpush2.bf16.msra.mxu0 0
    %2960 = vmatprep.mubr.bf16.mxu0 0
    %2961 = vmatmul.mubr.bf16.gmra.mxu0 %v2926
    %v2962 = vpop.f32.mrf.mxu0
    %v2963 = vadd.f32 0.0, %v2962
    %v2964 = vpop.f32.mrf.mxu0
    %v2965 = vpop.f32.mrf.mxu0
    %v2966 = vadd.f32 0.0, %v2965
    %v2967 = vpop.f32.mrf.mxu0
    %2968 = vdwg.mxu0
    %v2969 = vpack.c.bf16 %v2966, %v2963
    %s2970 = scalar_lea.vmem %s8, 24
    %v2971 = vld [vmem:[%s2970] sm:$0xf]
    %v2973 = vsel %vm495, %v2969, 0
    %v2976 = vsel %vm747, %v2971, 0
    %2978 = vmatprep.subr.bf16.mxu0 0
    %2979 = vmatpush1.bf16.msra.mxu0 0
    %2980 = vmatprep.subr.bf16.mxu0 0
    %2981 = vmatpush1.bf16.msra.mxu0 0
    %2982 = vmatprep.subr.bf16.mxu0 0
    %2983 = vmatpush1.bf16.msra.mxu0 0
    %2984 = vmatprep.subr.bf16.mxu0 0
    %2985 = vmatpush1.bf16.msra.mxu0 0
    %2986 = vmatprep.subr.bf16.mxu0 0
    %2987 = vmatpush1.bf16.msra.mxu0 0
    %2988 = vmatprep.subr.bf16.mxu0 0
    %2989 = vmatpush1.bf16.msra.mxu0 0
    %2990 = vmatprep.subr.bf16.mxu0 0
    %2991 = vmatpush1.bf16.msra.mxu0 0
    %2992 = vmatprep.subr.bf16.mxu0 0
    %2993 = vmatpush1.bf16.msra.mxu0 %v2976
    %2994 = vmatprep.subr.bf16.mxu0 0
    %2995 = vmatpush2.bf16.msra.mxu0 0
    %2996 = vmatprep.subr.bf16.mxu0 0
    %2997 = vmatpush2.bf16.msra.mxu0 0
    %2998 = vmatprep.subr.bf16.mxu0 0
    %2999 = vmatpush2.bf16.msra.mxu0 0
    %3000 = vmatprep.subr.bf16.mxu0 0
    %3001 = vmatpush2.bf16.msra.mxu0 0
    %3002 = vmatprep.subr.bf16.mxu0 0
    %3003 = vmatpush2.bf16.msra.mxu0 0
    %3004 = vmatprep.subr.bf16.mxu0 0
    %3005 = vmatpush2.bf16.msra.mxu0 0
    %3006 = vmatprep.subr.bf16.mxu0 0
    %3007 = vmatpush2.bf16.msra.mxu0 0
    %3008 = vmatprep.subr.bf16.mxu0 0
    %3009 = vmatpush2.bf16.msra.mxu0 0
    %3010 = vmatprep.mubr.bf16.mxu0 0
    %3011 = vmatmul.mubr.bf16.gmra.mxu0 %v2973
    %v3012 = vpop.f32.mrf.mxu0
    %v3013 = vadd.f32 0.0, %v3012
    %v3014 = vpop.f32.mrf.mxu0
    %v3015 = vpop.f32.mrf.mxu0
    %v3016 = vadd.f32 0.0, %v3015
    %v3017 = vpop.f32.mrf.mxu0
    %3018 = vdwg.mxu0
    %v3019 = vadd.f32 %v2840, %v3013
    %v3020 = vadd.f32 %v2843, %v3016
    %3021 = vrot.lane.b32.xlu0 %v2501, 104
    %v3022 = vpop.permute.xlu0 %3021
    %3023 = vrot.lane.b32.xlu0 %v2502, 104
    %v3024 = vpop.permute.xlu0 %3023
    %v3026 = vsel %vm495, %v3022, 0
    %v3029 = vsel %vm495, %v3024, 0
    %3031 = vmatprep.subr.bf16.mxu0 0
    %3032 = vmatpush1.bf16.xpose.msra.mxu0 0
    %3033 = vmatprep.subr.bf16.mxu0 0
    %3034 = vmatpush1.bf16.xpose.msra.mxu0 0
    %3035 = vmatprep.subr.bf16.mxu0 0
    %3036 = vmatpush1.bf16.xpose.msra.mxu0 0
    %3037 = vmatprep.subr.bf16.mxu0 0
    %3038 = vmatpush1.bf16.xpose.msra.mxu0 0
    %3039 = vmatprep.subr.bf16.mxu0 0
    %3040 = vmatpush1.bf16.xpose.msra.mxu0 0
    %3041 = vmatprep.subr.bf16.mxu0 0
    %3042 = vmatpush1.bf16.xpose.msra.mxu0 0
    %3043 = vmatprep.subr.bf16.mxu0 0
    %3044 = vmatpush1.bf16.xpose.msra.mxu0 0
    %3045 = vmatprep.subr.bf16.mxu0 0
    %3046 = vmatpush1.bf16.xpose.msra.mxu0 %v3029
    %3047 = vmatprep.subr.bf16.mxu0 0
    %3048 = vmatpush2.bf16.xpose.msra.mxu0 0
    %3049 = vmatprep.subr.bf16.mxu0 0
    %3050 = vmatpush2.bf16.xpose.msra.mxu0 0
    %3051 = vmatprep.subr.bf16.mxu0 0
    %3052 = vmatpush2.bf16.xpose.msra.mxu0 0
    %3053 = vmatprep.subr.bf16.mxu0 0
    %3054 = vmatpush2.bf16.xpose.msra.mxu0 0
    %3055 = vmatprep.subr.bf16.mxu0 0
    %3056 = vmatpush2.bf16.xpose.msra.mxu0 0
    %3057 = vmatprep.subr.bf16.mxu0 0
    %3058 = vmatpush2.bf16.xpose.msra.mxu0 0
    %3059 = vmatprep.subr.bf16.mxu0 0
    %3060 = vmatpush2.bf16.xpose.msra.mxu0 0
    %3061 = vmatprep.subr.bf16.mxu0 0
    %3062 = vmatpush2.bf16.xpose.msra.mxu0 0
    %3063 = vmatprep.mubr.bf16.mxu0 0
    %3064 = vmatmul.mubr.bf16.gmra.mxu0 %v3026
    %v3065 = vpop.f32.mrf.mxu0
    %v3066 = vadd.f32 0.0, %v3065
    %v3067 = vpop.f32.mrf.mxu0
    %v3068 = vpop.f32.mrf.mxu0
    %v3069 = vadd.f32 0.0, %v3068
    %v3070 = vpop.f32.mrf.mxu0
    %3071 = vdwg.mxu0
    %v3072 = vmul.f32 %v3066, 0.35355338
    %v3073 = vmul.f32 %v3069, 0.35355338
    %v3074 = vsel %vm545, %v3072, -inf
    %3075 = vmax.xlane.f32.xlu0 %v3074
    %v3076 = vpop.xlane.xlu0 %3075
    %v3077 = vsel %vm545, %v3073, -inf
    %3078 = vmax.xlane.f32.xlu0 %v3077
    %v3079 = vpop.xlane.xlu0 %3078
    %v3080 = vsub.f32 %v3072, %v3076
    %v3081 = vsub.f32 %v3073, %v3079
    %v3082 = vmul.f32 %v3080, 1.442695
    %v3083 = vpow.pop %v3082
    %v3084 = vmul.f32 %v3081, 1.442695
    %v3085 = vpow.pop %v3084
    %v3086 = vsel %vm545, %v3083, 0.0
    %3087 = vadd.xlane.f32.xlu0 %v3086
    %v3088 = vpop.xlane.xlu0 %3087
    %v3089 = vsel %vm545, %v3085, 0.0
    %3090 = vadd.xlane.f32.xlu0 %v3089
    %v3091 = vpop.xlane.xlu0 %3090
    %v3092 = vrcp.pop %v3088
    %v3093 = vrcp.pop %v3091
    %v3094 = vmul.f32 %v3083, %v3092
    %v3095 = vmul.f32 %v3085, %v3093
    %v3096 = vpack.c.bf16 %v3095, %v3094
    %3097 = vrot.lane.b32.xlu0 %v2503, 104
    %v3098 = vpop.permute.xlu0 %3097
    %v3101 = vsel %vm545, %v3096, 0
    %3103 = vmatprep.subr.bf16.mxu0 0
    %3104 = vmatpush1.bf16.msra.mxu0 0
    %3105 = vmatprep.subr.bf16.mxu0 0
    %3106 = vmatpush1.bf16.msra.mxu0 0
    %3107 = vmatprep.subr.bf16.mxu0 0
    %3108 = vmatpush1.bf16.msra.mxu0 0
    %3109 = vmatprep.subr.bf16.mxu0 0
    %3110 = vmatpush1.bf16.msra.mxu0 0
    %3111 = vmatprep.subr.bf16.mxu0 0
    %3112 = vmatpush1.bf16.msra.mxu0 0
    %3113 = vmatprep.subr.bf16.mxu0 0
    %3114 = vmatpush1.bf16.msra.mxu0 0
    %3115 = vmatprep.subr.bf16.mxu0 0
    %3116 = vmatpush1.bf16.msra.mxu0 0
    %3117 = vmatprep.subr.bf16.mxu0 0
    %3118 = vmatpush1.bf16.msra.mxu0 %v3098
    %3119 = vmatprep.subr.bf16.mxu0 0
    %3120 = vmatpush2.bf16.msra.mxu0 0
    %3121 = vmatprep.subr.bf16.mxu0 0
    %3122 = vmatpush2.bf16.msra.mxu0 0
    %3123 = vmatprep.subr.bf16.mxu0 0
    %3124 = vmatpush2.bf16.msra.mxu0 0
    %3125 = vmatprep.subr.bf16.mxu0 0
    %3126 = vmatpush2.bf16.msra.mxu0 0
    %3127 = vmatprep.subr.bf16.mxu0 0
    %3128 = vmatpush2.bf16.msra.mxu0 0
    %3129 = vmatprep.subr.bf16.mxu0 0
    %3130 = vmatpush2.bf16.msra.mxu0 0
    %3131 = vmatprep.subr.bf16.mxu0 0
    %3132 = vmatpush2.bf16.msra.mxu0 0
    %3133 = vmatprep.subr.bf16.mxu0 0
    %3134 = vmatpush2.bf16.msra.mxu0 0
    %3135 = vmatprep.mubr.bf16.mxu0 0
    %3136 = vmatmul.mubr.bf16.gmra.mxu0 %v3101
    %v3137 = vpop.f32.mrf.mxu0
    %v3138 = vadd.f32 0.0, %v3137
    %v3139 = vpop.f32.mrf.mxu0
    %v3140 = vpop.f32.mrf.mxu0
    %v3141 = vadd.f32 0.0, %v3140
    %v3142 = vpop.f32.mrf.mxu0
    %3143 = vdwg.mxu0
    %v3144 = vpack.c.bf16 %v3141, %v3138
    %s3145 = scalar_lea.vmem %s8, 28
    %v3146 = vld [vmem:[%s3145] sm:$0xf]
    %v3148 = vsel %vm495, %v3144, 0
    %v3151 = vsel %vm747, %v3146, 0
    %3153 = vmatprep.subr.bf16.mxu0 0
    %3154 = vmatpush1.bf16.msra.mxu0 0
    %3155 = vmatprep.subr.bf16.mxu0 0
    %3156 = vmatpush1.bf16.msra.mxu0 0
    %3157 = vmatprep.subr.bf16.mxu0 0
    %3158 = vmatpush1.bf16.msra.mxu0 0
    %3159 = vmatprep.subr.bf16.mxu0 0
    %3160 = vmatpush1.bf16.msra.mxu0 0
    %3161 = vmatprep.subr.bf16.mxu0 0
    %3162 = vmatpush1.bf16.msra.mxu0 0
    %3163 = vmatprep.subr.bf16.mxu0 0
    %3164 = vmatpush1.bf16.msra.mxu0 0
    %3165 = vmatprep.subr.bf16.mxu0 0
    %3166 = vmatpush1.bf16.msra.mxu0 0
    %3167 = vmatprep.subr.bf16.mxu0 0
    %3168 = vmatpush1.bf16.msra.mxu0 %v3151
    %3169 = vmatprep.subr.bf16.mxu0 0
    %3170 = vmatpush2.bf16.msra.mxu0 0
    %3171 = vmatprep.subr.bf16.mxu0 0
    %3172 = vmatpush2.bf16.msra.mxu0 0
    %3173 = vmatprep.subr.bf16.mxu0 0
    %3174 = vmatpush2.bf16.msra.mxu0 0
    %3175 = vmatprep.subr.bf16.mxu0 0
    %3176 = vmatpush2.bf16.msra.mxu0 0
    %3177 = vmatprep.subr.bf16.mxu0 0
    %3178 = vmatpush2.bf16.msra.mxu0 0
    %3179 = vmatprep.subr.bf16.mxu0 0
    %3180 = vmatpush2.bf16.msra.mxu0 0
    %3181 = vmatprep.subr.bf16.mxu0 0
    %3182 = vmatpush2.bf16.msra.mxu0 0
    %3183 = vmatprep.subr.bf16.mxu0 0
    %3184 = vmatpush2.bf16.msra.mxu0 0
    %3185 = vmatprep.mubr.bf16.mxu0 0
    %3186 = vmatmul.mubr.bf16.gmra.mxu0 %v3148
    %v3187 = vpop.f32.mrf.mxu0
    %v3188 = vadd.f32 0.0, %v3187
    %v3189 = vpop.f32.mrf.mxu0
    %v3190 = vpop.f32.mrf.mxu0
    %v3191 = vadd.f32 0.0, %v3190
    %v3192 = vpop.f32.mrf.mxu0
    %3193 = vdwg.mxu0
    %v3194 = vadd.f32 %v3019, %v3188
    %v3195 = vadd.f32 %v3020, %v3191
    %v3196 = vpack.c.bf16 %v2350, %v2347
    %v3197 = vpack.c.bf16 %v2424, %v2421
    %v3198 = vpack.c.bf16 %v2498, %v2495
    %v3200 = vsel %vm495, %v3196, 0
    %v3203 = vsel %vm495, %v3197, 0
    %3205 = vmatprep.subr.bf16.mxu0 0
    %3206 = vmatpush1.bf16.xpose.msra.mxu0 0
    %3207 = vmatprep.subr.bf16.mxu0 0
    %3208 = vmatpush1.bf16.xpose.msra.mxu0 0
    %3209 = vmatprep.subr.bf16.mxu0 0
    %3210 = vmatpush1.bf16.xpose.msra.mxu0 0
    %3211 = vmatprep.subr.bf16.mxu0 0
    %3212 = vmatpush1.bf16.xpose.msra.mxu0 0
    %3213 = vmatprep.subr.bf16.mxu0 0
    %3214 = vmatpush1.bf16.xpose.msra.mxu0 0
    %3215 = vmatprep.subr.bf16.mxu0 0
    %3216 = vmatpush1.bf16.xpose.msra.mxu0 0
    %3217 = vmatprep.subr.bf16.mxu0 0
    %3218 = vmatpush1.bf16.xpose.msra.mxu0 0
    %3219 = vmatprep.subr.bf16.mxu0 0
    %3220 = vmatpush1.bf16.xpose.msra.mxu0 %v3203
    %3221 = vmatprep.subr.bf16.mxu0 0
    %3222 = vmatpush2.bf16.xpose.msra.mxu0 0
    %3223 = vmatprep.subr.bf16.mxu0 0
    %3224 = vmatpush2.bf16.xpose.msra.mxu0 0
    %3225 = vmatprep.subr.bf16.mxu0 0
    %3226 = vmatpush2.bf16.xpose.msra.mxu0 0
    %3227 = vmatprep.subr.bf16.mxu0 0
    %3228 = vmatpush2.bf16.xpose.msra.mxu0 0
    %3229 = vmatprep.subr.bf16.mxu0 0
    %3230 = vmatpush2.bf16.xpose.msra.mxu0 0
    %3231 = vmatprep.subr.bf16.mxu0 0
    %3232 = vmatpush2.bf16.xpose.msra.mxu0 0
    %3233 = vmatprep.subr.bf16.mxu0 0
    %3234 = vmatpush2.bf16.xpose.msra.mxu0 0
    %3235 = vmatprep.subr.bf16.mxu0 0
    %3236 = vmatpush2.bf16.xpose.msra.mxu0 0
    %3237 = vmatprep.mubr.bf16.mxu0 0
    %3238 = vmatmul.mubr.bf16.gmra.mxu0 %v3200
    %v3239 = vpop.f32.mrf.mxu0
    %v3240 = vadd.f32 0.0, %v3239
    %v3241 = vpop.f32.mrf.mxu0
    %v3242 = vpop.f32.mrf.mxu0
    %v3243 = vadd.f32 0.0, %v3242
    %v3244 = vpop.f32.mrf.mxu0
    %3245 = vdwg.mxu0
    %v3246 = vmul.f32 %v3240, 0.35355338
    %v3247 = vmul.f32 %v3243, 0.35355338
    %v3248 = vsel %vm545, %v3246, -inf
    %3249 = vmax.xlane.f32.xlu0 %v3248
    %v3250 = vpop.xlane.xlu0 %3249
    %v3251 = vsel %vm545, %v3247, -inf
    %3252 = vmax.xlane.f32.xlu0 %v3251
    %v3253 = vpop.xlane.xlu0 %3252
    %v3254 = vsub.f32 %v3246, %v3250
    %v3255 = vsub.f32 %v3247, %v3253
    %v3256 = vmul.f32 %v3254, 1.442695
    %v3257 = vpow.pop %v3256
    %v3258 = vmul.f32 %v3255, 1.442695
    %v3259 = vpow.pop %v3258
    %v3260 = vsel %vm545, %v3257, 0.0
    %3261 = vadd.xlane.f32.xlu0 %v3260
    %v3262 = vpop.xlane.xlu0 %3261
    %v3263 = vsel %vm545, %v3259, 0.0
    %3264 = vadd.xlane.f32.xlu0 %v3263
    %v3265 = vpop.xlane.xlu0 %3264
    %v3266 = vrcp.pop %v3262
    %v3267 = vrcp.pop %v3265
    %v3268 = vmul.f32 %v3257, %v3266
    %v3269 = vmul.f32 %v3259, %v3267
    %v3270 = vpack.c.bf16 %v3269, %v3268
    %v3272 = vsel %vm545, %v3270, 0
    %3274 = vmatprep.subr.bf16.mxu0 0
    %3275 = vmatpush1.bf16.msra.mxu0 0
    %3276 = vmatprep.subr.bf16.mxu0 0
    %3277 = vmatpush1.bf16.msra.mxu0 0
    %3278 = vmatprep.subr.bf16.mxu0 0
    %3279 = vmatpush1.bf16.msra.mxu0 0
    %3280 = vmatprep.subr.bf16.mxu0 0
    %3281 = vmatpush1.bf16.msra.mxu0 0
    %3282 = vmatprep.subr.bf16.mxu0 0
    %3283 = vmatpush1.bf16.msra.mxu0 0
    %3284 = vmatprep.subr.bf16.mxu0 0
    %3285 = vmatpush1.bf16.msra.mxu0 0
    %3286 = vmatprep.subr.bf16.mxu0 0
    %3287 = vmatpush1.bf16.msra.mxu0 0
    %3288 = vmatprep.subr.bf16.mxu0 0
    %3289 = vmatpush1.bf16.msra.mxu0 %v3198
    %3290 = vmatprep.subr.bf16.mxu0 0
    %3291 = vmatpush2.bf16.msra.mxu0 0
    %3292 = vmatprep.subr.bf16.mxu0 0
    %3293 = vmatpush2.bf16.msra.mxu0 0
    %3294 = vmatprep.subr.bf16.mxu0 0
    %3295 = vmatpush2.bf16.msra.mxu0 0
    %3296 = vmatprep.subr.bf16.mxu0 0
    %3297 = vmatpush2.bf16.msra.mxu0 0
    %3298 = vmatprep.subr.bf16.mxu0 0
    %3299 = vmatpush2.bf16.msra.mxu0 0
    %3300 = vmatprep.subr.bf16.mxu0 0
    %3301 = vmatpush2.bf16.msra.mxu0 0
    %3302 = vmatprep.subr.bf16.mxu0 0
    %3303 = vmatpush2.bf16.msra.mxu0 0
    %3304 = vmatprep.subr.bf16.mxu0 0
    %3305 = vmatpush2.bf16.msra.mxu0 0
    %3306 = vmatprep.mubr.bf16.mxu0 0
    %3307 = vmatmul.mubr.bf16.gmra.mxu0 %v3272
    %v3308 = vpop.f32.mrf.mxu0
    %v3309 = vadd.f32 0.0, %v3308
    %v3310 = vpop.f32.mrf.mxu0
    %v3311 = vpop.f32.mrf.mxu0
    %v3312 = vadd.f32 0.0, %v3311
    %v3313 = vpop.f32.mrf.mxu0
    %3314 = vdwg.mxu0
    %v3315 = vpack.c.bf16 %v3312, %v3309
    %3317 = vrot.lane.b32.xlu0 %v3196, 120
    %v3318 = vpop.permute.xlu0 %3317
    %3320 = vrot.lane.b32.xlu0 %v3197, 120
    %v3321 = vpop.permute.xlu0 %3320
    %v3323 = vsel %vm495, %v3318, 0
    %v3326 = vsel %vm495, %v3321, 0
    %3328 = vmatprep.subr.bf16.mxu0 0
    %3329 = vmatpush1.bf16.xpose.msra.mxu0 0
    %3330 = vmatprep.subr.bf16.mxu0 0
    %3331 = vmatpush1.bf16.xpose.msra.mxu0 0
    %3332 = vmatprep.subr.bf16.mxu0 0
    %3333 = vmatpush1.bf16.xpose.msra.mxu0 0
    %3334 = vmatprep.subr.bf16.mxu0 0
    %3335 = vmatpush1.bf16.xpose.msra.mxu0 0
    %3336 = vmatprep.subr.bf16.mxu0 0
    %3337 = vmatpush1.bf16.xpose.msra.mxu0 0
    %3338 = vmatprep.subr.bf16.mxu0 0
    %3339 = vmatpush1.bf16.xpose.msra.mxu0 0
    %3340 = vmatprep.subr.bf16.mxu0 0
    %3341 = vmatpush1.bf16.xpose.msra.mxu0 0
    %3342 = vmatprep.subr.bf16.mxu0 0
    %3343 = vmatpush1.bf16.xpose.msra.mxu0 %v3326
    %3344 = vmatprep.subr.bf16.mxu0 0
    %3345 = vmatpush2.bf16.xpose.msra.mxu0 0
    %3346 = vmatprep.subr.bf16.mxu0 0
    %3347 = vmatpush2.bf16.xpose.msra.mxu0 0
    %3348 = vmatprep.subr.bf16.mxu0 0
    %3349 = vmatpush2.bf16.xpose.msra.mxu0 0
    %3350 = vmatprep.subr.bf16.mxu0 0
    %3351 = vmatpush2.bf16.xpose.msra.mxu0 0
    %3352 = vmatprep.subr.bf16.mxu0 0
    %3353 = vmatpush2.bf16.xpose.msra.mxu0 0
    %3354 = vmatprep.subr.bf16.mxu0 0
    %3355 = vmatpush2.bf16.xpose.msra.mxu0 0
    %3356 = vmatprep.subr.bf16.mxu0 0
    %3357 = vmatpush2.bf16.xpose.msra.mxu0 0
    %3358 = vmatprep.subr.bf16.mxu0 0
    %3359 = vmatpush2.bf16.xpose.msra.mxu0 0
    %3360 = vmatprep.mubr.bf16.mxu0 0
    %3361 = vmatmul.mubr.bf16.gmra.mxu0 %v3323
    %v3362 = vpop.f32.mrf.mxu0
    %v3363 = vadd.f32 0.0, %v3362
    %v3364 = vpop.f32.mrf.mxu0
    %v3365 = vpop.f32.mrf.mxu0
    %v3366 = vadd.f32 0.0, %v3365
    %v3367 = vpop.f32.mrf.mxu0
    %3368 = vdwg.mxu0
    %v3369 = vmul.f32 %v3363, 0.35355338
    %v3370 = vmul.f32 %v3366, 0.35355338
    %v3371 = vsel %vm545, %v3369, -inf
    %3372 = vmax.xlane.f32.xlu0 %v3371
    %v3373 = vpop.xlane.xlu0 %3372
    %v3374 = vsel %vm545, %v3370, -inf
    %3375 = vmax.xlane.f32.xlu0 %v3374
    %v3376 = vpop.xlane.xlu0 %3375
    %v3377 = vsub.f32 %v3369, %v3373
    %v3378 = vsub.f32 %v3370, %v3376
    %v3379 = vmul.f32 %v3377, 1.442695
    %v3380 = vpow.pop %v3379
    %v3381 = vmul.f32 %v3378, 1.442695
    %v3382 = vpow.pop %v3381
    %v3383 = vsel %vm545, %v3380, 0.0
    %3384 = vadd.xlane.f32.xlu0 %v3383
    %v3385 = vpop.xlane.xlu0 %3384
    %v3386 = vsel %vm545, %v3382, 0.0
    %3387 = vadd.xlane.f32.xlu0 %v3386
    %v3388 = vpop.xlane.xlu0 %3387
    %v3389 = vrcp.pop %v3385
    %v3390 = vrcp.pop %v3388
    %v3391 = vmul.f32 %v3380, %v3389
    %v3392 = vmul.f32 %v3382, %v3390
    %v3393 = vpack.c.bf16 %v3392, %v3391
    %3395 = vrot.lane.b32.xlu0 %v3198, 120
    %v3396 = vpop.permute.xlu0 %3395
    %v3399 = vsel %vm545, %v3393, 0
    %3401 = vmatprep.subr.bf16.mxu0 0
    %3402 = vmatpush1.bf16.msra.mxu0 0
    %3403 = vmatprep.subr.bf16.mxu0 0
    %3404 = vmatpush1.bf16.msra.mxu0 0
    %3405 = vmatprep.subr.bf16.mxu0 0
    %3406 = vmatpush1.bf16.msra.mxu0 0
    %3407 = vmatprep.subr.bf16.mxu0 0
    %3408 = vmatpush1.bf16.msra.mxu0 0
    %3409 = vmatprep.subr.bf16.mxu0 0
    %3410 = vmatpush1.bf16.msra.mxu0 0
    %3411 = vmatprep.subr.bf16.mxu0 0
    %3412 = vmatpush1.bf16.msra.mxu0 0
    %3413 = vmatprep.subr.bf16.mxu0 0
    %3414 = vmatpush1.bf16.msra.mxu0 0
    %3415 = vmatprep.subr.bf16.mxu0 0
    %3416 = vmatpush1.bf16.msra.mxu0 %v3396
    %3417 = vmatprep.subr.bf16.mxu0 0
    %3418 = vmatpush2.bf16.msra.mxu0 0
    %3419 = vmatprep.subr.bf16.mxu0 0
    %3420 = vmatpush2.bf16.msra.mxu0 0
    %3421 = vmatprep.subr.bf16.mxu0 0
    %3422 = vmatpush2.bf16.msra.mxu0 0
    %3423 = vmatprep.subr.bf16.mxu0 0
    %3424 = vmatpush2.bf16.msra.mxu0 0
    %3425 = vmatprep.subr.bf16.mxu0 0
    %3426 = vmatpush2.bf16.msra.mxu0 0
    %3427 = vmatprep.subr.bf16.mxu0 0
    %3428 = vmatpush2.bf16.msra.mxu0 0
    %3429 = vmatprep.subr.bf16.mxu0 0
    %3430 = vmatpush2.bf16.msra.mxu0 0
    %3431 = vmatprep.subr.bf16.mxu0 0
    %3432 = vmatpush2.bf16.msra.mxu0 0
    %3433 = vmatprep.mubr.bf16.mxu0 0
    %3434 = vmatmul.mubr.bf16.gmra.mxu0 %v3399
    %v3435 = vpop.f32.mrf.mxu0
    %v3436 = vadd.f32 0.0, %v3435
    %v3437 = vpop.f32.mrf.mxu0
    %v3438 = vpop.f32.mrf.mxu0
    %v3439 = vadd.f32 0.0, %v3438
    %v3440 = vpop.f32.mrf.mxu0
    %3441 = vdwg.mxu0
    %v3442 = vpack.c.bf16 %v3439, %v3436
    %v3444 = vsel %vm495, %v3442, 0
    %3446 = vmatprep.subr.bf16.mxu0 0
    %3447 = vmatpush1.bf16.msra.mxu0 0
    %3448 = vmatprep.subr.bf16.mxu0 0
    %3449 = vmatpush1.bf16.msra.mxu0 0
    %3450 = vmatprep.subr.bf16.mxu0 0
    %3451 = vmatpush1.bf16.msra.mxu0 0
    %3452 = vmatprep.subr.bf16.mxu0 0
    %3453 = vmatpush1.bf16.msra.mxu0 0
    %3454 = vmatprep.subr.bf16.mxu0 0
    %3455 = vmatpush1.bf16.msra.mxu0 0
    %3456 = vmatprep.subr.bf16.mxu0 0
    %3457 = vmatpush1.bf16.msra.mxu0 0
    %3458 = vmatprep.subr.bf16.mxu0 0
    %3459 = vmatpush1.bf16.msra.mxu0 0
    %3460 = vmatprep.subr.bf16.mxu0 0
    %3461 = vmatpush1.bf16.msra.mxu0 %v2756
    %3462 = vmatprep.subr.bf16.mxu0 0
    %3463 = vmatpush2.bf16.msra.mxu0 0
    %3464 = vmatprep.subr.bf16.mxu0 0
    %3465 = vmatpush2.bf16.msra.mxu0 0
    %3466 = vmatprep.subr.bf16.mxu0 0
    %3467 = vmatpush2.bf16.msra.mxu0 0
    %3468 = vmatprep.subr.bf16.mxu0 0
    %3469 = vmatpush2.bf16.msra.mxu0 0
    %3470 = vmatprep.subr.bf16.mxu0 0
    %3471 = vmatpush2.bf16.msra.mxu0 0
    %3472 = vmatprep.subr.bf16.mxu0 0
    %3473 = vmatpush2.bf16.msra.mxu0 0
    %3474 = vmatprep.subr.bf16.mxu0 0
    %3475 = vmatpush2.bf16.msra.mxu0 0
    %3476 = vmatprep.subr.bf16.mxu0 0
    %3477 = vmatpush2.bf16.msra.mxu0 0
    %3478 = vmatprep.mubr.bf16.mxu0 0
    %3479 = vmatmul.mubr.bf16.gmra.mxu0 %v3444
    %v3480 = vpop.f32.mrf.mxu0
    %v3481 = vadd.f32 0.0, %v3480
    %v3482 = vpop.f32.mrf.mxu0
    %v3483 = vpop.f32.mrf.mxu0
    %v3484 = vadd.f32 0.0, %v3483
    %v3485 = vpop.f32.mrf.mxu0
    %3486 = vdwg.mxu0
    %v3488 = vsel %vm495, %v3315, 0
    %3490 = vmatprep.subr.bf16.mxu0 0
    %3491 = vmatpush1.bf16.msra.mxu0 0
    %3492 = vmatprep.subr.bf16.mxu0 0
    %3493 = vmatpush1.bf16.msra.mxu0 0
    %3494 = vmatprep.subr.bf16.mxu0 0
    %3495 = vmatpush1.bf16.msra.mxu0 0
    %3496 = vmatprep.subr.bf16.mxu0 0
    %3497 = vmatpush1.bf16.msra.mxu0 0
    %3498 = vmatprep.subr.bf16.mxu0 0
    %3499 = vmatpush1.bf16.msra.mxu0 0
    %3500 = vmatprep.subr.bf16.mxu0 0
    %3501 = vmatpush1.bf16.msra.mxu0 0
    %3502 = vmatprep.subr.bf16.mxu0 0
    %3503 = vmatpush1.bf16.msra.mxu0 0
    %3504 = vmatprep.subr.bf16.mxu0 0
    %3505 = vmatpush1.bf16.msra.mxu0 %v2803
    %3506 = vmatprep.subr.bf16.mxu0 0
    %3507 = vmatpush2.bf16.msra.mxu0 0
    %3508 = vmatprep.subr.bf16.mxu0 0
    %3509 = vmatpush2.bf16.msra.mxu0 0
    %3510 = vmatprep.subr.bf16.mxu0 0
    %3511 = vmatpush2.bf16.msra.mxu0 0
    %3512 = vmatprep.subr.bf16.mxu0 0
    %3513 = vmatpush2.bf16.msra.mxu0 0
    %3514 = vmatprep.subr.bf16.mxu0 0
    %3515 = vmatpush2.bf16.msra.mxu0 0
    %3516 = vmatprep.subr.bf16.mxu0 0
    %3517 = vmatpush2.bf16.msra.mxu0 0
    %3518 = vmatprep.subr.bf16.mxu0 0
    %3519 = vmatpush2.bf16.msra.mxu0 0
    %3520 = vmatprep.subr.bf16.mxu0 0
    %3521 = vmatpush2.bf16.msra.mxu0 0
    %3522 = vmatprep.mubr.bf16.mxu0 0
    %3523 = vmatmul.mubr.bf16.gmra.mxu0 %v3488
    %v3524 = vpop.f32.mrf.mxu0
    %v3525 = vadd.f32 %v3481, %v3524
    %v3526 = vpop.f32.mrf.mxu0
    %v3527 = vpop.f32.mrf.mxu0
    %v3528 = vadd.f32 %v3484, %v3527
    %v3529 = vpop.f32.mrf.mxu0
    %3530 = vdwg.mxu0
    %3531 = vrot.lane.b32.xlu0 %v3196, 112
    %v3532 = vpop.permute.xlu0 %3531
    %3533 = vrot.lane.b32.xlu0 %v3197, 112
    %v3534 = vpop.permute.xlu0 %3533
    %v3536 = vsel %vm495, %v3532, 0
    %v3539 = vsel %vm495, %v3534, 0
    %3541 = vmatprep.subr.bf16.mxu0 0
    %3542 = vmatpush1.bf16.xpose.msra.mxu0 0
    %3543 = vmatprep.subr.bf16.mxu0 0
    %3544 = vmatpush1.bf16.xpose.msra.mxu0 0
    %3545 = vmatprep.subr.bf16.mxu0 0
    %3546 = vmatpush1.bf16.xpose.msra.mxu0 0
    %3547 = vmatprep.subr.bf16.mxu0 0
    %3548 = vmatpush1.bf16.xpose.msra.mxu0 0
    %3549 = vmatprep.subr.bf16.mxu0 0
    %3550 = vmatpush1.bf16.xpose.msra.mxu0 0
    %3551 = vmatprep.subr.bf16.mxu0 0
    %3552 = vmatpush1.bf16.xpose.msra.mxu0 0
    %3553 = vmatprep.subr.bf16.mxu0 0
    %3554 = vmatpush1.bf16.xpose.msra.mxu0 0
    %3555 = vmatprep.subr.bf16.mxu0 0
    %3556 = vmatpush1.bf16.xpose.msra.mxu0 %v3539
    %3557 = vmatprep.subr.bf16.mxu0 0
    %3558 = vmatpush2.bf16.xpose.msra.mxu0 0
    %3559 = vmatprep.subr.bf16.mxu0 0
    %3560 = vmatpush2.bf16.xpose.msra.mxu0 0
    %3561 = vmatprep.subr.bf16.mxu0 0
    %3562 = vmatpush2.bf16.xpose.msra.mxu0 0
    %3563 = vmatprep.subr.bf16.mxu0 0
    %3564 = vmatpush2.bf16.xpose.msra.mxu0 0
    %3565 = vmatprep.subr.bf16.mxu0 0
    %3566 = vmatpush2.bf16.xpose.msra.mxu0 0
    %3567 = vmatprep.subr.bf16.mxu0 0
    %3568 = vmatpush2.bf16.xpose.msra.mxu0 0
    %3569 = vmatprep.subr.bf16.mxu0 0
    %3570 = vmatpush2.bf16.xpose.msra.mxu0 0
    %3571 = vmatprep.subr.bf16.mxu0 0
    %3572 = vmatpush2.bf16.xpose.msra.mxu0 0
    %3573 = vmatprep.mubr.bf16.mxu0 0
    %3574 = vmatmul.mubr.bf16.gmra.mxu0 %v3536
    %v3575 = vpop.f32.mrf.mxu0
    %v3576 = vadd.f32 0.0, %v3575
    %v3577 = vpop.f32.mrf.mxu0
    %v3578 = vpop.f32.mrf.mxu0
    %v3579 = vadd.f32 0.0, %v3578
    %v3580 = vpop.f32.mrf.mxu0
    %3581 = vdwg.mxu0
    %v3582 = vmul.f32 %v3576, 0.35355338
    %v3583 = vmul.f32 %v3579, 0.35355338
    %v3584 = vsel %vm545, %v3582, -inf
    %3585 = vmax.xlane.f32.xlu0 %v3584
    %v3586 = vpop.xlane.xlu0 %3585
    %v3587 = vsel %vm545, %v3583, -inf
    %3588 = vmax.xlane.f32.xlu0 %v3587
    %v3589 = vpop.xlane.xlu0 %3588
    %v3590 = vsub.f32 %v3582, %v3586
    %v3591 = vsub.f32 %v3583, %v3589
    %v3592 = vmul.f32 %v3590, 1.442695
    %v3593 = vpow.pop %v3592
    %v3594 = vmul.f32 %v3591, 1.442695
    %v3595 = vpow.pop %v3594
    %v3596 = vsel %vm545, %v3593, 0.0
    %3597 = vadd.xlane.f32.xlu0 %v3596
    %v3598 = vpop.xlane.xlu0 %3597
    %v3599 = vsel %vm545, %v3595, 0.0
    %3600 = vadd.xlane.f32.xlu0 %v3599
    %v3601 = vpop.xlane.xlu0 %3600
    %v3602 = vrcp.pop %v3598
    %v3603 = vrcp.pop %v3601
    %v3604 = vmul.f32 %v3593, %v3602
    %v3605 = vmul.f32 %v3595, %v3603
    %v3606 = vpack.c.bf16 %v3605, %v3604
    %3607 = vrot.lane.b32.xlu0 %v3198, 112
    %v3608 = vpop.permute.xlu0 %3607
    %v3611 = vsel %vm545, %v3606, 0
    %3613 = vmatprep.subr.bf16.mxu0 0
    %3614 = vmatpush1.bf16.msra.mxu0 0
    %3615 = vmatprep.subr.bf16.mxu0 0
    %3616 = vmatpush1.bf16.msra.mxu0 0
    %3617 = vmatprep.subr.bf16.mxu0 0
    %3618 = vmatpush1.bf16.msra.mxu0 0
    %3619 = vmatprep.subr.bf16.mxu0 0
    %3620 = vmatpush1.bf16.msra.mxu0 0
    %3621 = vmatprep.subr.bf16.mxu0 0
    %3622 = vmatpush1.bf16.msra.mxu0 0
    %3623 = vmatprep.subr.bf16.mxu0 0
    %3624 = vmatpush1.bf16.msra.mxu0 0
    %3625 = vmatprep.subr.bf16.mxu0 0
    %3626 = vmatpush1.bf16.msra.mxu0 0
    %3627 = vmatprep.subr.bf16.mxu0 0
    %3628 = vmatpush1.bf16.msra.mxu0 %v3608
    %3629 = vmatprep.subr.bf16.mxu0 0
    %3630 = vmatpush2.bf16.msra.mxu0 0
    %3631 = vmatprep.subr.bf16.mxu0 0
    %3632 = vmatpush2.bf16.msra.mxu0 0
    %3633 = vmatprep.subr.bf16.mxu0 0
    %3634 = vmatpush2.bf16.msra.mxu0 0
    %3635 = vmatprep.subr.bf16.mxu0 0
    %3636 = vmatpush2.bf16.msra.mxu0 0
    %3637 = vmatprep.subr.bf16.mxu0 0
    %3638 = vmatpush2.bf16.msra.mxu0 0
    %3639 = vmatprep.subr.bf16.mxu0 0
    %3640 = vmatpush2.bf16.msra.mxu0 0
    %3641 = vmatprep.subr.bf16.mxu0 0
    %3642 = vmatpush2.bf16.msra.mxu0 0
    %3643 = vmatprep.subr.bf16.mxu0 0
    %3644 = vmatpush2.bf16.msra.mxu0 0
    %3645 = vmatprep.mubr.bf16.mxu0 0
    %3646 = vmatmul.mubr.bf16.gmra.mxu0 %v3611
    %v3647 = vpop.f32.mrf.mxu0
    %v3648 = vadd.f32 0.0, %v3647
    %v3649 = vpop.f32.mrf.mxu0
    %v3650 = vpop.f32.mrf.mxu0
    %v3651 = vadd.f32 0.0, %v3650
    %v3652 = vpop.f32.mrf.mxu0
    %3653 = vdwg.mxu0
    %v3654 = vpack.c.bf16 %v3651, %v3648
    %v3656 = vsel %vm495, %v3654, 0
    %3658 = vmatprep.subr.bf16.mxu0 0
    %3659 = vmatpush1.bf16.msra.mxu0 0
    %3660 = vmatprep.subr.bf16.mxu0 0
    %3661 = vmatpush1.bf16.msra.mxu0 0
    %3662 = vmatprep.subr.bf16.mxu0 0
    %3663 = vmatpush1.bf16.msra.mxu0 0
    %3664 = vmatprep.subr.bf16.mxu0 0
    %3665 = vmatpush1.bf16.msra.mxu0 0
    %3666 = vmatprep.subr.bf16.mxu0 0
    %3667 = vmatpush1.bf16.msra.mxu0 0
    %3668 = vmatprep.subr.bf16.mxu0 0
    %3669 = vmatpush1.bf16.msra.mxu0 0
    %3670 = vmatprep.subr.bf16.mxu0 0
    %3671 = vmatpush1.bf16.msra.mxu0 0
    %3672 = vmatprep.subr.bf16.mxu0 0
    %3673 = vmatpush1.bf16.msra.mxu0 %v2976
    %3674 = vmatprep.subr.bf16.mxu0 0
    %3675 = vmatpush2.bf16.msra.mxu0 0
    %3676 = vmatprep.subr.bf16.mxu0 0
    %3677 = vmatpush2.bf16.msra.mxu0 0
    %3678 = vmatprep.subr.bf16.mxu0 0
    %3679 = vmatpush2.bf16.msra.mxu0 0
    %3680 = vmatprep.subr.bf16.mxu0 0
    %3681 = vmatpush2.bf16.msra.mxu0 0
    %3682 = vmatprep.subr.bf16.mxu0 0
    %3683 = vmatpush2.bf16.msra.mxu0 0
    %3684 = vmatprep.subr.bf16.mxu0 0
    %3685 = vmatpush2.bf16.msra.mxu0 0
    %3686 = vmatprep.subr.bf16.mxu0 0
    %3687 = vmatpush2.bf16.msra.mxu0 0
    %3688 = vmatprep.subr.bf16.mxu0 0
    %3689 = vmatpush2.bf16.msra.mxu0 0
    %3690 = vmatprep.mubr.bf16.mxu0 0
    %3691 = vmatmul.mubr.bf16.gmra.mxu0 %v3656
    %v3692 = vpop.f32.mrf.mxu0
    %v3693 = vadd.f32 0.0, %v3692
    %v3694 = vpop.f32.mrf.mxu0
    %v3695 = vpop.f32.mrf.mxu0
    %v3696 = vadd.f32 0.0, %v3695
    %v3697 = vpop.f32.mrf.mxu0
    %3698 = vdwg.mxu0
    %v3699 = vadd.f32 %v3525, %v3693
    %v3700 = vadd.f32 %v3528, %v3696
    %3701 = vrot.lane.b32.xlu0 %v3196, 104
    %v3702 = vpop.permute.xlu0 %3701
    %3703 = vrot.lane.b32.xlu0 %v3197, 104
    %v3704 = vpop.permute.xlu0 %3703
    %v3706 = vsel %vm495, %v3702, 0
    %v3709 = vsel %vm495, %v3704, 0
    %3711 = vmatprep.subr.bf16.mxu0 0
    %3712 = vmatpush1.bf16.xpose.msra.mxu0 0
    %3713 = vmatprep.subr.bf16.mxu0 0
    %3714 = vmatpush1.bf16.xpose.msra.mxu0 0
    %3715 = vmatprep.subr.bf16.mxu0 0
    %3716 = vmatpush1.bf16.xpose.msra.mxu0 0
    %3717 = vmatprep.subr.bf16.mxu0 0
    %3718 = vmatpush1.bf16.xpose.msra.mxu0 0
    %3719 = vmatprep.subr.bf16.mxu0 0
    %3720 = vmatpush1.bf16.xpose.msra.mxu0 0
    %3721 = vmatprep.subr.bf16.mxu0 0
    %3722 = vmatpush1.bf16.xpose.msra.mxu0 0
    %3723 = vmatprep.subr.bf16.mxu0 0
    %3724 = vmatpush1.bf16.xpose.msra.mxu0 0
    %3725 = vmatprep.subr.bf16.mxu0 0
    %3726 = vmatpush1.bf16.xpose.msra.mxu0 %v3709
    %3727 = vmatprep.subr.bf16.mxu0 0
    %3728 = vmatpush2.bf16.xpose.msra.mxu0 0
    %3729 = vmatprep.subr.bf16.mxu0 0
    %3730 = vmatpush2.bf16.xpose.msra.mxu0 0
    %3731 = vmatprep.subr.bf16.mxu0 0
    %3732 = vmatpush2.bf16.xpose.msra.mxu0 0
    %3733 = vmatprep.subr.bf16.mxu0 0
    %3734 = vmatpush2.bf16.xpose.msra.mxu0 0
    %3735 = vmatprep.subr.bf16.mxu0 0
    %3736 = vmatpush2.bf16.xpose.msra.mxu0 0
    %3737 = vmatprep.subr.bf16.mxu0 0
    %3738 = vmatpush2.bf16.xpose.msra.mxu0 0
    %3739 = vmatprep.subr.bf16.mxu0 0
    %3740 = vmatpush2.bf16.xpose.msra.mxu0 0
    %3741 = vmatprep.subr.bf16.mxu0 0
    %3742 = vmatpush2.bf16.xpose.msra.mxu0 0
    %3743 = vmatprep.mubr.bf16.mxu0 0
    %3744 = vmatmul.mubr.bf16.gmra.mxu0 %v3706
    %v3745 = vpop.f32.mrf.mxu0
    %v3746 = vadd.f32 0.0, %v3745
    %v3747 = vpop.f32.mrf.mxu0
    %v3748 = vpop.f32.mrf.mxu0
    %v3749 = vadd.f32 0.0, %v3748
    %v3750 = vpop.f32.mrf.mxu0
    %3751 = vdwg.mxu0
    %v3752 = vmul.f32 %v3746, 0.35355338
    %v3753 = vmul.f32 %v3749, 0.35355338
    %v3754 = vsel %vm545, %v3752, -inf
    %3755 = vmax.xlane.f32.xlu0 %v3754
    %v3756 = vpop.xlane.xlu0 %3755
    %v3757 = vsel %vm545, %v3753, -inf
    %3758 = vmax.xlane.f32.xlu0 %v3757
    %v3759 = vpop.xlane.xlu0 %3758
    %v3760 = vsub.f32 %v3752, %v3756
    %v3761 = vsub.f32 %v3753, %v3759
    %v3762 = vmul.f32 %v3760, 1.442695
    %v3763 = vpow.pop %v3762
    %v3764 = vmul.f32 %v3761, 1.442695
    %v3765 = vpow.pop %v3764
    %v3766 = vsel %vm545, %v3763, 0.0
    %3767 = vadd.xlane.f32.xlu0 %v3766
    %v3768 = vpop.xlane.xlu0 %3767
    %v3769 = vsel %vm545, %v3765, 0.0
    %3770 = vadd.xlane.f32.xlu0 %v3769
    %v3771 = vpop.xlane.xlu0 %3770
    %v3772 = vrcp.pop %v3768
    %v3773 = vrcp.pop %v3771
    %v3774 = vmul.f32 %v3763, %v3772
    %v3775 = vmul.f32 %v3765, %v3773
    %v3776 = vpack.c.bf16 %v3775, %v3774
    %3777 = vrot.lane.b32.xlu0 %v3198, 104
    %v3778 = vpop.permute.xlu0 %3777
    %v3781 = vsel %vm545, %v3776, 0
    %3783 = vmatprep.subr.bf16.mxu0 0
    %3784 = vmatpush1.bf16.msra.mxu0 0
    %3785 = vmatprep.subr.bf16.mxu0 0
    %3786 = vmatpush1.bf16.msra.mxu0 0
    %3787 = vmatprep.subr.bf16.mxu0 0
    %3788 = vmatpush1.bf16.msra.mxu0 0
    %3789 = vmatprep.subr.bf16.mxu0 0
    %3790 = vmatpush1.bf16.msra.mxu0 0
    %3791 = vmatprep.subr.bf16.mxu0 0
    %3792 = vmatpush1.bf16.msra.mxu0 0
    %3793 = vmatprep.subr.bf16.mxu0 0
    %3794 = vmatpush1.bf16.msra.mxu0 0
    %3795 = vmatprep.subr.bf16.mxu0 0
    %3796 = vmatpush1.bf16.msra.mxu0 0
    %3797 = vmatprep.subr.bf16.mxu0 0
    %3798 = vmatpush1.bf16.msra.mxu0 %v3778
    %3799 = vmatprep.subr.bf16.mxu0 0
    %3800 = vmatpush2.bf16.msra.mxu0 0
    %3801 = vmatprep.subr.bf16.mxu0 0
    %3802 = vmatpush2.bf16.msra.mxu0 0
    %3803 = vmatprep.subr.bf16.mxu0 0
    %3804 = vmatpush2.bf16.msra.mxu0 0
    %3805 = vmatprep.subr.bf16.mxu0 0
    %3806 = vmatpush2.bf16.msra.mxu0 0
    %3807 = vmatprep.subr.bf16.mxu0 0
    %3808 = vmatpush2.bf16.msra.mxu0 0
    %3809 = vmatprep.subr.bf16.mxu0 0
    %3810 = vmatpush2.bf16.msra.mxu0 0
    %3811 = vmatprep.subr.bf16.mxu0 0
    %3812 = vmatpush2.bf16.msra.mxu0 0
    %3813 = vmatprep.subr.bf16.mxu0 0
    %3814 = vmatpush2.bf16.msra.mxu0 0
    %3815 = vmatprep.mubr.bf16.mxu0 0
    %3816 = vmatmul.mubr.bf16.gmra.mxu0 %v3781
    %v3817 = vpop.f32.mrf.mxu0
    %v3818 = vadd.f32 0.0, %v3817
    %v3819 = vpop.f32.mrf.mxu0
    %v3820 = vpop.f32.mrf.mxu0
    %v3821 = vadd.f32 0.0, %v3820
    %v3822 = vpop.f32.mrf.mxu0
    %3823 = vdwg.mxu0
    %v3824 = vpack.c.bf16 %v3821, %v3818
    %v3826 = vsel %vm495, %v3824, 0
    %3828 = vmatprep.subr.bf16.mxu0 0
    %3829 = vmatpush1.bf16.msra.mxu0 0
    %3830 = vmatprep.subr.bf16.mxu0 0
    %3831 = vmatpush1.bf16.msra.mxu0 0
    %3832 = vmatprep.subr.bf16.mxu0 0
    %3833 = vmatpush1.bf16.msra.mxu0 0
    %3834 = vmatprep.subr.bf16.mxu0 0
    %3835 = vmatpush1.bf16.msra.mxu0 0
    %3836 = vmatprep.subr.bf16.mxu0 0
    %3837 = vmatpush1.bf16.msra.mxu0 0
    %3838 = vmatprep.subr.bf16.mxu0 0
    %3839 = vmatpush1.bf16.msra.mxu0 0
    %3840 = vmatprep.subr.bf16.mxu0 0
    %3841 = vmatpush1.bf16.msra.mxu0 0
    %3842 = vmatprep.subr.bf16.mxu0 0
    %3843 = vmatpush1.bf16.msra.mxu0 %v3151
    %3844 = vmatprep.subr.bf16.mxu0 0
    %3845 = vmatpush2.bf16.msra.mxu0 0
    %3846 = vmatprep.subr.bf16.mxu0 0
    %3847 = vmatpush2.bf16.msra.mxu0 0
    %3848 = vmatprep.subr.bf16.mxu0 0
    %3849 = vmatpush2.bf16.msra.mxu0 0
    %3850 = vmatprep.subr.bf16.mxu0 0
    %3851 = vmatpush2.bf16.msra.mxu0 0
    %3852 = vmatprep.subr.bf16.mxu0 0
    %3853 = vmatpush2.bf16.msra.mxu0 0
    %3854 = vmatprep.subr.bf16.mxu0 0
    %3855 = vmatpush2.bf16.msra.mxu0 0
    %3856 = vmatprep.subr.bf16.mxu0 0
    %3857 = vmatpush2.bf16.msra.mxu0 0
    %3858 = vmatprep.subr.bf16.mxu0 0
    %3859 = vmatpush2.bf16.msra.mxu0 0
    %3860 = vmatprep.mubr.bf16.mxu0 0
    %3861 = vmatmul.mubr.bf16.gmra.mxu0 %v3826
    %v3862 = vpop.f32.mrf.mxu0
    %v3863 = vadd.f32 0.0, %v3862
    %v3864 = vpop.f32.mrf.mxu0
    %v3865 = vpop.f32.mrf.mxu0
    %v3866 = vadd.f32 0.0, %v3865
    %v3867 = vpop.f32.mrf.mxu0
    %3868 = vdwg.mxu0
    %v3869 = vadd.f32 %v3699, %v3863
    %v3870 = vadd.f32 %v3700, %v3866
    %s3871 = scalar_lea.vmem %s9, 1
    %v3872 = vld [vmem:[%s3871] sm:$0x1]
    %v3874 = vlaneseq
    %v3875 = vshrl.u32 %v3874, 7
    %v3876 = vsub.s32 0, %v3875
    %v3877 = vrot.slane %v3872, %v3876
    %v3879 = vadd.f32 %v3194, %v3877
    %v3880 = vadd.f32 %v3195, %v3877
    %v3881 = vadd.f32 %v3869, %v3877
    %v3882 = vadd.f32 %v3870, %v3877
    %v3883 = vadd.f32 %v2191, %v3879
    %v3884 = vadd.f32 %v2192, %v3880
    %v3885 = vadd.f32 %v2193, %v3881
    %v3886 = vadd.f32 %v2194, %v3882
    %s3887 = scalar_lea.vmem %s10, 1
    %v3888 = vld [vmem:[%s3887] sm:$0x1]
    %s3889 = scalar_lea.vmem %s11, 1
    %v3890 = vld [vmem:[%s3889] sm:$0x1]
    %v3891 = vsel %vm190, %v3883, 0.0
    %3892 = vadd.xlane.f32.xlu0 %v3891
    %v3893 = vpop.xlane.xlu0 %3892
    %v3894 = vsel %vm190, %v3884, 0.0
    %3895 = vadd.xlane.f32.xlu0 %v3894
    %v3896 = vpop.xlane.xlu0 %3895
    %v3897 = vsel %vm190, %v3885, 0.0
    %3898 = vadd.xlane.f32.xlu0 %v3897
    %v3899 = vpop.xlane.xlu0 %3898
    %v3900 = vsel %vm190, %v3886, 0.0
    %3901 = vadd.xlane.f32.xlu0 %v3900
    %v3902 = vpop.xlane.xlu0 %3901
    %v3903 = vmul.f32 %v3893, %v203
    %v3904 = vmul.f32 %v3896, %v203
    %v3905 = vmul.f32 %v3899, %v203
    %v3906 = vmul.f32 %v3902, %v203
    %v3907 = vsub.f32 %v3883, %v3903
    %v3908 = vsub.f32 %v3884, %v3904
    %v3909 = vsub.f32 %v3885, %v3905
    %v3910 = vsub.f32 %v3886, %v3906
    %v3911 = vmul.f32 %v3907, %v3907
    %v3912 = vmul.f32 %v3908, %v3908
    %v3913 = vmul.f32 %v3909, %v3909
    %v3914 = vmul.f32 %v3910, %v3910
    %v3915 = vsel %vm190, %v3911, 0.0
    %3916 = vadd.xlane.f32.xlu0 %v3915
    %v3917 = vpop.xlane.xlu0 %3916
    %v3918 = vsel %vm190, %v3912, 0.0
    %3919 = vadd.xlane.f32.xlu0 %v3918
    %v3920 = vpop.xlane.xlu0 %3919
    %v3921 = vsel %vm190, %v3913, 0.0
    %3922 = vadd.xlane.f32.xlu0 %v3921
    %v3923 = vpop.xlane.xlu0 %3922
    %v3924 = vsel %vm190, %v3914, 0.0
    %3925 = vadd.xlane.f32.xlu0 %v3924
    %v3926 = vpop.xlane.xlu0 %3925
    %v3927 = vmul.f32 %v3917, %v203
    %v3928 = vmul.f32 %v3920, %v203
    %v3929 = vmul.f32 %v3923, %v203
    %v3930 = vmul.f32 %v3926, %v203
    %v3931 = vadd.f32 %v3927, 1e-05
    %v3932 = vadd.f32 %v3928, 1e-05
    %v3933 = vadd.f32 %v3929, 1e-05
    %v3934 = vadd.f32 %v3930, 1e-05
    %v3935 = vrsqrt.pop %v3931
    %v3936 = vrsqrt.pop %v3932
    %v3937 = vrsqrt.pop %v3933
    %v3938 = vrsqrt.pop %v3934
    %v3939 = vmul.f32 %v3907, %v3935
    %v3940 = vmul.f32 %v3908, %v3936
    %v3941 = vmul.f32 %v3909, %v3937
    %v3942 = vmul.f32 %v3910, %v3938
    %v3944 = vlaneseq
    %v3945 = vshrl.u32 %v3944, 7
    %v3946 = vsub.s32 0, %v3945
    %v3947 = vrot.slane %v3888, %v3946
    %v3949 = vmul.f32 %v3939, %v3947
    %v3950 = vmul.f32 %v3940, %v3947
    %v3951 = vmul.f32 %v3941, %v3947
    %v3952 = vmul.f32 %v3942, %v3947
    %v3954 = vlaneseq
    %v3955 = vshrl.u32 %v3954, 7
    %v3956 = vsub.s32 0, %v3955
    %v3957 = vrot.slane %v3890, %v3956
    %v3959 = vadd.f32 %v3949, %v3957
    %v3960 = vadd.f32 %v3950, %v3957
    %v3961 = vadd.f32 %v3951, %v3957
    %v3962 = vadd.f32 %v3952, %v3957
    %v3963 = vpack.c.bf16 %v3960, %v3959
    %v3964 = vpack.c.bf16 %v3962, %v3961
    %s3965 = scalar_lea.vmem %s12, 16
    %v3966 = vld [vmem:[%s3965] sm:$0xf]
    %v3967 = vld [vmem:[%s3965 + $0x4] sm:$0xf]
    %v3968 = vld [vmem:[%s3965 + $0x8] sm:$0xf]
    %v3969 = vld [vmem:[%s3965 + $0xc] sm:$0xf]
    %s3970 = scalar_lea.vmem %s13, 1
    %v3971 = vld [vmem:[%s3970] sm:$0x1]
    %v3973 = vlaneseq
    %v3974 = vshrl.u32 %v3973, 7
    %v3975 = vsub.s32 0, %v3974
    %v3976 = vrot.slane %v3971, %v3975
    %v3982 = vunpack.c.l.b16 %v3966
    %v3983 = vunpack.c.l.b16 %v3967
    %v3984 = vunpack.c.l.b16 %v3968
    %v3985 = vunpack.c.l.b16 %v3969
    %v3986 = vpack.c.b16 %v3983, %v3982
    %v3987 = vpack.c.b16 %v3985, %v3984
    %v3991 = vsel %vm190, %v3963, 0
    %v3994 = vsel %vm190, %v3964, 0
    %3996 = vmatprep.subr.bf16.mxu0 0
    %3997 = vmatpush1.bf16.msra.mxu0 0
    %3998 = vmatprep.subr.bf16.mxu0 0
    %3999 = vmatpush1.bf16.msra.mxu0 0
    %4000 = vmatprep.subr.bf16.mxu0 0
    %4001 = vmatpush1.bf16.msra.mxu0 0
    %4002 = vmatprep.subr.bf16.mxu0 0
    %4003 = vmatpush1.bf16.msra.mxu0 0
    %4004 = vmatprep.subr.bf16.mxu0 0
    %4005 = vmatpush1.bf16.msra.mxu0 0
    %4006 = vmatprep.subr.bf16.mxu0 0
    %4007 = vmatpush1.bf16.msra.mxu0 0
    %4008 = vmatprep.subr.bf16.mxu0 0
    %4009 = vmatpush1.bf16.msra.mxu0 %v3987
    %4010 = vmatprep.subr.bf16.mxu0 0
    %4011 = vmatpush1.bf16.msra.mxu0 %v3986
    %4012 = vmatprep.subr.bf16.mxu0 0
    %4013 = vmatpush2.bf16.msra.mxu0 0
    %4014 = vmatprep.subr.bf16.mxu0 0
    %4015 = vmatpush2.bf16.msra.mxu0 0
    %4016 = vmatprep.subr.bf16.mxu0 0
    %4017 = vmatpush2.bf16.msra.mxu0 0
    %4018 = vmatprep.subr.bf16.mxu0 0
    %4019 = vmatpush2.bf16.msra.mxu0 0
    %4020 = vmatprep.subr.bf16.mxu0 0
    %4021 = vmatpush2.bf16.msra.mxu0 0
    %4022 = vmatprep.subr.bf16.mxu0 0
    %4023 = vmatpush2.bf16.msra.mxu0 0
    %4024 = vmatprep.subr.bf16.mxu0 0
    %4025 = vmatpush2.bf16.msra.mxu0 0
    %4026 = vmatprep.subr.bf16.mxu0 0
    %4027 = vmatpush2.bf16.msra.mxu0 0
    %4028 = vmatprep.mubr.bf16.mxu0 0
    %4029 = vmatmul.mubr.bf16.gmra.mxu0 %v3991
    %v4030 = vpop.f32.mrf.mxu0
    %v4031 = vadd.f32 %v3976, %v4030
    %v4032 = vpop.f32.mrf.mxu0
    %v4033 = vpop.f32.mrf.mxu0
    %v4034 = vadd.f32 %v3976, %v4033
    %v4035 = vpop.f32.mrf.mxu0
    %4036 = vmatprep.mubr.bf16.mxu0 0
    %4037 = vmatmul.mubr.bf16.gmra.mxu0 %v3994
    %v4038 = vpop.f32.mrf.mxu0
    %v4039 = vadd.f32 %v3976, %v4038
    %v4040 = vpop.f32.mrf.mxu0
    %v4041 = vpop.f32.mrf.mxu0
    %v4042 = vadd.f32 %v3976, %v4041
    %v4043 = vpop.f32.mrf.mxu0
    %4044 = vdwg.mxu0
    %v4045 = vmul.f32 %v4031, %v4031
    %v4046 = vmul.f32 %v4034, %v4034
    %v4047 = vmul.f32 %v4039, %v4039
    %v4048 = vmul.f32 %v4042, %v4042
    %v4049 = vmul.f32 %v4031, %v4045
    %v4050 = vmul.f32 %v4034, %v4046
    %v4051 = vmul.f32 %v4039, %v4047
    %v4052 = vmul.f32 %v4042, %v4048
    %v4053 = vmul.f32 %v4049, 0.044715
    %v4054 = vmul.f32 %v4050, 0.044715
    %v4055 = vmul.f32 %v4051, 0.044715
    %v4056 = vmul.f32 %v4052, 0.044715
    %v4057 = vadd.f32 %v4031, %v4053
    %v4058 = vadd.f32 %v4034, %v4054
    %v4059 = vadd.f32 %v4039, %v4055
    %v4060 = vadd.f32 %v4042, %v4056
    %v4061 = vmul.f32 %v4057, 0.7978846
    %v4062 = vmul.f32 %v4058, 0.7978846
    %v4063 = vmul.f32 %v4059, 0.7978846
    %v4064 = vmul.f32 %v4060, 0.7978846
    %v4065 = vtanh.pop %v4061
    %v4066 = vtanh.pop %v4062
    %v4067 = vtanh.pop %v4063
    %v4068 = vtanh.pop %v4064
    %v4069 = vadd.f32 %v4065, 1.0
    %v4070 = vadd.f32 %v4066, 1.0
    %v4071 = vadd.f32 %v4067, 1.0
    %v4072 = vadd.f32 %v4068, 1.0
    %v4073 = vmul.f32 %v4069, 0.5
    %v4074 = vmul.f32 %v4070, 0.5
    %v4075 = vmul.f32 %v4071, 0.5
    %v4076 = vmul.f32 %v4072, 0.5
    %v4077 = vmul.f32 %v4031, %v4073
    %v4078 = vmul.f32 %v4034, %v4074
    %v4079 = vmul.f32 %v4039, %v4075
    %v4080 = vmul.f32 %v4042, %v4076
    %v4081 = vpack.c.bf16 %v4078, %v4077
    %v4082 = vpack.c.bf16 %v4080, %v4079
    %s4083 = scalar_lea.vmem %s14, 64
    %v4084 = vld [vmem:[%s4083] sm:$0xf]
    %v4085 = vld [vmem:[%s4083 + $0x4] sm:$0xf]
    %v4086 = vld [vmem:[%s4083 + $0x8] sm:$0xf]
    %v4087 = vld [vmem:[%s4083 + $0xc] sm:$0xf]
    %v4088 = vld [vmem:[%s4083 + $0x10] sm:$0xf]
    %v4089 = vld [vmem:[%s4083 + $0x14] sm:$0xf]
    %v4090 = vld [vmem:[%s4083 + $0x18] sm:$0xf]
    %v4091 = vld [vmem:[%s4083 + $0x1c] sm:$0xf]
    %v4092 = vld [vmem:[%s4083 + $0x20] sm:$0xf]
    %v4093 = vld [vmem:[%s4083 + $0x24] sm:$0xf]
    %v4094 = vld [vmem:[%s4083 + $0x28] sm:$0xf]
    %v4095 = vld [vmem:[%s4083 + $0x2c] sm:$0xf]
    %v4096 = vld [vmem:[%s4083 + $0x30] sm:$0xf]
    %v4097 = vld [vmem:[%s4083 + $0x34] sm:$0xf]
    %v4098 = vld [vmem:[%s4083 + $0x38] sm:$0xf]
    %v4099 = vld [vmem:[%s4083 + $0x3c] sm:$0xf]
    %s4100 = scalar_lea.vmem %s15, 1
    %v4101 = vld [vmem:[%s4100] sm:$0x1]
    %v4103 = vlaneseq
    %v4104 = vshrl.u32 %v4103, 7
    %v4105 = vsub.s32 0, %v4104
    %v4106 = vrot.slane %v4101, %v4105
    %v4124 = vunpack.c.l.b16 %v4084
    %v4125 = vunpack.c.l.b16 %v4085
    %v4126 = vunpack.c.l.b16 %v4086
    %v4127 = vunpack.c.l.b16 %v4087
    %v4128 = vunpack.c.l.b16 %v4088
    %v4129 = vunpack.c.l.b16 %v4089
    %v4130 = vunpack.c.l.b16 %v4090
    %v4131 = vunpack.c.l.b16 %v4091
    %v4132 = vunpack.c.l.b16 %v4092
    %v4133 = vunpack.c.l.b16 %v4093
    %v4134 = vunpack.c.l.b16 %v4094
    %v4135 = vunpack.c.l.b16 %v4095
    %v4136 = vunpack.c.l.b16 %v4096
    %v4137 = vunpack.c.l.b16 %v4097
    %v4138 = vunpack.c.l.b16 %v4098
    %v4139 = vunpack.c.l.b16 %v4099
    %v4140 = vpack.c.b16 %v4125, %v4124
    %v4141 = vpack.c.b16 %v4127, %v4126
    %v4142 = vpack.c.b16 %v4129, %v4128
    %v4143 = vpack.c.b16 %v4131, %v4130
    %v4144 = vpack.c.b16 %v4133, %v4132
    %v4145 = vpack.c.b16 %v4135, %v4134
    %v4146 = vpack.c.b16 %v4137, %v4136
    %v4147 = vpack.c.b16 %v4139, %v4138
    %4156 = vmatprep.subr.bf16.mxu0 0
    %4157 = vmatpush1.bf16.msra.mxu0 %v4147
    %4158 = vmatprep.subr.bf16.mxu0 0
    %4159 = vmatpush1.bf16.msra.mxu0 %v4146
    %4160 = vmatprep.subr.bf16.mxu0 0
    %4161 = vmatpush1.bf16.msra.mxu0 %v4145
    %4162 = vmatprep.subr.bf16.mxu0 0
    %4163 = vmatpush1.bf16.msra.mxu0 %v4144
    %4164 = vmatprep.subr.bf16.mxu0 0
    %4165 = vmatpush1.bf16.msra.mxu0 %v4143
    %4166 = vmatprep.subr.bf16.mxu0 0
    %4167 = vmatpush1.bf16.msra.mxu0 %v4142
    %4168 = vmatprep.subr.bf16.mxu0 0
    %4169 = vmatpush1.bf16.msra.mxu0 %v4141
    %4170 = vmatprep.subr.bf16.mxu0 0
    %4171 = vmatpush1.bf16.msra.mxu0 %v4140
    %4172 = vmatprep.subr.bf16.mxu0 0
    %4173 = vmatpush2.bf16.msra.mxu0 0
    %4174 = vmatprep.subr.bf16.mxu0 0
    %4175 = vmatpush2.bf16.msra.mxu0 0
    %4176 = vmatprep.subr.bf16.mxu0 0
    %4177 = vmatpush2.bf16.msra.mxu0 0
    %4178 = vmatprep.subr.bf16.mxu0 0
    %4179 = vmatpush2.bf16.msra.mxu0 0
    %4180 = vmatprep.subr.bf16.mxu0 0
    %4181 = vmatpush2.bf16.msra.mxu0 0
    %4182 = vmatprep.subr.bf16.mxu0 0
    %4183 = vmatpush2.bf16.msra.mxu0 0
    %4184 = vmatprep.subr.bf16.mxu0 0
    %4185 = vmatpush2.bf16.msra.mxu0 0
    %4186 = vmatprep.subr.bf16.mxu0 0
    %4187 = vmatpush2.bf16.msra.mxu0 0
    %4188 = vmatprep.mubr.bf16.mxu0 0
    %4189 = vmatmul.mubr.bf16.gmra.mxu0 %v4081
    %v4190 = vpop.f32.mrf.mxu0
    %v4191 = vadd.f32 %v4106, %v4190
    %v4192 = vpop.f32.mrf.mxu0
    %v4193 = vpop.f32.mrf.mxu0
    %v4194 = vadd.f32 %v4106, %v4193
    %v4195 = vpop.f32.mrf.mxu0
    %4196 = vmatprep.mubr.bf16.mxu0 0
    %4197 = vmatmul.mubr.bf16.gmra.mxu0 %v4082
    %v4198 = vpop.f32.mrf.mxu0
    %v4199 = vadd.f32 %v4106, %v4198
    %v4200 = vpop.f32.mrf.mxu0
    %v4201 = vpop.f32.mrf.mxu0
    %v4202 = vadd.f32 %v4106, %v4201
    %v4203 = vpop.f32.mrf.mxu0
    %4204 = vdwg.mxu0
    %v4205 = vadd.f32 %v3883, %v4191
    %v4206 = vadd.f32 %v3884, %v4194
    %v4207 = vadd.f32 %v3885, %v4199
    %v4208 = vadd.f32 %v3886, %v4202
    %v4209 = vld [vmem:[%s16] sm:$0x1]
    %v4210 = vld [vmem:[%s17] sm:$0x1]
    %v4211 = vsel %vm190, %v4205, 0.0
    %4212 = vadd.xlane.f32.xlu0 %v4211
    %v4213 = vpop.xlane.xlu0 %4212
    %v4214 = vsel %vm190, %v4206, 0.0
    %4215 = vadd.xlane.f32.xlu0 %v4214
    %v4216 = vpop.xlane.xlu0 %4215
    %v4217 = vsel %vm190, %v4207, 0.0
    %4218 = vadd.xlane.f32.xlu0 %v4217
    %v4219 = vpop.xlane.xlu0 %4218
    %v4220 = vsel %vm190, %v4208, 0.0
    %4221 = vadd.xlane.f32.xlu0 %v4220
    %v4222 = vpop.xlane.xlu0 %4221
    %v4223 = vmul.f32 %v4213, %v203
    %v4224 = vmul.f32 %v4216, %v203
    %v4225 = vmul.f32 %v4219, %v203
    %v4226 = vmul.f32 %v4222, %v203
    %v4227 = vsub.f32 %v4205, %v4223
    %v4228 = vsub.f32 %v4206, %v4224
    %v4229 = vsub.f32 %v4207, %v4225
    %v4230 = vsub.f32 %v4208, %v4226
    %v4231 = vmul.f32 %v4227, %v4227
    %v4232 = vmul.f32 %v4228, %v4228
    %v4233 = vmul.f32 %v4229, %v4229
    %v4234 = vmul.f32 %v4230, %v4230
    %v4235 = vsel %vm190, %v4231, 0.0
    %4236 = vadd.xlane.f32.xlu0 %v4235
    %v4237 = vpop.xlane.xlu0 %4236
    %v4238 = vsel %vm190, %v4232, 0.0
    %4239 = vadd.xlane.f32.xlu0 %v4238
    %v4240 = vpop.xlane.xlu0 %4239
    %v4241 = vsel %vm190, %v4233, 0.0
    %4242 = vadd.xlane.f32.xlu0 %v4241
    %v4243 = vpop.xlane.xlu0 %4242
    %v4244 = vsel %vm190, %v4234, 0.0
    %4245 = vadd.xlane.f32.xlu0 %v4244
    %v4246 = vpop.xlane.xlu0 %4245
    %v4247 = vmul.f32 %v4237, %v203
    %v4248 = vmul.f32 %v4240, %v203
    %v4249 = vmul.f32 %v4243, %v203
    %v4250 = vmul.f32 %v4246, %v203
    %v4251 = vadd.f32 %v4247, 1e-05
    %v4252 = vadd.f32 %v4248, 1e-05
    %v4253 = vadd.f32 %v4249, 1e-05
    %v4254 = vadd.f32 %v4250, 1e-05
    %v4255 = vrsqrt.pop %v4251
    %v4256 = vrsqrt.pop %v4252
    %v4257 = vrsqrt.pop %v4253
    %v4258 = vrsqrt.pop %v4254
    %v4259 = vmul.f32 %v4227, %v4255
    %v4260 = vmul.f32 %v4228, %v4256
    %v4261 = vmul.f32 %v4229, %v4257
    %v4262 = vmul.f32 %v4230, %v4258
    %v4264 = vlaneseq
    %v4265 = vshrl.u32 %v4264, 7
    %v4266 = vsub.s32 0, %v4265
    %v4267 = vrot.slane %v4209, %v4266
    %v4269 = vmul.f32 %v4259, %v4267
    %v4270 = vmul.f32 %v4260, %v4267
    %v4271 = vmul.f32 %v4261, %v4267
    %v4272 = vmul.f32 %v4262, %v4267
    %v4274 = vlaneseq
    %v4275 = vshrl.u32 %v4274, 7
    %v4276 = vsub.s32 0, %v4275
    %v4277 = vrot.slane %v4210, %v4276
    %v4279 = vadd.f32 %v4269, %v4277
    %v4280 = vadd.f32 %v4270, %v4277
    %v4281 = vadd.f32 %v4271, %v4277
    %v4282 = vadd.f32 %v4272, %v4277
    %v4283 = vpack.c.bf16 %v4280, %v4279
    %v4284 = vpack.c.bf16 %v4282, %v4281
    %v4285 = vld [vmem:[%s18] sm:$0xf]
    %v4286 = vld [vmem:[%s18 + $0x4] sm:$0xf]
    %v4287 = vld [vmem:[%s18 + $0x8] sm:$0xf]
    %v4288 = vld [vmem:[%s18 + $0xc] sm:$0xf]
    %v4289 = vld [vmem:[%s19] sm:$0x1]
    %v4291 = vlaneseq
    %v4292 = vshrl.u32 %v4291, 7
    %v4293 = vsub.s32 0, %v4292
    %v4294 = vrot.slane %v4289, %v4293
    %v4300 = vunpack.c.l.b16 %v4285
    %v4301 = vunpack.c.l.b16 %v4286
    %v4302 = vunpack.c.l.b16 %v4287
    %v4303 = vunpack.c.l.b16 %v4288
    %v4304 = vpack.c.b16 %v4301, %v4300
    %v4305 = vpack.c.b16 %v4303, %v4302
    %v4309 = vsel %vm190, %v4283, 0
    %v4312 = vsel %vm190, %v4284, 0
    %4314 = vmatprep.subr.bf16.mxu0 0
    %4315 = vmatpush1.bf16.msra.mxu0 0
    %4316 = vmatprep.subr.bf16.mxu0 0
    %4317 = vmatpush1.bf16.msra.mxu0 0
    %4318 = vmatprep.subr.bf16.mxu0 0
    %4319 = vmatpush1.bf16.msra.mxu0 0
    %4320 = vmatprep.subr.bf16.mxu0 0
    %4321 = vmatpush1.bf16.msra.mxu0 0
    %4322 = vmatprep.subr.bf16.mxu0 0
    %4323 = vmatpush1.bf16.msra.mxu0 0
    %4324 = vmatprep.subr.bf16.mxu0 0
    %4325 = vmatpush1.bf16.msra.mxu0 0
    %4326 = vmatprep.subr.bf16.mxu0 0
    %4327 = vmatpush1.bf16.msra.mxu0 %v4305
    %4328 = vmatprep.subr.bf16.mxu0 0
    %4329 = vmatpush1.bf16.msra.mxu0 %v4304
    %4330 = vmatprep.subr.bf16.mxu0 0
    %4331 = vmatpush2.bf16.msra.mxu0 0
    %4332 = vmatprep.subr.bf16.mxu0 0
    %4333 = vmatpush2.bf16.msra.mxu0 0
    %4334 = vmatprep.subr.bf16.mxu0 0
    %4335 = vmatpush2.bf16.msra.mxu0 0
    %4336 = vmatprep.subr.bf16.mxu0 0
    %4337 = vmatpush2.bf16.msra.mxu0 0
    %4338 = vmatprep.subr.bf16.mxu0 0
    %4339 = vmatpush2.bf16.msra.mxu0 0
    %4340 = vmatprep.subr.bf16.mxu0 0
    %4341 = vmatpush2.bf16.msra.mxu0 0
    %4342 = vmatprep.subr.bf16.mxu0 0
    %4343 = vmatpush2.bf16.msra.mxu0 0
    %4344 = vmatprep.subr.bf16.mxu0 0
    %4345 = vmatpush2.bf16.msra.mxu0 0
    %4346 = vmatprep.mubr.bf16.mxu0 0
    %4347 = vmatmul.mubr.bf16.gmra.mxu0 %v4309
    %v4348 = vpop.f32.mrf.mxu0
    %v4349 = vadd.f32 %v4294, %v4348
    %v4350 = vpop.f32.mrf.mxu0
    %v4351 = vpop.f32.mrf.mxu0
    %v4352 = vadd.f32 %v4294, %v4351
    %v4353 = vpop.f32.mrf.mxu0
    %4354 = vmatprep.mubr.bf16.mxu0 0
    %4355 = vmatmul.mubr.bf16.gmra.mxu0 %v4312
    %v4356 = vpop.f32.mrf.mxu0
    %v4357 = vadd.f32 %v4294, %v4356
    %v4358 = vpop.f32.mrf.mxu0
    %v4359 = vpop.f32.mrf.mxu0
    %v4360 = vadd.f32 %v4294, %v4359
    %v4361 = vpop.f32.mrf.mxu0
    %4362 = vdwg.mxu0
    %v4363 = vmul.f32 %v4349, %v4349
    %v4364 = vmul.f32 %v4352, %v4352
    %v4365 = vmul.f32 %v4357, %v4357
    %v4366 = vmul.f32 %v4360, %v4360
    %v4367 = vmul.f32 %v4349, %v4363
    %v4368 = vmul.f32 %v4352, %v4364
    %v4369 = vmul.f32 %v4357, %v4365
    %v4370 = vmul.f32 %v4360, %v4366
    %v4371 = vmul.f32 %v4367, 0.044715
    %v4372 = vmul.f32 %v4368, 0.044715
    %v4373 = vmul.f32 %v4369, 0.044715
    %v4374 = vmul.f32 %v4370, 0.044715
    %v4375 = vadd.f32 %v4349, %v4371
    %v4376 = vadd.f32 %v4352, %v4372
    %v4377 = vadd.f32 %v4357, %v4373
    %v4378 = vadd.f32 %v4360, %v4374
    %v4379 = vmul.f32 %v4375, 0.7978846
    %v4380 = vmul.f32 %v4376, 0.7978846
    %v4381 = vmul.f32 %v4377, 0.7978846
    %v4382 = vmul.f32 %v4378, 0.7978846
    %v4383 = vtanh.pop %v4379
    %v4384 = vtanh.pop %v4380
    %v4385 = vtanh.pop %v4381
    %v4386 = vtanh.pop %v4382
    %v4387 = vadd.f32 %v4383, 1.0
    %v4388 = vadd.f32 %v4384, 1.0
    %v4389 = vadd.f32 %v4385, 1.0
    %v4390 = vadd.f32 %v4386, 1.0
    %v4391 = vmul.f32 %v4387, 0.5
    %v4392 = vmul.f32 %v4388, 0.5
    %v4393 = vmul.f32 %v4389, 0.5
    %v4394 = vmul.f32 %v4390, 0.5
    %v4395 = vmul.f32 %v4349, %v4391
    %v4396 = vmul.f32 %v4352, %v4392
    %v4397 = vmul.f32 %v4357, %v4393
    %v4398 = vmul.f32 %v4360, %v4394
    %v4399 = vpack.c.bf16 %v4396, %v4395
    %v4400 = vpack.c.bf16 %v4398, %v4397
    %v4401 = vld [vmem:[%s20] sm:$0xf]
    %v4402 = vld [vmem:[%s20 + $0x4] sm:$0xf]
    %v4403 = vld [vmem:[%s20 + $0x8] sm:$0xf]
    %v4404 = vld [vmem:[%s20 + $0xc] sm:$0xf]
    %v4405 = vld [vmem:[%s20 + $0x10] sm:$0xf]
    %v4406 = vld [vmem:[%s20 + $0x14] sm:$0xf]
    %v4407 = vld [vmem:[%s20 + $0x18] sm:$0xf]
    %v4408 = vld [vmem:[%s20 + $0x1c] sm:$0xf]
    %v4409 = vld [vmem:[%s21] sm:$0x1]
    %v4411 = vlaneseq
    %v4412 = vshrl.u32 %v4411, 7
    %v4413 = vsub.s32 0, %v4412
    %v4414 = vrot.slane %v4409, %v4413
    %v4424 = vunpack.c.l.b16 %v4401
    %v4425 = vunpack.c.l.b16 %v4402
    %v4426 = vunpack.c.l.b16 %v4403
    %v4427 = vunpack.c.l.b16 %v4404
    %v4428 = vunpack.c.l.b16 %v4405
    %v4429 = vunpack.c.l.b16 %v4406
    %v4430 = vunpack.c.l.b16 %v4407
    %v4431 = vunpack.c.l.b16 %v4408
    %v4432 = vpack.c.b16 %v4425, %v4424
    %v4433 = vpack.c.b16 %v4427, %v4426
    %v4434 = vpack.c.b16 %v4429, %v4428
    %v4435 = vpack.c.b16 %v4431, %v4430
    %vm4440 = vcmask 523264
    %v4442 = vsel %vm4440, %v4399, 0
    %v4445 = vsel %vm4440, %v4400, 0
    %4447 = vmatprep.subr.bf16.mxu0 0
    %4448 = vmatpush1.bf16.msra.mxu0 0
    %4449 = vmatprep.subr.bf16.mxu0 0
    %4450 = vmatpush1.bf16.msra.mxu0 0
    %4451 = vmatprep.subr.bf16.mxu0 0
    %4452 = vmatpush1.bf16.msra.mxu0 0
    %4453 = vmatprep.subr.bf16.mxu0 0
    %4454 = vmatpush1.bf16.msra.mxu0 0
    %4455 = vmatprep.subr.bf16.mxu0 0
    %4456 = vmatpush1.bf16.msra.mxu0 %v4435
    %4457 = vmatprep.subr.bf16.mxu0 0
    %4458 = vmatpush1.bf16.msra.mxu0 %v4434
    %4459 = vmatprep.subr.bf16.mxu0 0
    %4460 = vmatpush1.bf16.msra.mxu0 %v4433
    %4461 = vmatprep.subr.bf16.mxu0 0
    %4462 = vmatpush1.bf16.msra.mxu0 %v4432
    %4463 = vmatprep.subr.bf16.mxu0 0
    %4464 = vmatpush2.bf16.msra.mxu0 0
    %4465 = vmatprep.subr.bf16.mxu0 0
    %4466 = vmatpush2.bf16.msra.mxu0 0
    %4467 = vmatprep.subr.bf16.mxu0 0
    %4468 = vmatpush2.bf16.msra.mxu0 0
    %4469 = vmatprep.subr.bf16.mxu0 0
    %4470 = vmatpush2.bf16.msra.mxu0 0
    %4471 = vmatprep.subr.bf16.mxu0 0
    %4472 = vmatpush2.bf16.msra.mxu0 0
    %4473 = vmatprep.subr.bf16.mxu0 0
    %4474 = vmatpush2.bf16.msra.mxu0 0
    %4475 = vmatprep.subr.bf16.mxu0 0
    %4476 = vmatpush2.bf16.msra.mxu0 0
    %4477 = vmatprep.subr.bf16.mxu0 0
    %4478 = vmatpush2.bf16.msra.mxu0 0
    %4479 = vmatprep.mubr.bf16.mxu0 0
    %4480 = vmatmul.mubr.bf16.gmra.mxu0 %v4442
    %v4481 = vpop.f32.mrf.mxu0
    %v4482 = vadd.f32 %v4414, %v4481
    %v4483 = vpop.f32.mrf.mxu0
    %v4484 = vpop.f32.mrf.mxu0
    %v4485 = vadd.f32 %v4414, %v4484
    %v4486 = vpop.f32.mrf.mxu0
    %4487 = vmatprep.mubr.bf16.mxu0 0
    %4488 = vmatmul.mubr.bf16.gmra.mxu0 %v4445
    %v4489 = vpop.f32.mrf.mxu0
    %v4490 = vadd.f32 %v4414, %v4489
    %v4491 = vpop.f32.mrf.mxu0
    %v4492 = vpop.f32.mrf.mxu0
    %v4493 = vadd.f32 %v4414, %v4492
    %v4494 = vpop.f32.mrf.mxu0
    %4495 = vdwg.mxu0
    %v4496 = vpack.c.bf16 %v4485, %v4482
    %v4497 = vpack.c.bf16 %v4493, %v4490
    %v4498 = vld [vmem:[%s22] sm:$0xf]
    %v4499 = vld [vmem:[%s22 + $0x4] sm:$0xf]
    %v4500 = vld [vmem:[%s22 + $0x8] sm:$0xf]
    %v4501 = vld [vmem:[%s22 + $0xc] sm:$0xf]
    %v4502 = vld [vmem:[%s23] sm:$0x1]
    %v4504 = vlaneseq
    %v4505 = vshrl.u32 %v4504, 7
    %v4506 = vsub.s32 0, %v4505
    %v4507 = vrot.slane %v4502, %v4506
    %v4513 = vunpack.c.l.b16 %v4498
    %v4514 = vunpack.c.l.b16 %v4499
    %v4515 = vunpack.c.l.b16 %v4500
    %v4516 = vunpack.c.l.b16 %v4501
    %v4517 = vpack.c.b16 %v4514, %v4513
    %v4518 = vpack.c.b16 %v4516, %v4515
    %v4522 = vsel %vm190, %v4496, 0
    %v4525 = vsel %vm190, %v4497, 0
    %4527 = vmatprep.subr.bf16.mxu0 0
    %4528 = vmatpush1.bf16.msra.mxu0 0
    %4529 = vmatprep.subr.bf16.mxu0 0
    %4530 = vmatpush1.bf16.msra.mxu0 0
    %4531 = vmatprep.subr.bf16.mxu0 0
    %4532 = vmatpush1.bf16.msra.mxu0 0
    %4533 = vmatprep.subr.bf16.mxu0 0
    %4534 = vmatpush1.bf16.msra.mxu0 0
    %4535 = vmatprep.subr.bf16.mxu0 0
    %4536 = vmatpush1.bf16.msra.mxu0 0
    %4537 = vmatprep.subr.bf16.mxu0 0
    %4538 = vmatpush1.bf16.msra.mxu0 0
    %4539 = vmatprep.subr.bf16.mxu0 0
    %4540 = vmatpush1.bf16.msra.mxu0 %v4518
    %4541 = vmatprep.subr.bf16.mxu0 0
    %4542 = vmatpush1.bf16.msra.mxu0 %v4517
    %4543 = vmatprep.subr.bf16.mxu0 0
    %4544 = vmatpush2.bf16.msra.mxu0 0
    %4545 = vmatprep.subr.bf16.mxu0 0
    %4546 = vmatpush2.bf16.msra.mxu0 0
    %4547 = vmatprep.subr.bf16.mxu0 0
    %4548 = vmatpush2.bf16.msra.mxu0 0
    %4549 = vmatprep.subr.bf16.mxu0 0
    %4550 = vmatpush2.bf16.msra.mxu0 0
    %4551 = vmatprep.subr.bf16.mxu0 0
    %4552 = vmatpush2.bf16.msra.mxu0 0
    %4553 = vmatprep.subr.bf16.mxu0 0
    %4554 = vmatpush2.bf16.msra.mxu0 0
    %4555 = vmatprep.subr.bf16.mxu0 0
    %4556 = vmatpush2.bf16.msra.mxu0 0
    %4557 = vmatprep.subr.bf16.mxu0 0
    %4558 = vmatpush2.bf16.msra.mxu0 0
    %4559 = vmatprep.mubr.bf16.mxu0 0
    %4560 = vmatmul.mubr.bf16.gmra.mxu0 %v4522
    %v4561 = vpop.f32.mrf.mxu0
    %v4562 = vadd.f32 %v4507, %v4561
    %v4563 = vpop.f32.mrf.mxu0
    %v4564 = vpop.f32.mrf.mxu0
    %v4565 = vadd.f32 %v4507, %v4564
    %v4566 = vpop.f32.mrf.mxu0
    %4567 = vmatprep.mubr.bf16.mxu0 0
    %4568 = vmatmul.mubr.bf16.gmra.mxu0 %v4525
    %v4569 = vpop.f32.mrf.mxu0
    %v4570 = vadd.f32 %v4507, %v4569
    %v4571 = vpop.f32.mrf.mxu0
    %v4572 = vpop.f32.mrf.mxu0
    %v4573 = vadd.f32 %v4507, %v4572
    %v4574 = vpop.f32.mrf.mxu0
    %4575 = vdwg.mxu0
    %4576 = vst [vmem:[#allocation2] sm:$0xff] %v4562
    %4577 = vst [vmem:[#allocation2 + $0x8] sm:$0xff] %v4565
    %4578 = vst [vmem:[#allocation2 + $0x10] sm:$0xff] %v4570
    %4579 = vst [vmem:[#allocation2 + $0x18] sm:$0xff] %v4573
    // Predicated region
    $region98: #{vit_for_autoregression_forward.1} parent=1 // pred_check
      _
    $region99: #{vit_for_autoregression_forward.1} parent=1 // pred_check_branch
      %4581 = sbr.rel (0) target = $region101
    $region100: #{vit_for_autoregression_forward.1} parent=1 // pred_region
      %s4583 = ssub.s32 512, 512
      %4584 = vsyncadd [#allocation3], %s4583
      %s4585 = sshll.u32 [#allocation2], 4
      %s4586 = int_to_ptr.vmem [resolvable:$true] %s4585
      %4591 = dma.vmem_to_hbm [thread:$0]  %s4586, 512, %s24, [#allocation3], 128, 128, 8
    $region101: #{vit_for_autoregression_forward.1} parent=1 // pred_fallthru
      _
    // Predicated region
    $region102: #{vit_for_autoregression_forward.1} parent=1 // pred_check
      _
    $region103: #{vit_for_autoregression_forward.1} parent=1 // pred_check_branch
      %4593 = sbr.rel (0) target = $region105
    $region104: #{vit_for_autoregression_forward.1} parent=1 // pred_region
      %4594 = dma.done [#allocation3], 512
    $region105: #{vit_for_autoregression_forward.1} parent=1 // pred_fallthru
      _
    %4595 = vsyncpa [#allocation3], 1

</llo_original>
